<compile_context>
chip_gen: v6e
topology: v6e:2x2x1
jax: 0.10.0
libtpu: 0.0.40
codegen_flags: <defaults>
</compile_context>

<pallas_src>
import numpy as np

import jax
import jax.numpy as jnp
from jax import lax
from jax.experimental import pallas as pl
from jax.experimental.pallas import tpu as pltpu


# ---------------------------------------------------------------------------
# Fused kernel (runs once per image; grid = (batch,))
# ---------------------------------------------------------------------------
def _pool_select(n_out, n_in):
    """(n_out, n_in) 0/1 matrices selecting even / odd input rows (exact via MXU)."""
    r = lax.broadcasted_iota(jnp.int32, (n_out, n_in), 0)
    c = lax.broadcasted_iota(jnp.int32, (n_out, n_in), 1)
    return ((c == 2 * r).astype(jnp.float32),
            (c == 2 * r + 1).astype(jnp.float32))


def _lenet5_kernel(x_ref, m1_ref, b1c_ref, m2_ref, b2c_ref, w1r_ref, b1f_ref,
                   w2p_ref, b2f_ref, w3p_ref, b3f_ref, o_ref, p1_ref, p2_ref):
    f32 = jnp.float32

    # ---- conv1 + bias + ReLU : (28, 256); col = (wo % 2)*128 + (wo // 2)*6 + cout
    acc = jnp.dot(x_ref[0:28, :], m1_ref[0], preferred_element_type=f32)
    for di in range(1, 5):
        acc = acc + jnp.dot(x_ref[di:di + 28, :], m1_ref[di],
                            preferred_element_type=f32)
    r1 = jnp.maximum(acc + b1c_ref[...], 0.0)

    # ---- 2x2 max-pool #1: width = max of the two aligned 128-col halves,
    #      height = max of even/odd row selections (tiny exact matmuls).
    wmax = jnp.maximum(r1[:, 0:128], r1[:, 128:256])                      # (28, 128)
    se, so = _pool_select(14, 28)
    p1_ref[...] = jnp.maximum(jnp.dot(se, wmax, preferred_element_type=f32),
                              jnp.dot(so, wmax, preferred_element_type=f32))  # (14,128)

    # ---- conv2 + bias + ReLU : (10, 256); col = (wo % 2)*128 + (wo // 2)*16 + cout
    acc = jnp.dot(p1_ref[0:10, :], m2_ref[0], preferred_element_type=f32)
    for di in range(1, 5):
        acc = acc + jnp.dot(p1_ref[di:di + 10, :], m2_ref[di],
                            preferred_element_type=f32)
    r2 = jnp.maximum(acc + b2c_ref[...], 0.0)

    # ---- 2x2 max-pool #2
    wmax = jnp.maximum(r2[:, 0:128], r2[:, 128:256])                      # (10, 128)
    se, so = _pool_select(5, 10)
    p2_ref[...] = jnp.maximum(jnp.dot(se, wmax, preferred_element_type=f32),
                              jnp.dot(so, wmax, preferred_element_type=f32))  # (5, 128)

    # ---- fc1 (torch NCHW flatten permutation folded into w1r at init) + ReLU
    f = jnp.dot(p2_ref[0:1, :], w1r_ref[0], preferred_element_type=f32)
    for h in range(1, 5):
        f = f + jnp.dot(p2_ref[h:h + 1, :], w1r_ref[h], preferred_element_type=f32)
    f = jnp.maximum(f + b1f_ref[...], 0.0)                                # (1, 128) / 120

    # ---- fc2 + ReLU, fc3 (all zero-padded to 128 lanes)
    f = jnp.maximum(jnp.dot(f, w2p_ref[...], preferred_element_type=f32)
                    + b2f_ref[...], 0.0)                                  # (1, 128) / 84
    f = jnp.dot(f, w3p_ref[...], preferred_element_type=f32) + b3f_ref[...]
    o_ref[...] = f                                                        # (1, 128) / 10


# ---------------------------------------------------------------------------
# Parameter init (torch-like) and one-time folding into kernel layout
# ---------------------------------------------------------------------------
def init_params(key):
    keys = jax.random.split(key, 10)

    def init(k, shape, fan_in):
        bound = 1.0 / float(fan_in) ** 0.5
        return jax.random.uniform(k, shape, jnp.float32, -bound, bound)

    return {
        "conv1_w": init(keys[0], (6, 1, 5, 5), 25),
        "conv1_b": init(keys[1], (6,), 25),
        "conv2_w": init(keys[2], (16, 6, 5, 5), 150),
        "conv2_b": init(keys[3], (16,), 150),
        "fc1_w": init(keys[4], (120, 400), 400),    # torch Linear: (out, in)
        "fc1_b": init(keys[5], (120,), 400),
        "fc2_w": init(keys[6], (84, 120), 120),
        "fc2_b": init(keys[7], (84,), 120),
        "fc3_w": init(keys[8], (10, 84), 84),
        "fc3_b": init(keys[9], (10,), 84),
    }


def prepare_params(params):
    """Fold torch-layout weights into the fused kernel's matrices (exact, init-time)."""
    w1 = np.asarray(params["conv1_w"], np.float32)     # (6, 1, 5, 5)
    b1 = np.asarray(params["conv1_b"], np.float32)
    w2 = np.asarray(params["conv2_w"], np.float32)     # (16, 6, 5, 5)
    b2 = np.asarray(params["conv2_b"], np.float32)
    f1w = np.asarray(params["fc1_w"], np.float32)      # (120, 400)
    f1b = np.asarray(params["fc1_b"], np.float32)
    f2w = np.asarray(params["fc2_w"], np.float32)      # (84, 120)
    f2b = np.asarray(params["fc2_b"], np.float32)
    f3w = np.asarray(params["fc3_w"], np.float32)      # (10, 84)
    f3b = np.asarray(params["fc3_b"], np.float32)

    # conv1 as banded matrices: out1[ho, :] = sum_di x[ho+di, :] @ m1[di]
    m1 = np.zeros((5, 32, 256), np.float32)
    b1c = np.zeros((1, 256), np.float32)
    for wo in range(28):
        base = (wo % 2) * 128 + (wo // 2) * 6
        b1c[0, base:base + 6] = b1
        for di in range(5):
            for dj in range(5):
                m1[di, wo + dj, base:base + 6] = w1[:, 0, di, dj]

    # conv2: input cols = wp*6 + cin (84 of 128 used); out cols parity-major (wp*16+cout)
    m2 = np.zeros((5, 128, 256), np.float32)
    b2c = np.zeros((1, 256), np.float32)
    for wo in range(10):
        base = (wo % 2) * 128 + (wo // 2) * 16
        b2c[0, base:base + 16] = b2
        for di in range(5):
            for dj in range(5):
                row = (wo + dj) * 6
                m2[di, row:row + 6, base:base + 16] = w2[:, :, di, dj].T   # (cin, cout)

    # fc1: fold torch flatten (idx = c*25 + h*5 + w) against pooled layout p2[h, w*16+c]
    w1r = np.zeros((5, 128, 128), np.float32)
    w1r[:, :80, :120] = (
        f1w.reshape(120, 16, 5, 5).transpose(2, 3, 1, 0).reshape(5, 80, 120))
    b1f = np.zeros((1, 128), np.float32); b1f[0, :120] = f1b
    w2p = np.zeros((128, 128), np.float32); w2p[:120, :84] = f2w.T
    b2f = np.zeros((1, 128), np.float32); b2f[0, :84] = f2b
    w3p = np.zeros((128, 128), np.float32); w3p[:84, :10] = f3w.T
    b3f = np.zeros((1, 128), np.float32); b3f[0, :10] = f3b

    return tuple(jnp.asarray(a)
                 for a in (m1, b1c, m2, b2c, w1r, b1f, w2p, b2f, w3p, b3f))


# ---------------------------------------------------------------------------
# Forward wrapper: one pallas_call for the whole network
# ---------------------------------------------------------------------------
def lenet5_forward(prepped, x_nchw):
    B = x_nchw.shape[0]
    x3 = x_nchw.reshape(B, 32, 32).astype(jnp.float32)
    m1, b1c, m2, b2c, w1r, b1f, w2p, b2f, w3p, b3f = prepped

    def full_spec(a):
        if a.ndim == 2:
            return pl.BlockSpec(a.shape, lambda b: (0, 0))
        return pl.BlockSpec(a.shape, lambda b: (0, 0, 0))

    macs_per_img = (5 * 28 * 32 * 256 + 2 * 14 * 28 * 128 + 5 * 10 * 128 * 256
                    + 2 * 5 * 10 * 128 + 5 * 128 * 128 + 2 * 128 * 128)
    bytes_acc = 4 * (int(x3.size) + sum(int(a.size) for a in prepped) + B * 128)

    out = pl.pallas_call(
        _lenet5_kernel,
        out_shape=jax.ShapeDtypeStruct((B, 1, 128), jnp.float32),
        grid=(B,),
        in_specs=[pl.BlockSpec((None, 32, 32), lambda b: (b, 0, 0))]
                 + [full_spec(a) for a in prepped],
        out_specs=pl.BlockSpec((None, 1, 128), lambda b: (b, 0, 0)),
        scratch_shapes=[pltpu.VMEM((14, 128), jnp.float32),   # pooled conv1 activation
                        pltpu.VMEM((5, 128), jnp.float32)],   # pooled conv2 activation
        compiler_params=pltpu.CompilerParams(
            dimension_semantics=("parallel",),
            vmem_limit_bytes=32 * 1024 * 1024),
        cost_estimate=pl.CostEstimate(flops=2 * macs_per_img * B,
                                      transcendentals=0,
                                      bytes_accessed=bytes_acc),
    )(x3, m1, b1c, m2, b2c, w1r, b1f, w2p, b2f, w3p, b3f)
    return out[:, 0, :10]


# ---------------------------------------------------------------------------
# Pure-JAX reference (for an in-script sanity check only)
# ---------------------------------------------------------------------------
def lenet5_reference(params, x):
    hi = lax.Precision.HIGHEST

    def conv(x, w, b):
        y = lax.conv_general_dilated(x, w, (1, 1), "VALID",
                                     dimension_numbers=("NCHW", "OIHW", "NCHW"),
                                     precision=hi)
        return y + b[None, :, None, None]

    def pool(x):
        return lax.reduce_window(x, -jnp.inf, lax.max,
                                 (1, 1, 2, 2), (1, 1, 2, 2), "VALID")

    x = pool(jax.nn.relu(conv(x, params["conv1_w"], params["conv1_b"])))
    x = pool(jax.nn.relu(conv(x, params["conv2_w"], params["conv2_b"])))
    x = x.reshape(x.shape[0], -1)
    x = jax.nn.relu(jnp.matmul(x, params["fc1_w"].T, precision=hi) + params["fc1_b"])
    x = jax.nn.relu(jnp.matmul(x, params["fc2_w"].T, precision=hi) + params["fc2_b"])
    return jnp.matmul(x, params["fc3_w"].T, precision=hi) + params["fc3_b"]


if __name__ == "__main__":
    key = jax.random.PRNGKey(0)
    pkey, xkey = jax.random.split(key)
    params = init_params(pkey)
    prepped = prepare_params(params)

    x = jax.random.normal(xkey, (2, 1, 32, 32), jnp.float32)  # LeNet-5 expects 32x32

    fwd = jax.jit(lenet5_forward)
    out = jax.block_until_ready(fwd(prepped, x))
    assert out.shape == (2, 10) and out.dtype == jnp.float32

    ref = jax.block_until_ready(lenet5_reference(params, x))
    np.testing.assert_allclose(np.asarray(out), np.asarray(ref), rtol=1e-2, atol=1e-2)
    print("KERNEL_OK")
</pallas_src>

<mosaic_0001>
module attributes {stable_mosaic.version = 11 : i64} {
  func.func @_lenet5_kernel(%arg0: i32, %arg1: memref<1x32x32xf32, #tpu.memory_space<vmem>>, %arg2: memref<5x32x256xf32, #tpu.memory_space<vmem>>, %arg3: memref<1x256xf32, #tpu.memory_space<vmem>>, %arg4: memref<5x128x256xf32, #tpu.memory_space<vmem>>, %arg5: memref<1x256xf32, #tpu.memory_space<vmem>>, %arg6: memref<5x128x128xf32, #tpu.memory_space<vmem>>, %arg7: memref<1x128xf32, #tpu.memory_space<vmem>>, %arg8: memref<128x128xf32, #tpu.memory_space<vmem>>, %arg9: memref<1x128xf32, #tpu.memory_space<vmem>>, %arg10: memref<128x128xf32, #tpu.memory_space<vmem>>, %arg11: memref<1x128xf32, #tpu.memory_space<vmem>>, %arg12: memref<1x1x128xf32, #tpu.memory_space<vmem>>, %arg13: memref<14x128xf32, #tpu.memory_space<vmem>>, %arg14: memref<5x128xf32, #tpu.memory_space<vmem>>) attributes {dimension_semantics = [#tpu.dimension_semantics<parallel>], iteration_bounds = array<i64: 2>, scalar_prefetch = 0 : i64, scratch_operands = 2 : i64, tpu.core_type = #tpu.core_type<tc>, window_params = [{transform_indices = @transform_0, window_bounds = array<i64: 1, 32, 32>}, {pipeline_mode = #tpu.pipeline_mode<synchronous>, transform_indices = @transform_1, window_bounds = array<i64: 5, 32, 256>}, {pipeline_mode = #tpu.pipeline_mode<synchronous>, transform_indices = @transform_2, window_bounds = array<i64: 1, 256>}, {pipeline_mode = #tpu.pipeline_mode<synchronous>, transform_indices = @transform_3, window_bounds = array<i64: 5, 128, 256>}, {pipeline_mode = #tpu.pipeline_mode<synchronous>, transform_indices = @transform_4, window_bounds = array<i64: 1, 256>}, {pipeline_mode = #tpu.pipeline_mode<synchronous>, transform_indices = @transform_5, window_bounds = array<i64: 5, 128, 128>}, {pipeline_mode = #tpu.pipeline_mode<synchronous>, transform_indices = @transform_6, window_bounds = array<i64: 1, 128>}, {pipeline_mode = #tpu.pipeline_mode<synchronous>, transform_indices = @transform_7, window_bounds = array<i64: 128, 128>}, {pipeline_mode = #tpu.pipeline_mode<synchronous>, transform_indices = @transform_8, window_bounds = array<i64: 1, 128>}, {pipeline_mode = #tpu.pipeline_mode<synchronous>, transform_indices = @transform_9, window_bounds = array<i64: 128, 128>}, {pipeline_mode = #tpu.pipeline_mode<synchronous>, transform_indices = @transform_10, window_bounds = array<i64: 1, 128>}, {transform_indices = @transform_11, window_bounds = array<i64: 1, 1, 128>}]} {
    %c0 = arith.constant 0 : index
    %c0_0 = arith.constant 0 : index
    %c0_1 = arith.constant 0 : index
    %0 = vector.load %arg1[%c0, %c0_0, %c0_1] : memref<1x32x32xf32, #tpu.memory_space<vmem>>, vector<1x28x32xf32>
    %1 = vector.shape_cast %0 : vector<1x28x32xf32> to vector<28x32xf32>
    %c0_2 = arith.constant 0 : index
    %c0_3 = arith.constant 0 : index
    %c0_4 = arith.constant 0 : index
    %2 = vector.load %arg2[%c0_2, %c0_3, %c0_4] : memref<5x32x256xf32, #tpu.memory_space<vmem>>, vector<1x32x256xf32>
    %3 = vector.shape_cast %2 : vector<1x32x256xf32> to vector<32x256xf32>
    %cst = arith.constant dense<0.000000e+00> : vector<28x256xf32>
    %4 = tpu.matmul %1, %3, %cst {dimension_numbers = #tpu.dot_dimension_numbers<[1], [0], [0], [1], [0, 0, 1, 1], [], []>} : vector<28x32xf32>, vector<32x256xf32>, vector<28x256xf32> -> vector<28x256xf32>
    %c0_5 = arith.constant 0 : index
    %c1 = arith.constant 1 : index
    %c0_6 = arith.constant 0 : index
    %5 = vector.load %arg1[%c0_5, %c1, %c0_6] : memref<1x32x32xf32, #tpu.memory_space<vmem>>, vector<1x28x32xf32>
    %6 = vector.shape_cast %5 : vector<1x28x32xf32> to vector<28x32xf32>
    %c1_7 = arith.constant 1 : index
    %c0_8 = arith.constant 0 : index
    %c0_9 = arith.constant 0 : index
    %7 = vector.load %arg2[%c1_7, %c0_8, %c0_9] : memref<5x32x256xf32, #tpu.memory_space<vmem>>, vector<1x32x256xf32>
    %8 = vector.shape_cast %7 : vector<1x32x256xf32> to vector<32x256xf32>
    %cst_10 = arith.constant dense<0.000000e+00> : vector<28x256xf32>
    %9 = tpu.matmul %6, %8, %cst_10 {dimension_numbers = #tpu.dot_dimension_numbers<[1], [0], [0], [1], [0, 0, 1, 1], [], []>} : vector<28x32xf32>, vector<32x256xf32>, vector<28x256xf32> -> vector<28x256xf32>
    %10 = arith.addf %4, %9 : vector<28x256xf32>
    %c0_11 = arith.constant 0 : index
    %c2 = arith.constant 2 : index
    %c0_12 = arith.constant 0 : index
    %11 = vector.load %arg1[%c0_11, %c2, %c0_12] : memref<1x32x32xf32, #tpu.memory_space<vmem>>, vector<1x28x32xf32>
    %12 = vector.shape_cast %11 : vector<1x28x32xf32> to vector<28x32xf32>
    %c2_13 = arith.constant 2 : index
    %c0_14 = arith.constant 0 : index
    %c0_15 = arith.constant 0 : index
    %13 = vector.load %arg2[%c2_13, %c0_14, %c0_15] : memref<5x32x256xf32, #tpu.memory_space<vmem>>, vector<1x32x256xf32>
    %14 = vector.shape_cast %13 : vector<1x32x256xf32> to vector<32x256xf32>
    %cst_16 = arith.constant dense<0.000000e+00> : vector<28x256xf32>
    %15 = tpu.matmul %12, %14, %cst_16 {dimension_numbers = #tpu.dot_dimension_numbers<[1], [0], [0], [1], [0, 0, 1, 1], [], []>} : vector<28x32xf32>, vector<32x256xf32>, vector<28x256xf32> -> vector<28x256xf32>
    %16 = arith.addf %10, %15 : vector<28x256xf32>
    %c0_17 = arith.constant 0 : index
    %c3 = arith.constant 3 : index
    %c0_18 = arith.constant 0 : index
    %17 = vector.load %arg1[%c0_17, %c3, %c0_18] : memref<1x32x32xf32, #tpu.memory_space<vmem>>, vector<1x28x32xf32>
    %18 = vector.shape_cast %17 : vector<1x28x32xf32> to vector<28x32xf32>
    %c3_19 = arith.constant 3 : index
    %c0_20 = arith.constant 0 : index
    %c0_21 = arith.constant 0 : index
    %19 = vector.load %arg2[%c3_19, %c0_20, %c0_21] : memref<5x32x256xf32, #tpu.memory_space<vmem>>, vector<1x32x256xf32>
    %20 = vector.shape_cast %19 : vector<1x32x256xf32> to vector<32x256xf32>
    %cst_22 = arith.constant dense<0.000000e+00> : vector<28x256xf32>
    %21 = tpu.matmul %18, %20, %cst_22 {dimension_numbers = #tpu.dot_dimension_numbers<[1], [0], [0], [1], [0, 0, 1, 1], [], []>} : vector<28x32xf32>, vector<32x256xf32>, vector<28x256xf32> -> vector<28x256xf32>
    %22 = arith.addf %16, %21 : vector<28x256xf32>
    %c0_23 = arith.constant 0 : index
    %c4 = arith.constant 4 : index
    %c0_24 = arith.constant 0 : index
    %23 = vector.load %arg1[%c0_23, %c4, %c0_24] : memref<1x32x32xf32, #tpu.memory_space<vmem>>, vector<1x28x32xf32>
    %24 = vector.shape_cast %23 : vector<1x28x32xf32> to vector<28x32xf32>
    %c4_25 = arith.constant 4 : index
    %c0_26 = arith.constant 0 : index
    %c0_27 = arith.constant 0 : index
    %25 = vector.load %arg2[%c4_25, %c0_26, %c0_27] : memref<5x32x256xf32, #tpu.memory_space<vmem>>, vector<1x32x256xf32>
    %26 = vector.shape_cast %25 : vector<1x32x256xf32> to vector<32x256xf32>
    %cst_28 = arith.constant dense<0.000000e+00> : vector<28x256xf32>
    %27 = tpu.matmul %24, %26, %cst_28 {dimension_numbers = #tpu.dot_dimension_numbers<[1], [0], [0], [1], [0, 0, 1, 1], [], []>} : vector<28x32xf32>, vector<32x256xf32>, vector<28x256xf32> -> vector<28x256xf32>
    %28 = arith.addf %22, %27 : vector<28x256xf32>
    %c0_29 = arith.constant 0 : index
    %c0_30 = arith.constant 0 : index
    %29 = vector.load %arg3[%c0_29, %c0_30] : memref<1x256xf32, #tpu.memory_space<vmem>>, vector<1x256xf32>
    %30 = vector.broadcast %29 : vector<1x256xf32> to vector<28x256xf32>
    %31 = arith.addf %28, %30 : vector<28x256xf32>
    %cst_31 = arith.constant 0.000000e+00 : f32
    %32 = vector.broadcast %cst_31 : f32 to vector<28x256xf32>
    %33 = arith.maximumf %31, %32 : vector<28x256xf32>
    %34 = vector.extract_strided_slice %33 {offsets = [0, 0], sizes = [28, 128], strides = [1, 1]} : vector<28x256xf32> to vector<28x128xf32>
    %35 = vector.extract_strided_slice %33 {offsets = [0, 128], sizes = [28, 128], strides = [1, 1]} : vector<28x256xf32> to vector<28x128xf32>
    %36 = arith.maximumf %34, %35 : vector<28x128xf32>
    %37 = tpu.iota {dimensions = array<i32: 0>} : vector<14x28xi32>
    %38 = tpu.iota {dimensions = array<i32: 1>} : vector<14x28xi32>
    %c2_i32 = arith.constant 2 : i32
    %39 = vector.broadcast %c2_i32 : i32 to vector<14x28xi32>
    %40 = arith.muli %39, %37 : vector<14x28xi32>
    %41 = arith.cmpi eq, %38, %40 : vector<14x28xi32>
    %42 = arith.extui %41 : vector<14x28xi1> to vector<14x28xi32>
    %43 = arith.sitofp %42 : vector<14x28xi32> to vector<14x28xf32>
    %c2_i32_32 = arith.constant 2 : i32
    %44 = vector.broadcast %c2_i32_32 : i32 to vector<14x28xi32>
    %45 = arith.muli %44, %37 : vector<14x28xi32>
    %c1_i32 = arith.constant 1 : i32
    %46 = vector.broadcast %c1_i32 : i32 to vector<14x28xi32>
    %47 = arith.addi %45, %46 : vector<14x28xi32>
    %48 = arith.cmpi eq, %38, %47 : vector<14x28xi32>
    %49 = arith.extui %48 : vector<14x28xi1> to vector<14x28xi32>
    %50 = arith.sitofp %49 : vector<14x28xi32> to vector<14x28xf32>
    %cst_33 = arith.constant dense<0.000000e+00> : vector<14x128xf32>
    %51 = tpu.matmul %43, %36, %cst_33 {dimension_numbers = #tpu.dot_dimension_numbers<[1], [0], [0], [1], [0, 0, 1, 1], [], []>} : vector<14x28xf32>, vector<28x128xf32>, vector<14x128xf32> -> vector<14x128xf32>
    %cst_34 = arith.constant dense<0.000000e+00> : vector<14x128xf32>
    %52 = tpu.matmul %50, %36, %cst_34 {dimension_numbers = #tpu.dot_dimension_numbers<[1], [0], [0], [1], [0, 0, 1, 1], [], []>} : vector<14x28xf32>, vector<28x128xf32>, vector<14x128xf32> -> vector<14x128xf32>
    %53 = arith.maximumf %51, %52 : vector<14x128xf32>
    %c0_35 = arith.constant 0 : index
    %c0_36 = arith.constant 0 : index
    %54 = vector.load %arg13[%c0_35, %c0_36] : memref<14x128xf32, #tpu.memory_space<vmem>>, vector<14x128xf32>
    tpu.vector_store %arg13[%c0_35, %c0_36], %53 {strides = array<i32>} : memref<14x128xf32, #tpu.memory_space<vmem>>, vector<14x128xf32>,
    %c0_37 = arith.constant 0 : index
    %c0_38 = arith.constant 0 : index
    %55 = vector.load %arg13[%c0_37, %c0_38] : memref<14x128xf32, #tpu.memory_space<vmem>>, vector<10x128xf32>
    %c0_39 = arith.constant 0 : index
    %c0_40 = arith.constant 0 : index
    %c0_41 = arith.constant 0 : index
    %56 = vector.load %arg4[%c0_39, %c0_40, %c0_41] : memref<5x128x256xf32, #tpu.memory_space<vmem>>, vector<1x128x256xf32>
    %57 = vector.shape_cast %56 : vector<1x128x256xf32> to vector<128x256xf32>
    %cst_42 = arith.constant dense<0.000000e+00> : vector<10x256xf32>
    %58 = tpu.matmul %55, %57, %cst_42 {dimension_numbers = #tpu.dot_dimension_numbers<[1], [0], [0], [1], [0, 0, 1, 1], [], []>} : vector<10x128xf32>, vector<128x256xf32>, vector<10x256xf32> -> vector<10x256xf32>
    %c1_43 = arith.constant 1 : index
    %c0_44 = arith.constant 0 : index
    %59 = vector.load %arg13[%c1_43, %c0_44] : memref<14x128xf32, #tpu.memory_space<vmem>>, vector<10x128xf32>
    %c1_45 = arith.constant 1 : index
    %c0_46 = arith.constant 0 : index
    %c0_47 = arith.constant 0 : index
    %60 = vector.load %arg4[%c1_45, %c0_46, %c0_47] : memref<5x128x256xf32, #tpu.memory_space<vmem>>, vector<1x128x256xf32>
    %61 = vector.shape_cast %60 : vector<1x128x256xf32> to vector<128x256xf32>
    %cst_48 = arith.constant dense<0.000000e+00> : vector<10x256xf32>
    %62 = tpu.matmul %59, %61, %cst_48 {dimension_numbers = #tpu.dot_dimension_numbers<[1], [0], [0], [1], [0, 0, 1, 1], [], []>} : vector<10x128xf32>, vector<128x256xf32>, vector<10x256xf32> -> vector<10x256xf32>
    %63 = arith.addf %58, %62 : vector<10x256xf32>
    %c2_49 = arith.constant 2 : index
    %c0_50 = arith.constant 0 : index
    %64 = vector.load %arg13[%c2_49, %c0_50] : memref<14x128xf32, #tpu.memory_space<vmem>>, vector<10x128xf32>
    %c2_51 = arith.constant 2 : index
    %c0_52 = arith.constant 0 : index
    %c0_53 = arith.constant 0 : index
    %65 = vector.load %arg4[%c2_51, %c0_52, %c0_53] : memref<5x128x256xf32, #tpu.memory_space<vmem>>, vector<1x128x256xf32>
    %66 = vector.shape_cast %65 : vector<1x128x256xf32> to vector<128x256xf32>
    %cst_54 = arith.constant dense<0.000000e+00> : vector<10x256xf32>
    %67 = tpu.matmul %64, %66, %cst_54 {dimension_numbers = #tpu.dot_dimension_numbers<[1], [0], [0], [1], [0, 0, 1, 1], [], []>} : vector<10x128xf32>, vector<128x256xf32>, vector<10x256xf32> -> vector<10x256xf32>
    %68 = arith.addf %63, %67 : vector<10x256xf32>
    %c3_55 = arith.constant 3 : index
    %c0_56 = arith.constant 0 : index
    %69 = vector.load %arg13[%c3_55, %c0_56] : memref<14x128xf32, #tpu.memory_space<vmem>>, vector<10x128xf32>
    %c3_57 = arith.constant 3 : index
    %c0_58 = arith.constant 0 : index
    %c0_59 = arith.constant 0 : index
    %70 = vector.load %arg4[%c3_57, %c0_58, %c0_59] : memref<5x128x256xf32, #tpu.memory_space<vmem>>, vector<1x128x256xf32>
    %71 = vector.shape_cast %70 : vector<1x128x256xf32> to vector<128x256xf32>
    %cst_60 = arith.constant dense<0.000000e+00> : vector<10x256xf32>
    %72 = tpu.matmul %69, %71, %cst_60 {dimension_numbers = #tpu.dot_dimension_numbers<[1], [0], [0], [1], [0, 0, 1, 1], [], []>} : vector<10x128xf32>, vector<128x256xf32>, vector<10x256xf32> -> vector<10x256xf32>
    %73 = arith.addf %68, %72 : vector<10x256xf32>
    %c4_61 = arith.constant 4 : index
    %c0_62 = arith.constant 0 : index
    %74 = vector.load %arg13[%c4_61, %c0_62] : memref<14x128xf32, #tpu.memory_space<vmem>>, vector<10x128xf32>
    %c4_63 = arith.constant 4 : index
    %c0_64 = arith.constant 0 : index
    %c0_65 = arith.constant 0 : index
    %75 = vector.load %arg4[%c4_63, %c0_64, %c0_65] : memref<5x128x256xf32, #tpu.memory_space<vmem>>, vector<1x128x256xf32>
    %76 = vector.shape_cast %75 : vector<1x128x256xf32> to vector<128x256xf32>
    %cst_66 = arith.constant dense<0.000000e+00> : vector<10x256xf32>
    %77 = tpu.matmul %74, %76, %cst_66 {dimension_numbers = #tpu.dot_dimension_numbers<[1], [0], [0], [1], [0, 0, 1, 1], [], []>} : vector<10x128xf32>, vector<128x256xf32>, vector<10x256xf32> -> vector<10x256xf32>
    %78 = arith.addf %73, %77 : vector<10x256xf32>
    %c0_67 = arith.constant 0 : index
    %c0_68 = arith.constant 0 : index
    %79 = vector.load %arg5[%c0_67, %c0_68] : memref<1x256xf32, #tpu.memory_space<vmem>>, vector<1x256xf32>
    %80 = vector.broadcast %79 : vector<1x256xf32> to vector<10x256xf32>
    %81 = arith.addf %78, %80 : vector<10x256xf32>
    %cst_69 = arith.constant 0.000000e+00 : f32
    %82 = vector.broadcast %cst_69 : f32 to vector<10x256xf32>
    %83 = arith.maximumf %81, %82 : vector<10x256xf32>
    %84 = vector.extract_strided_slice %83 {offsets = [0, 0], sizes = [10, 128], strides = [1, 1]} : vector<10x256xf32> to vector<10x128xf32>
    %85 = vector.extract_strided_slice %83 {offsets = [0, 128], sizes = [10, 128], strides = [1, 1]} : vector<10x256xf32> to vector<10x128xf32>
    %86 = arith.maximumf %84, %85 : vector<10x128xf32>
    %87 = tpu.iota {dimensions = array<i32: 0>} : vector<5x10xi32>
    %88 = tpu.iota {dimensions = array<i32: 1>} : vector<5x10xi32>
    %c2_i32_70 = arith.constant 2 : i32
    %89 = vector.broadcast %c2_i32_70 : i32 to vector<5x10xi32>
    %90 = arith.muli %89, %87 : vector<5x10xi32>
    %91 = arith.cmpi eq, %88, %90 : vector<5x10xi32>
    %92 = arith.extui %91 : vector<5x10xi1> to vector<5x10xi32>
    %93 = arith.sitofp %92 : vector<5x10xi32> to vector<5x10xf32>
    %c2_i32_71 = arith.constant 2 : i32
    %94 = vector.broadcast %c2_i32_71 : i32 to vector<5x10xi32>
    %95 = arith.muli %94, %87 : vector<5x10xi32>
    %c1_i32_72 = arith.constant 1 : i32
    %96 = vector.broadcast %c1_i32_72 : i32 to vector<5x10xi32>
    %97 = arith.addi %95, %96 : vector<5x10xi32>
    %98 = arith.cmpi eq, %88, %97 : vector<5x10xi32>
    %99 = arith.extui %98 : vector<5x10xi1> to vector<5x10xi32>
    %100 = arith.sitofp %99 : vector<5x10xi32> to vector<5x10xf32>
    %cst_73 = arith.constant dense<0.000000e+00> : vector<5x128xf32>
    %101 = tpu.matmul %93, %86, %cst_73 {dimension_numbers = #tpu.dot_dimension_numbers<[1], [0], [0], [1], [0, 0, 1, 1], [], []>} : vector<5x10xf32>, vector<10x128xf32>, vector<5x128xf32> -> vector<5x128xf32>
    %cst_74 = arith.constant dense<0.000000e+00> : vector<5x128xf32>
    %102 = tpu.matmul %100, %86, %cst_74 {dimension_numbers = #tpu.dot_dimension_numbers<[1], [0], [0], [1], [0, 0, 1, 1], [], []>} : vector<5x10xf32>, vector<10x128xf32>, vector<5x128xf32> -> vector<5x128xf32>
    %103 = arith.maximumf %101, %102 : vector<5x128xf32>
    %c0_75 = arith.constant 0 : index
    %c0_76 = arith.constant 0 : index
    %104 = vector.load %arg14[%c0_75, %c0_76] : memref<5x128xf32, #tpu.memory_space<vmem>>, vector<5x128xf32>
    tpu.vector_store %arg14[%c0_75, %c0_76], %103 {strides = array<i32>} : memref<5x128xf32, #tpu.memory_space<vmem>>, vector<5x128xf32>,
    %c0_77 = arith.constant 0 : index
    %c0_78 = arith.constant 0 : index
    %105 = vector.load %arg14[%c0_77, %c0_78] : memref<5x128xf32, #tpu.memory_space<vmem>>, vector<1x128xf32>
    %c0_79 = arith.constant 0 : index
    %c0_80 = arith.constant 0 : index
    %c0_81 = arith.constant 0 : index
    %106 = vector.load %arg6[%c0_79, %c0_80, %c0_81] : memref<5x128x128xf32, #tpu.memory_space<vmem>>, vector<1x128x128xf32>
    %107 = vector.shape_cast %106 : vector<1x128x128xf32> to vector<128x128xf32>
    %cst_82 = arith.constant dense<0.000000e+00> : vector<1x128xf32>
    %108 = tpu.matmul %105, %107, %cst_82 {dimension_numbers = #tpu.dot_dimension_numbers<[1], [0], [0], [1], [0, 0, 1, 1], [], []>} : vector<1x128xf32>, vector<128x128xf32>, vector<1x128xf32> -> vector<1x128xf32>
    %c1_83 = arith.constant 1 : index
    %c0_84 = arith.constant 0 : index
    %109 = vector.load %arg14[%c1_83, %c0_84] : memref<5x128xf32, #tpu.memory_space<vmem>>, vector<1x128xf32>
    %c1_85 = arith.constant 1 : index
    %c0_86 = arith.constant 0 : index
    %c0_87 = arith.constant 0 : index
    %110 = vector.load %arg6[%c1_85, %c0_86, %c0_87] : memref<5x128x128xf32, #tpu.memory_space<vmem>>, vector<1x128x128xf32>
    %111 = vector.shape_cast %110 : vector<1x128x128xf32> to vector<128x128xf32>
    %cst_88 = arith.constant dense<0.000000e+00> : vector<1x128xf32>
    %112 = tpu.matmul %109, %111, %cst_88 {dimension_numbers = #tpu.dot_dimension_numbers<[1], [0], [0], [1], [0, 0, 1, 1], [], []>} : vector<1x128xf32>, vector<128x128xf32>, vector<1x128xf32> -> vector<1x128xf32>
    %113 = arith.addf %108, %112 : vector<1x128xf32>
    %c2_89 = arith.constant 2 : index
    %c0_90 = arith.constant 0 : index
    %114 = vector.load %arg14[%c2_89, %c0_90] : memref<5x128xf32, #tpu.memory_space<vmem>>, vector<1x128xf32>
    %c2_91 = arith.constant 2 : index
    %c0_92 = arith.constant 0 : index
    %c0_93 = arith.constant 0 : index
    %115 = vector.load %arg6[%c2_91, %c0_92, %c0_93] : memref<5x128x128xf32, #tpu.memory_space<vmem>>, vector<1x128x128xf32>
    %116 = vector.shape_cast %115 : vector<1x128x128xf32> to vector<128x128xf32>
    %cst_94 = arith.constant dense<0.000000e+00> : vector<1x128xf32>
    %117 = tpu.matmul %114, %116, %cst_94 {dimension_numbers = #tpu.dot_dimension_numbers<[1], [0], [0], [1], [0, 0, 1, 1], [], []>} : vector<1x128xf32>, vector<128x128xf32>, vector<1x128xf32> -> vector<1x128xf32>
    %118 = arith.addf %113, %117 : vector<1x128xf32>
    %c3_95 = arith.constant 3 : index
    %c0_96 = arith.constant 0 : index
    %119 = vector.load %arg14[%c3_95, %c0_96] : memref<5x128xf32, #tpu.memory_space<vmem>>, vector<1x128xf32>
    %c3_97 = arith.constant 3 : index
    %c0_98 = arith.constant 0 : index
    %c0_99 = arith.constant 0 : index
    %120 = vector.load %arg6[%c3_97, %c0_98, %c0_99] : memref<5x128x128xf32, #tpu.memory_space<vmem>>, vector<1x128x128xf32>
    %121 = vector.shape_cast %120 : vector<1x128x128xf32> to vector<128x128xf32>
    %cst_100 = arith.constant dense<0.000000e+00> : vector<1x128xf32>
    %122 = tpu.matmul %119, %121, %cst_100 {dimension_numbers = #tpu.dot_dimension_numbers<[1], [0], [0], [1], [0, 0, 1, 1], [], []>} : vector<1x128xf32>, vector<128x128xf32>, vector<1x128xf32> -> vector<1x128xf32>
    %123 = arith.addf %118, %122 : vector<1x128xf32>
    %c4_101 = arith.constant 4 : index
    %c0_102 = arith.constant 0 : index
    %124 = vector.load %arg14[%c4_101, %c0_102] : memref<5x128xf32, #tpu.memory_space<vmem>>, vector<1x128xf32>
    %c4_103 = arith.constant 4 : index
    %c0_104 = arith.constant 0 : index
    %c0_105 = arith.constant 0 : index
    %125 = vector.load %arg6[%c4_103, %c0_104, %c0_105] : memref<5x128x128xf32, #tpu.memory_space<vmem>>, vector<1x128x128xf32>
    %126 = vector.shape_cast %125 : vector<1x128x128xf32> to vector<128x128xf32>
    %cst_106 = arith.constant dense<0.000000e+00> : vector<1x128xf32>
    %127 = tpu.matmul %124, %126, %cst_106 {dimension_numbers = #tpu.dot_dimension_numbers<[1], [0], [0], [1], [0, 0, 1, 1], [], []>} : vector<1x128xf32>, vector<128x128xf32>, vector<1x128xf32> -> vector<1x128xf32>
    %128 = arith.addf %123, %127 : vector<1x128xf32>
    %c0_107 = arith.constant 0 : index
    %c0_108 = arith.constant 0 : index
    %129 = vector.load %arg7[%c0_107, %c0_108] : memref<1x128xf32, #tpu.memory_space<vmem>>, vector<1x128xf32>
    %130 = arith.addf %128, %129 : vector<1x128xf32>
    %cst_109 = arith.constant 0.000000e+00 : f32
    %131 = vector.broadcast %cst_109 : f32 to vector<1x128xf32>
    %132 = arith.maximumf %130, %131 : vector<1x128xf32>
    %c0_110 = arith.constant 0 : index
    %c0_111 = arith.constant 0 : index
    %133 = vector.load %arg8[%c0_110, %c0_111] : memref<128x128xf32, #tpu.memory_space<vmem>>, vector<128x128xf32>
    %cst_112 = arith.constant dense<0.000000e+00> : vector<1x128xf32>
    %134 = tpu.matmul %132, %133, %cst_112 {dimension_numbers = #tpu.dot_dimension_numbers<[1], [0], [0], [1], [0, 0, 1, 1], [], []>} : vector<1x128xf32>, vector<128x128xf32>, vector<1x128xf32> -> vector<1x128xf32>
    %c0_113 = arith.constant 0 : index
    %c0_114 = arith.constant 0 : index
    %135 = vector.load %arg9[%c0_113, %c0_114] : memref<1x128xf32, #tpu.memory_space<vmem>>, vector<1x128xf32>
    %136 = arith.addf %134, %135 : vector<1x128xf32>
    %cst_115 = arith.constant 0.000000e+00 : f32
    %137 = vector.broadcast %cst_115 : f32 to vector<1x128xf32>
    %138 = arith.maximumf %136, %137 : vector<1x128xf32>
    %c0_116 = arith.constant 0 : index
    %c0_117 = arith.constant 0 : index
    %139 = vector.load %arg10[%c0_116, %c0_117] : memref<128x128xf32, #tpu.memory_space<vmem>>, vector<128x128xf32>
    %cst_118 = arith.constant dense<0.000000e+00> : vector<1x128xf32>
    %140 = tpu.matmul %138, %139, %cst_118 {dimension_numbers = #tpu.dot_dimension_numbers<[1], [0], [0], [1], [0, 0, 1, 1], [], []>} : vector<1x128xf32>, vector<128x128xf32>, vector<1x128xf32> -> vector<1x128xf32>
    %c0_119 = arith.constant 0 : index
    %c0_120 = arith.constant 0 : index
    %141 = vector.load %arg11[%c0_119, %c0_120] : memref<1x128xf32, #tpu.memory_space<vmem>>, vector<1x128xf32>
    %142 = arith.addf %140, %141 : vector<1x128xf32>
    %c0_121 = arith.constant 0 : index
    %c0_122 = arith.constant 0 : index
    %c0_123 = arith.constant 0 : index
    %143 = vector.load %arg12[%c0_121, %c0_122, %c0_123] : memref<1x1x128xf32, #tpu.memory_space<vmem>>, vector<1x1x128xf32>
    %144 = vector.shape_cast %143 : vector<1x1x128xf32> to vector<1x128xf32>
    %145 = vector.shape_cast %142 : vector<1x128xf32> to vector<1x1x128xf32>
    tpu.vector_store %arg12[%c0_121, %c0_122, %c0_123], %145 {strides = array<i32>} : memref<1x1x128xf32, #tpu.memory_space<vmem>>, vector<1x1x128xf32>,
    return
  }
  func.func @transform_0(%arg0: i32) -> (i32, i32, i32) {
    %c0_i32 = arith.constant 0 : i32
    %c0_i32_0 = arith.constant 0 : i32
    %c0_i32_1 = arith.constant 0 : i32
    return %arg0, %c0_i32, %c0_i32_0 : i32, i32, i32
  }
  func.func @transform_1(%arg0: i32) -> (i32, i32, i32) {
    %c0_i32 = arith.constant 0 : i32
    %c0_i32_0 = arith.constant 0 : i32
    %c0_i32_1 = arith.constant 0 : i32
    %c0_i32_2 = arith.constant 0 : i32
    return %c0_i32, %c0_i32_0, %c0_i32_1 : i32, i32, i32
  }
  func.func @transform_2(%arg0: i32) -> (i32, i32) {
    %c0_i32 = arith.constant 0 : i32
    %c0_i32_0 = arith.constant 0 : i32
    %c0_i32_1 = arith.constant 0 : i32
    return %c0_i32, %c0_i32_0 : i32, i32
  }
  func.func @transform_3(%arg0: i32) -> (i32, i32, i32) {
    %c0_i32 = arith.constant 0 : i32
    %c0_i32_0 = arith.constant 0 : i32
    %c0_i32_1 = arith.constant 0 : i32
    %c0_i32_2 = arith.constant 0 : i32
    return %c0_i32, %c0_i32_0, %c0_i32_1 : i32, i32, i32
  }
  func.func @transform_4(%arg0: i32) -> (i32, i32) {
    %c0_i32 = arith.constant 0 : i32
    %c0_i32_0 = arith.constant 0 : i32
    %c0_i32_1 = arith.constant 0 : i32
    return %c0_i32, %c0_i32_0 : i32, i32
  }
  func.func @transform_5(%arg0: i32) -> (i32, i32, i32) {
    %c0_i32 = arith.constant 0 : i32
    %c0_i32_0 = arith.constant 0 : i32
    %c0_i32_1 = arith.constant 0 : i32
    %c0_i32_2 = arith.constant 0 : i32
    return %c0_i32, %c0_i32_0, %c0_i32_1 : i32, i32, i32
  }
  func.func @transform_6(%arg0: i32) -> (i32, i32) {
    %c0_i32 = arith.constant 0 : i32
    %c0_i32_0 = arith.constant 0 : i32
    %c0_i32_1 = arith.constant 0 : i32
    return %c0_i32, %c0_i32_0 : i32, i32
  }
  func.func @transform_7(%arg0: i32) -> (i32, i32) {
    %c0_i32 = arith.constant 0 : i32
    %c0_i32_0 = arith.constant 0 : i32
    %c0_i32_1 = arith.constant 0 : i32
    return %c0_i32, %c0_i32_0 : i32, i32
  }
  func.func @transform_8(%arg0: i32) -> (i32, i32) {
    %c0_i32 = arith.constant 0 : i32
    %c0_i32_0 = arith.constant 0 : i32
    %c0_i32_1 = arith.constant 0 : i32
    return %c0_i32, %c0_i32_0 : i32, i32
  }
  func.func @transform_9(%arg0: i32) -> (i32, i32) {
    %c0_i32 = arith.constant 0 : i32
    %c0_i32_0 = arith.constant 0 : i32
    %c0_i32_1 = arith.constant 0 : i32
    return %c0_i32, %c0_i32_0 : i32, i32
  }
  func.func @transform_10(%arg0: i32) -> (i32, i32) {
    %c0_i32 = arith.constant 0 : i32
    %c0_i32_0 = arith.constant 0 : i32
    %c0_i32_1 = arith.constant 0 : i32
    return %c0_i32, %c0_i32_0 : i32, i32
  }
  func.func @transform_11(%arg0: i32) -> (i32, i32, i32) {
    %c0_i32 = arith.constant 0 : i32
    %c0_i32_0 = arith.constant 0 : i32
    %c0_i32_1 = arith.constant 0 : i32
    return %arg0, %c0_i32, %c0_i32_0 : i32, i32, i32
  }
}

</mosaic_0001>

<llo_original>
// kernel: lenet5_forward.1
$region0: #{lenet5_forward.1}
  #allocation0 [shape = 'u32[]', space=smem, size = 0x4, offset = 0x4, fixed_abs, tag = 'smem constant byte address 0x4 - core index']
  #allocation1 [shape = 'u32[144,128]{1,0:T(1,128)}', space=vmem, size = 0x12000, scoped, tag = 'internal scratch']
  #allocation2 [shape = 'f32[14,128]{1,0:T(8,128)}', space=vmem, size = 0x2000, scoped, tag = 'scratch operand']
  #allocation3 [shape = 'f32[5,128]{1,0:T(8,128)}', space=vmem, size = 0x1000, scoped, tag = 'scratch operand']
  %s0 = inlined_call_operand.hbm [shape: f32[2,32,32], index: 0, kind: input, shape index: {}]
  %s1 = inlined_call_operand.hbm [shape: f32[5,32,256], index: 1, kind: input, shape index: {}]
  %s2 = inlined_call_operand.vmem [shape: f32[1,256], index: 2, kind: input, shape index: {}]
  %s3 = inlined_call_operand.hbm [shape: f32[5,128,256], index: 3, kind: input, shape index: {}]
  %s4 = inlined_call_operand.vmem [shape: f32[1,256], index: 4, kind: input, shape index: {}]
  %s5 = inlined_call_operand.hbm [shape: f32[5,128,128], index: 5, kind: input, shape index: {}]
  %s6 = inlined_call_operand.vmem [shape: f32[1,128], index: 6, kind: input, shape index: {}]
  %s7 = inlined_call_operand.hbm [shape: f32[128,128], index: 7, kind: input, shape index: {}]
  %s8 = inlined_call_operand.vmem [shape: f32[1,128], index: 8, kind: input, shape index: {}]
  %s9 = inlined_call_operand.hbm [shape: f32[128,128], index: 9, kind: input, shape index: {}]
  %s10 = inlined_call_operand.vmem [shape: f32[1,128], index: 10, kind: input, shape index: {}]
  %s11 = inlined_call_operand.hbm [shape: f32[2,1,128], index: 11, kind: output, shape index: {}]
  %s12 = sld [smem:[#allocation0]]
  $region101: #{lenet5_forward.1} parent=0
    _
  %s14 = ssub.s32 1, %s12
  %s15 = scalar_select 0, %s14, %s12
  $region1: #{lenet5_forward.1} parent=0
    #allocation4 [shape = 'u8[32768]{0}', space=vmem, size = 0x8000, scoped, tag = 'input window, operand 0']
    #allocation5 [shape = 's32[2]{0}', space=sflag, size = 0x8, scoped, tag = 'scoped memory for lenet5_forward.1']
    #allocation6 [shape = 's32[2]{0}', space=sflag, size = 0x8, scoped, tag = 'scoped memory for lenet5_forward.1']
    #allocation7 [shape = 'u8[163840]{0}', space=vmem, size = 0x28000, scoped, tag = 'input window, operand 1, single buffered']
    #allocation8 [shape = 's32[1]{0}', space=sflag, size = 0x4, scoped, tag = 'scoped memory for lenet5_forward.1']
    #allocation9 [shape = 'u8[655360]{0}', space=vmem, size = 0xa0000, scoped, tag = 'input window, operand 3, single buffered']
    #allocation10 [shape = 'u8[327680]{0}', space=vmem, size = 0x50000, scoped, tag = 'input window, operand 5, single buffered']
    #allocation11 [shape = 's32[1]{0}', space=sflag, size = 0x4, scoped, tag = 'scoped memory for lenet5_forward.1']
    #allocation12 [shape = 'u8[65536]{0}', space=vmem, size = 0x10000, scoped, tag = 'input window, operand 7, single buffered']
    #allocation13 [shape = 'u8[65536]{0}', space=vmem, size = 0x10000, scoped, tag = 'input window, operand 9, single buffered']
    #allocation14 [shape = 's32[1]{0}', space=sflag, size = 0x4, scoped, tag = 'scoped memory for lenet5_forward.1']
    #allocation15 [shape = 'u8[1024]{0}', space=vmem, size = 0x400, scoped, tag = 'output window, operand 0']
    %16 = vsyncpa [#allocation5], 0
    %s17 = scalar_lea.sflag [#allocation5], 1
    %18 = vsyncpa %s17, 0
    %19 = vsyncpa [#allocation8], 0
    %20 = vsyncpa [#allocation11], 0
    %21 = vsyncpa [#allocation14], 0
    %22 = vsyncpa [#allocation6], 0
    %s23 = scalar_lea.sflag [#allocation6], 1
    %24 = vsyncpa %s23, 0
    loop: start=0, step=1, limit=4
    $region2: #{lenet5_forward.1} parent=1 // loop_pre_header
      _
    $region3: #{lenet5_forward.1} parent=1 // loop_header
      %s26 = sphi 0, %s30
      %p27 = scmp.ge.s32.totalorder %s26, 4
      %s36 = sphi 0, %s38
      %s39 = sphi 0, %s36
      %s40 = sphi 0, %s39
      %s56 = sphi 0, %s40
      %s60 = sphi 0, %s60
      %s62 = sphi 0, %s60
      %s63 = sphi 0, %s62
      %s77 = sphi 0, %s63
      %s81 = sphi 0, %s81
      %s83 = sphi 0, %s81
      %s84 = sphi 0, %s83
      %s98 = sphi 0, %s84
      %s102 = sphi 0, %s102
      %s104 = sphi 0, %s102
      %s105 = sphi 0, %s104
      %s119 = sphi 0, %s105
      %s123 = sphi 0, %s123
      %s125 = sphi 0, %s123
      %s126 = sphi 0, %s125
      %s140 = sphi 0, %s126
      %s144 = sphi 0, %s144
      %s146 = sphi 0, %s144
      %s147 = sphi 0, %s146
      %s161 = sphi 0, %s147
      %s165 = sphi 0, %s165
      %s167 = sphi 0, %s165
      %s168 = sphi 0, %s167
      %s182 = sphi 0, %s168
      %s186 = sphi 0, %s186
      %s188 = sphi 0, %s186
      %s189 = sphi 0, %s188
      %s203 = sphi 0, %s189
      %s207 = sphi 0, %s207
      %s209 = sphi 0, %s207
      %s210 = sphi 0, %s209
      %s224 = sphi 0, %s210
      %s228 = sphi 0, %s228
      %s230 = sphi 0, %s228
      %s231 = sphi 0, %s230
      %s245 = sphi 0, %s231
      %s249 = sphi 0, %s249
      %s251 = sphi 0, %s249
      %s252 = sphi 0, %s251
      %s266 = sphi 0, %s252
      %s272 = sphi 0, %s274
      %s275 = sphi 0, %s272
      %s276 = sphi 0, %s275
      %s292 = sphi 0, %s276
    $region4: #{lenet5_forward.1} parent=1 // loop_header_branch
      %29 = sbr.rel (%p27) target = $region8
    $region5: #{lenet5_forward.1} parent=1 // loop_body
      %s31 = ssub.s32 %s26, 1
      %s32 = ssub.s32 %s26, 2
      %s33 = sadd.s32 %s26, 1
      %s34 = ssub.s32 %s26, %s33
      %p35 = scmp.eq.s32.totalorder %s34, 0
      %s37 = sadd.s32 %s36, 1
      %s38 = scalar_select %p35, %s36, %s37
      %p41 = pneg %p35
      %p42 = scmp.eq.s32.totalorder %s26, 1
      %p43 = por %p41, %p42
      %p44 = scmp.ne.s32.totalorder %s36, %s39
      %p45 = scmp.eq.s32.totalorder %s26, 0
      %p46 = por %p44, %p45
      %p47 = scmp.ne.s32.totalorder %s36, %s39
      %p48 = scmp.eq.s32.totalorder %s31, 1
      %p49 = por %p47, %p48
      %p50 = scmp.ne.s32.totalorder %s39, %s40
      %p51 = scmp.eq.s32.totalorder %s31, 0
      %p52 = por %p50, %p51
      %p53 = scmp.ne.s32.totalorder %s39, %s40
      %p54 = scmp.eq.s32.totalorder %s32, 1
      %p55 = por %p53, %p54
      %p57 = scmp.ne.s32.totalorder %s40, %s56
      %p58 = scmp.eq.s32.totalorder %s32, 0
      %p59 = por %p57, %p58
      %s61 = sadd.s32 %s60, 1
      %p64 = scmp.eq.s32.totalorder %s26, 1
      %p65 = scmp.ne.s32.totalorder %s60, %s62
      %p66 = scmp.eq.s32.totalorder %s26, 0
      %p67 = por %p65, %p66
      %p68 = scmp.ne.s32.totalorder %s60, %s62
      %p69 = scmp.eq.s32.totalorder %s31, 1
      %p70 = por %p68, %p69
      %p71 = scmp.ne.s32.totalorder %s62, %s63
      %p72 = scmp.eq.s32.totalorder %s31, 0
      %p73 = por %p71, %p72
      %p74 = scmp.ne.s32.totalorder %s62, %s63
      %p75 = scmp.eq.s32.totalorder %s32, 1
      %p76 = por %p74, %p75
      %p78 = scmp.ne.s32.totalorder %s63, %s77
      %p79 = scmp.eq.s32.totalorder %s32, 0
      %p80 = por %p78, %p79
      %s82 = sadd.s32 %s81, 1
      %p85 = scmp.eq.s32.totalorder %s26, 1
      %p86 = scmp.ne.s32.totalorder %s81, %s83
      %p87 = scmp.eq.s32.totalorder %s26, 0
      %p88 = por %p86, %p87
      %p89 = scmp.ne.s32.totalorder %s81, %s83
      %p90 = scmp.eq.s32.totalorder %s31, 1
      %p91 = por %p89, %p90
      %p92 = scmp.ne.s32.totalorder %s83, %s84
      %p93 = scmp.eq.s32.totalorder %s31, 0
      %p94 = por %p92, %p93
      %p95 = scmp.ne.s32.totalorder %s83, %s84
      %p96 = scmp.eq.s32.totalorder %s32, 1
      %p97 = por %p95, %p96
      %p99 = scmp.ne.s32.totalorder %s84, %s98
      %p100 = scmp.eq.s32.totalorder %s32, 0
      %p101 = por %p99, %p100
      %s103 = sadd.s32 %s102, 1
      %p106 = scmp.eq.s32.totalorder %s26, 1
      %p107 = scmp.ne.s32.totalorder %s102, %s104
      %p108 = scmp.eq.s32.totalorder %s26, 0
      %p109 = por %p107, %p108
      %p110 = scmp.ne.s32.totalorder %s102, %s104
      %p111 = scmp.eq.s32.totalorder %s31, 1
      %p112 = por %p110, %p111
      %p113 = scmp.ne.s32.totalorder %s104, %s105
      %p114 = scmp.eq.s32.totalorder %s31, 0
      %p115 = por %p113, %p114
      %p116 = scmp.ne.s32.totalorder %s104, %s105
      %p117 = scmp.eq.s32.totalorder %s32, 1
      %p118 = por %p116, %p117
      %p120 = scmp.ne.s32.totalorder %s105, %s119
      %p121 = scmp.eq.s32.totalorder %s32, 0
      %p122 = por %p120, %p121
      %s124 = sadd.s32 %s123, 1
      %p127 = scmp.eq.s32.totalorder %s26, 1
      %p128 = scmp.ne.s32.totalorder %s123, %s125
      %p129 = scmp.eq.s32.totalorder %s26, 0
      %p130 = por %p128, %p129
      %p131 = scmp.ne.s32.totalorder %s123, %s125
      %p132 = scmp.eq.s32.totalorder %s31, 1
      %p133 = por %p131, %p132
      %p134 = scmp.ne.s32.totalorder %s125, %s126
      %p135 = scmp.eq.s32.totalorder %s31, 0
      %p136 = por %p134, %p135
      %p137 = scmp.ne.s32.totalorder %s125, %s126
      %p138 = scmp.eq.s32.totalorder %s32, 1
      %p139 = por %p137, %p138
      %p141 = scmp.ne.s32.totalorder %s126, %s140
      %p142 = scmp.eq.s32.totalorder %s32, 0
      %p143 = por %p141, %p142
      %s145 = sadd.s32 %s144, 1
      %p148 = scmp.eq.s32.totalorder %s26, 1
      %p149 = scmp.ne.s32.totalorder %s144, %s146
      %p150 = scmp.eq.s32.totalorder %s26, 0
      %p151 = por %p149, %p150
      %p152 = scmp.ne.s32.totalorder %s144, %s146
      %p153 = scmp.eq.s32.totalorder %s31, 1
      %p154 = por %p152, %p153
      %p155 = scmp.ne.s32.totalorder %s146, %s147
      %p156 = scmp.eq.s32.totalorder %s31, 0
      %p157 = por %p155, %p156
      %p158 = scmp.ne.s32.totalorder %s146, %s147
      %p159 = scmp.eq.s32.totalorder %s32, 1
      %p160 = por %p158, %p159
      %p162 = scmp.ne.s32.totalorder %s147, %s161
      %p163 = scmp.eq.s32.totalorder %s32, 0
      %p164 = por %p162, %p163
      %s166 = sadd.s32 %s165, 1
      %p169 = scmp.eq.s32.totalorder %s26, 1
      %p170 = scmp.ne.s32.totalorder %s165, %s167
      %p171 = scmp.eq.s32.totalorder %s26, 0
      %p172 = por %p170, %p171
      %p173 = scmp.ne.s32.totalorder %s165, %s167
      %p174 = scmp.eq.s32.totalorder %s31, 1
      %p175 = por %p173, %p174
      %p176 = scmp.ne.s32.totalorder %s167, %s168
      %p177 = scmp.eq.s32.totalorder %s31, 0
      %p178 = por %p176, %p177
      %p179 = scmp.ne.s32.totalorder %s167, %s168
      %p180 = scmp.eq.s32.totalorder %s32, 1
      %p181 = por %p179, %p180
      %p183 = scmp.ne.s32.totalorder %s168, %s182
      %p184 = scmp.eq.s32.totalorder %s32, 0
      %p185 = por %p183, %p184
      %s187 = sadd.s32 %s186, 1
      %p190 = scmp.eq.s32.totalorder %s26, 1
      %p191 = scmp.ne.s32.totalorder %s186, %s188
      %p192 = scmp.eq.s32.totalorder %s26, 0
      %p193 = por %p191, %p192
      %p194 = scmp.ne.s32.totalorder %s186, %s188
      %p195 = scmp.eq.s32.totalorder %s31, 1
      %p196 = por %p194, %p195
      %p197 = scmp.ne.s32.totalorder %s188, %s189
      %p198 = scmp.eq.s32.totalorder %s31, 0
      %p199 = por %p197, %p198
      %p200 = scmp.ne.s32.totalorder %s188, %s189
      %p201 = scmp.eq.s32.totalorder %s32, 1
      %p202 = por %p200, %p201
      %p204 = scmp.ne.s32.totalorder %s189, %s203
      %p205 = scmp.eq.s32.totalorder %s32, 0
      %p206 = por %p204, %p205
      %s208 = sadd.s32 %s207, 1
      %p211 = scmp.eq.s32.totalorder %s26, 1
      %p212 = scmp.ne.s32.totalorder %s207, %s209
      %p213 = scmp.eq.s32.totalorder %s26, 0
      %p214 = por %p212, %p213
      %p215 = scmp.ne.s32.totalorder %s207, %s209
      %p216 = scmp.eq.s32.totalorder %s31, 1
      %p217 = por %p215, %p216
      %p218 = scmp.ne.s32.totalorder %s209, %s210
      %p219 = scmp.eq.s32.totalorder %s31, 0
      %p220 = por %p218, %p219
      %p221 = scmp.ne.s32.totalorder %s209, %s210
      %p222 = scmp.eq.s32.totalorder %s32, 1
      %p223 = por %p221, %p222
      %p225 = scmp.ne.s32.totalorder %s210, %s224
      %p226 = scmp.eq.s32.totalorder %s32, 0
      %p227 = por %p225, %p226
      %s229 = sadd.s32 %s228, 1
      %p232 = scmp.eq.s32.totalorder %s26, 1
      %p233 = scmp.ne.s32.totalorder %s228, %s230
      %p234 = scmp.eq.s32.totalorder %s26, 0
      %p235 = por %p233, %p234
      %p236 = scmp.ne.s32.totalorder %s228, %s230
      %p237 = scmp.eq.s32.totalorder %s31, 1
      %p238 = por %p236, %p237
      %p239 = scmp.ne.s32.totalorder %s230, %s231
      %p240 = scmp.eq.s32.totalorder %s31, 0
      %p241 = por %p239, %p240
      %p242 = scmp.ne.s32.totalorder %s230, %s231
      %p243 = scmp.eq.s32.totalorder %s32, 1
      %p244 = por %p242, %p243
      %p246 = scmp.ne.s32.totalorder %s231, %s245
      %p247 = scmp.eq.s32.totalorder %s32, 0
      %p248 = por %p246, %p247
      %s250 = sadd.s32 %s249, 1
      %p253 = scmp.eq.s32.totalorder %s26, 1
      %p254 = scmp.ne.s32.totalorder %s249, %s251
      %p255 = scmp.eq.s32.totalorder %s26, 0
      %p256 = por %p254, %p255
      %p257 = scmp.ne.s32.totalorder %s249, %s251
      %p258 = scmp.eq.s32.totalorder %s31, 1
      %p259 = por %p257, %p258
      %p260 = scmp.ne.s32.totalorder %s251, %s252
      %p261 = scmp.eq.s32.totalorder %s31, 0
      %p262 = por %p260, %p261
      %p263 = scmp.ne.s32.totalorder %s251, %s252
      %p264 = scmp.eq.s32.totalorder %s32, 1
      %p265 = por %p263, %p264
      %p267 = scmp.ne.s32.totalorder %s252, %s266
      %p268 = scmp.eq.s32.totalorder %s32, 0
      %p269 = por %p267, %p268
      %s270 = ssub.s32 %s26, %s33
      %p271 = scmp.eq.s32.totalorder %s270, 0
      %s273 = sadd.s32 %s272, 1
      %s274 = scalar_select %p271, %s272, %s273
      %p277 = pneg %p271
      %p278 = scmp.eq.s32.totalorder %s26, 1
      %p279 = por %p277, %p278
      %p280 = scmp.ne.s32.totalorder %s272, %s275
      %p281 = scmp.eq.s32.totalorder %s26, 0
      %p282 = por %p280, %p281
      %p283 = scmp.ne.s32.totalorder %s272, %s275
      %p284 = scmp.eq.s32.totalorder %s31, 1
      %p285 = por %p283, %p284
      %p286 = scmp.ne.s32.totalorder %s275, %s276
      %p287 = scmp.eq.s32.totalorder %s31, 0
      %p288 = por %p286, %p287
      %p289 = scmp.ne.s32.totalorder %s275, %s276
      %p290 = scmp.eq.s32.totalorder %s32, 1
      %p291 = por %p289, %p290
      %p293 = scmp.ne.s32.totalorder %s276, %s292
      %p294 = scmp.eq.s32.totalorder %s32, 0
      %p295 = por %p293, %p294
      %p296 = scmp.le.s32.totalorder 1, %s26
      %p297 = scmp.lt.s32.totalorder %s26, 3
      %p298 = pnand %p296, %p297
      %p299 = pneg %p298
      // Predicated region
      $region9: #{lenet5_forward.1} parent=5 // pred_check
        _
      $region10: #{lenet5_forward.1} parent=5 // pred_check_branch
        %301 = sbr.rel (%p298) target = $region12
      $region11: #{lenet5_forward.1} parent=5 // pred_region
        %s302 = ssub.s32 %s26, 1
        // Predicated region
        $region13: #{lenet5_forward.1} parent=11 // pred_check
          %p303 = pneg %p73
        $region14: #{lenet5_forward.1} parent=11 // pred_check_branch
          %305 = sbr.rel (%p303) target = $region16
        $region15: #{lenet5_forward.1} parent=11 // pred_region
          %s307 = ssub.s32 5120, 5120
          %308 = vsyncadd [#allocation8], %s307
          %s309 = sshll.u32 [#allocation7], 4
          %s310 = int_to_ptr.vmem [resolvable:$true] %s309
          %315 = dma.hbm_to_vmem [thread:$0]  %s1, 5120, %s310, [#allocation8], 256, 256, 16
        $region16: #{lenet5_forward.1} parent=11 // pred_fallthru
          _
        // Predicated region
        $region17: #{lenet5_forward.1} parent=11 // pred_check
          %p316 = pneg %p94
        $region18: #{lenet5_forward.1} parent=11 // pred_check_branch
          %318 = sbr.rel (%p316) target = $region20
        $region19: #{lenet5_forward.1} parent=11 // pred_region
          _
        $region20: #{lenet5_forward.1} parent=11 // pred_fallthru
          _
        // Predicated region
        $region21: #{lenet5_forward.1} parent=11 // pred_check
          %p319 = pneg %p115
        $region22: #{lenet5_forward.1} parent=11 // pred_check_branch
          %321 = sbr.rel (%p319) target = $region24
        $region23: #{lenet5_forward.1} parent=11 // pred_region
          %s323 = ssub.s32 20480, 20480
          %324 = vsyncadd [#allocation8], %s323
          %s325 = sshll.u32 [#allocation9], 4
          %s326 = int_to_ptr.vmem [resolvable:$true] %s325
          %331 = dma.hbm_to_vmem [thread:$0]  %s3, 20480, %s326, [#allocation8], 256, 256, 16
        $region24: #{lenet5_forward.1} parent=11 // pred_fallthru
          _
        // Predicated region
        $region25: #{lenet5_forward.1} parent=11 // pred_check
          %p332 = pneg %p136
        $region26: #{lenet5_forward.1} parent=11 // pred_check_branch
          %334 = sbr.rel (%p332) target = $region28
        $region27: #{lenet5_forward.1} parent=11 // pred_region
          _
        $region28: #{lenet5_forward.1} parent=11 // pred_fallthru
          _
        // Predicated region
        $region29: #{lenet5_forward.1} parent=11 // pred_check
          %p335 = pneg %p157
        $region30: #{lenet5_forward.1} parent=11 // pred_check_branch
          %337 = sbr.rel (%p335) target = $region32
        $region31: #{lenet5_forward.1} parent=11 // pred_region
          %s339 = ssub.s32 10240, 10240
          %340 = vsyncadd [#allocation11], %s339
          %s341 = sshll.u32 [#allocation10], 4
          %s342 = int_to_ptr.vmem [resolvable:$true] %s341
          %347 = dma.hbm_to_vmem [thread:$0]  %s5, 10240, %s342, [#allocation11], 128, 128, 8
        $region32: #{lenet5_forward.1} parent=11 // pred_fallthru
          _
        // Predicated region
        $region33: #{lenet5_forward.1} parent=11 // pred_check
          %p348 = pneg %p178
        $region34: #{lenet5_forward.1} parent=11 // pred_check_branch
          %350 = sbr.rel (%p348) target = $region36
        $region35: #{lenet5_forward.1} parent=11 // pred_region
          _
        $region36: #{lenet5_forward.1} parent=11 // pred_fallthru
          _
        // Predicated region
        $region37: #{lenet5_forward.1} parent=11 // pred_check
          %p351 = pneg %p199
        $region38: #{lenet5_forward.1} parent=11 // pred_check_branch
          %353 = sbr.rel (%p351) target = $region40
        $region39: #{lenet5_forward.1} parent=11 // pred_region
          %s355 = ssub.s32 2048, 2048
          %356 = vsyncadd [#allocation11], %s355
          %s357 = sshll.u32 [#allocation12], 4
          %s358 = int_to_ptr.vmem [resolvable:$true] %s357
          %363 = dma.hbm_to_vmem [thread:$0]  %s7, 2048, %s358, [#allocation11], 128, 128, 8
        $region40: #{lenet5_forward.1} parent=11 // pred_fallthru
          _
        // Predicated region
        $region41: #{lenet5_forward.1} parent=11 // pred_check
          %p364 = pneg %p220
        $region42: #{lenet5_forward.1} parent=11 // pred_check_branch
          %366 = sbr.rel (%p364) target = $region44
        $region43: #{lenet5_forward.1} parent=11 // pred_region
          _
        $region44: #{lenet5_forward.1} parent=11 // pred_fallthru
          _
        // Predicated region
        $region45: #{lenet5_forward.1} parent=11 // pred_check
          %p367 = pneg %p241
        $region46: #{lenet5_forward.1} parent=11 // pred_check_branch
          %369 = sbr.rel (%p367) target = $region48
        $region47: #{lenet5_forward.1} parent=11 // pred_region
          %s371 = ssub.s32 2048, 2048
          %372 = vsyncadd [#allocation14], %s371
          %s373 = sshll.u32 [#allocation13], 4
          %s374 = int_to_ptr.vmem [resolvable:$true] %s373
          %379 = dma.hbm_to_vmem [thread:$0]  %s9, 2048, %s374, [#allocation14], 128, 128, 8
        $region48: #{lenet5_forward.1} parent=11 // pred_fallthru
          _
        // Predicated region
        $region49: #{lenet5_forward.1} parent=11 // pred_check
          %p380 = pneg %p262
        $region50: #{lenet5_forward.1} parent=11 // pred_check_branch
          %382 = sbr.rel (%p380) target = $region52
        $region51: #{lenet5_forward.1} parent=11 // pred_region
          _
        $region52: #{lenet5_forward.1} parent=11 // pred_fallthru
          _
      $region12: #{lenet5_forward.1} parent=5 // pred_fallthru
        _
      %p383 = scmp.lt.s32.totalorder %s26, 2
      // Predicated region
      $region53: #{lenet5_forward.1} parent=5 // pred_check
        %p384 = pneg %p383
      $region54: #{lenet5_forward.1} parent=5 // pred_check_branch
        %386 = sbr.rel (%p384) target = $region56
      $region55: #{lenet5_forward.1} parent=5 // pred_region
        // Predicated region
        $region57: #{lenet5_forward.1} parent=55 // pred_check
          %p387 = pneg %p46
        $region58: #{lenet5_forward.1} parent=55 // pred_check_branch
          %389 = sbr.rel (%p387) target = $region60
        $region59: #{lenet5_forward.1} parent=55 // pred_region
          %s390 = sand.u32 %s36, 1
          %s391 = scalar_lea.sflag [#allocation5], %s390
          %s392 = sand.u32 %s36, 1
          %s393 = smul.addr %s392, 32
          %s394 = scalar_lea.vmem [#allocation4], %s393
          %s396 = ssub.s32 512, 512
          %397 = vsyncadd %s391, %s396
          %s398 = smul.addr %s26, 4
          %s399 = smul.addr %s398, 128
          %s400 = scalar_lea.hbm %s0, %s399
          %s401 = sshll.u32 %s394, 4
          %s402 = int_to_ptr.vmem [resolvable:$true] %s401
          %407 = dma.hbm_to_vmem [thread:$0]  %s400, 512, %s402, %s391, 128, 128, 8
        $region60: #{lenet5_forward.1} parent=55 // pred_fallthru
          _
      $region56: #{lenet5_forward.1} parent=5 // pred_fallthru
        _
      %p408 = scmp.le.s32.totalorder 1, %s26
      %p409 = scmp.lt.s32.totalorder %s26, 3
      %p410 = pnand %p408, %p409
      %p411 = pneg %p410
      // Predicated region
      $region61: #{lenet5_forward.1} parent=5 // pred_check
        _
      $region62: #{lenet5_forward.1} parent=5 // pred_check_branch
        %413 = sbr.rel (%p410) target = $region64
      $region63: #{lenet5_forward.1} parent=5 // pred_region
        %s414 = ssub.s32 %s26, 1
        %s415 = sand.u32 %s39, 1
        %s416 = scalar_lea.sflag [#allocation5], %s415
        %s417 = sand.u32 %s39, 1
        %s418 = smul.addr %s417, 32
        %s419 = scalar_lea.vmem [#allocation4], %s418
        // Predicated region
        $region65: #{lenet5_forward.1} parent=63 // pred_check
          %p420 = pneg %p52
        $region66: #{lenet5_forward.1} parent=63 // pred_check_branch
          %422 = sbr.rel (%p420) target = $region68
        $region67: #{lenet5_forward.1} parent=63 // pred_region
          %423 = dma.done %s416, 512
        $region68: #{lenet5_forward.1} parent=63 // pred_fallthru
          _
        // Predicated region
        $region69: #{lenet5_forward.1} parent=63 // pred_check
          %p424 = pneg %p73
        $region70: #{lenet5_forward.1} parent=63 // pred_check_branch
          %426 = sbr.rel (%p424) target = $region72
        $region71: #{lenet5_forward.1} parent=63 // pred_region
          %427 = dma.done [#allocation8], 5120
        $region72: #{lenet5_forward.1} parent=63 // pred_fallthru
          _
        // Predicated region
        $region73: #{lenet5_forward.1} parent=63 // pred_check
          %p428 = pneg %p115
        $region74: #{lenet5_forward.1} parent=63 // pred_check_branch
          %430 = sbr.rel (%p428) target = $region76
        $region75: #{lenet5_forward.1} parent=63 // pred_region
          %431 = dma.done [#allocation8], 20480
        $region76: #{lenet5_forward.1} parent=63 // pred_fallthru
          _
        // Predicated region
        $region77: #{lenet5_forward.1} parent=63 // pred_check
          %p432 = pneg %p157
        $region78: #{lenet5_forward.1} parent=63 // pred_check_branch
          %434 = sbr.rel (%p432) target = $region80
        $region79: #{lenet5_forward.1} parent=63 // pred_region
          %435 = dma.done [#allocation11], 10240
        $region80: #{lenet5_forward.1} parent=63 // pred_fallthru
          _
        // Predicated region
        $region81: #{lenet5_forward.1} parent=63 // pred_check
          %p436 = pneg %p199
        $region82: #{lenet5_forward.1} parent=63 // pred_check_branch
          %438 = sbr.rel (%p436) target = $region84
        $region83: #{lenet5_forward.1} parent=63 // pred_region
          %439 = dma.done [#allocation11], 2048
        $region84: #{lenet5_forward.1} parent=63 // pred_fallthru
          _
        // Predicated region
        $region85: #{lenet5_forward.1} parent=63 // pred_check
          %p440 = pneg %p241
        $region86: #{lenet5_forward.1} parent=63 // pred_check_branch
          %442 = sbr.rel (%p440) target = $region88
        $region87: #{lenet5_forward.1} parent=63 // pred_region
          %443 = dma.done [#allocation14], 2048
        $region88: #{lenet5_forward.1} parent=63 // pred_fallthru
          _
        %s444 = sand.u32 %s39, 1
        %s445 = scalar_lea.sflag [#allocation5], %s444
        %s446 = sand.u32 %s39, 1
        %s447 = smul.addr %s446, 32
        %s448 = scalar_lea.vmem [#allocation4], %s447
        %p449 = pneg %p52
        %p450 = pneg %p49
        %p451 = pneg %p73
        %p452 = pneg %p70
        %p453 = pneg %p94
        %p454 = pneg %p91
        %p455 = pneg %p115
        %p456 = pneg %p112
        %p457 = pneg %p136
        %p458 = pneg %p133
        %p459 = pneg %p157
        %p460 = pneg %p154
        %p461 = pneg %p178
        %p462 = pneg %p175
        %p463 = pneg %p199
        %p464 = pneg %p196
        %p465 = pneg %p220
        %p466 = pneg %p217
        %p467 = pneg %p241
        %p468 = pneg %p238
        %p469 = pneg %p262
        %p470 = pneg %p259
        %p471 = pneg %p288
        %p472 = pneg %p285
        %s473 = sand.u32 %s275, 1
        %s474 = scalar_lea.sflag [#allocation6], %s473
        %s475 = sand.u32 %s275, 1
        %s476 = scalar_lea.vmem [#allocation15], %s475
        %v477 = vld [vmem:[%s419] sm:$0xff]
        %v478 = vld [vmem:[%s419 + $0x8] sm:$0xff]
        %v479 = vld [vmem:[%s419 + $0x10] sm:$0xff]
        %v480 = vld [vmem:[%s419 + $0x18] sm:$0xf]
        %v481 = vld [vmem:[#allocation7] sm:$0xff]
        %v482 = vld [vmem:[#allocation7 + $0x8] sm:$0xff]
        %v483 = vld [vmem:[#allocation7 + $0x10] sm:$0xff]
        %v484 = vld [vmem:[#allocation7 + $0x18] sm:$0xff]
        %v485 = vld [vmem:[#allocation7 + $0x20] sm:$0xff]
        %v486 = vld [vmem:[#allocation7 + $0x28] sm:$0xff]
        %v487 = vld [vmem:[#allocation7 + $0x30] sm:$0xff]
        %v488 = vld [vmem:[#allocation7 + $0x38] sm:$0xff]
        %v489 = vld [vmem:[%s419 + $0x1] sm:$0xff]
        %v490 = vld [vmem:[%s419 + $0x9] sm:$0xff]
        %v491 = vld [vmem:[%s419 + $0x11] sm:$0xff]
        %v492 = vld [vmem:[%s419 + $0x19] sm:$0xf]
        %s493 = scalar_lea.vmem [#allocation7], 64
        %v494 = vld [vmem:[%s493] sm:$0xff]
        %v495 = vld [vmem:[%s493 + $0x8] sm:$0xff]
        %v496 = vld [vmem:[%s493 + $0x10] sm:$0xff]
        %v497 = vld [vmem:[%s493 + $0x18] sm:$0xff]
        %v498 = vld [vmem:[%s493 + $0x20] sm:$0xff]
        %v499 = vld [vmem:[%s493 + $0x28] sm:$0xff]
        %v500 = vld [vmem:[%s493 + $0x30] sm:$0xff]
        %v501 = vld [vmem:[%s493 + $0x38] sm:$0xff]
        %vm502 = vcmask 261120
        %v504 = vsel %vm502, %v489, 0
        %v507 = vsel %vm502, %v490, 0
        %v510 = vsel %vm502, %v491, 0
        %v513 = vsel %vm502, %v492, 0
        %515 = vmatprep.subr.mxu0 0.0
        %516 = vmatpush1.msra.mxu0 0.0
        %517 = vmatprep.subr.mxu0 0.0
        %518 = vmatpush1.msra.mxu0 0.0
        %519 = vmatprep.subr.mxu0 0.0
        %520 = vmatpush1.msra.mxu0 0.0
        %521 = vmatprep.subr.mxu0 0.0
        %522 = vmatpush1.msra.mxu0 0.0
        %523 = vmatprep.subr.mxu0 0.0
        %524 = vmatpush1.msra.mxu0 0.0
        %525 = vmatprep.subr.mxu0 0.0
        %526 = vmatpush1.msra.mxu0 0.0
        %527 = vmatprep.subr.mxu0 0.0
        %528 = vmatpush1.msra.mxu0 0.0
        %529 = vmatprep.subr.mxu0 0.0
        %530 = vmatpush1.msra.mxu0 0.0
        %531 = vmatprep.subr.mxu0 0.0
        %532 = vmatpush1.msra.mxu0 0.0
        %533 = vmatprep.subr.mxu0 0.0
        %534 = vmatpush1.msra.mxu0 0.0
        %535 = vmatprep.subr.mxu0 0.0
        %536 = vmatpush1.msra.mxu0 0.0
        %537 = vmatprep.subr.mxu0 0.0
        %538 = vmatpush1.msra.mxu0 0.0
        %539 = vmatprep.subr.mxu0 %v501
        %540 = vmatpush1.msra.mxu0 %v500
        %541 = vmatprep.subr.mxu0 %v499
        %542 = vmatpush1.msra.mxu0 %v498
        %543 = vmatprep.subr.mxu0 %v497
        %544 = vmatpush1.msra.mxu0 %v496
        %545 = vmatprep.subr.mxu0 %v495
        %546 = vmatpush1.msra.mxu0 %v494
        %547 = vmatprep.subr.mxu0 0.0
        %548 = vmatpush2.msra.mxu0 0.0
        %549 = vmatprep.subr.mxu0 0.0
        %550 = vmatpush2.msra.mxu0 0.0
        %551 = vmatprep.subr.mxu0 0.0
        %552 = vmatpush2.msra.mxu0 0.0
        %553 = vmatprep.subr.mxu0 0.0
        %554 = vmatpush2.msra.mxu0 0.0
        %555 = vmatprep.subr.mxu0 0.0
        %556 = vmatpush2.msra.mxu0 0.0
        %557 = vmatprep.subr.mxu0 0.0
        %558 = vmatpush2.msra.mxu0 0.0
        %559 = vmatprep.subr.mxu0 0.0
        %560 = vmatpush2.msra.mxu0 0.0
        %561 = vmatprep.subr.mxu0 0.0
        %562 = vmatpush2.msra.mxu0 0.0
        %563 = vmatprep.subr.mxu0 0.0
        %564 = vmatpush2.msra.mxu0 0.0
        %565 = vmatprep.subr.mxu0 0.0
        %566 = vmatpush2.msra.mxu0 0.0
        %567 = vmatprep.subr.mxu0 0.0
        %568 = vmatpush2.msra.mxu0 0.0
        %569 = vmatprep.subr.mxu0 0.0
        %570 = vmatpush2.msra.mxu0 0.0
        %571 = vmatprep.subr.mxu0 0.0
        %572 = vmatpush2.msra.mxu0 0.0
        %573 = vmatprep.subr.mxu0 0.0
        %574 = vmatpush2.msra.mxu0 0.0
        %575 = vmatprep.subr.mxu0 0.0
        %576 = vmatpush2.msra.mxu0 0.0
        %577 = vmatprep.subr.mxu0 0.0
        %578 = vmatpush2.msra.mxu0 0.0
        %579 = vmatprep.mubr.f32.mxu0 0.0
        %580 = vmatmul.mubr.f32.gmra.mxu0 %v504
        %v581 = vpop.f32.mrf.mxu0
        %v582 = vadd.f32 0.0, %v581
        %v583 = vpop.f32.mrf.mxu0
        %v584 = vadd.f32 0.0, %v583
        %585 = vmatprep.mubr.f32.mxu0 0.0
        %586 = vmatmul.mubr.f32.gmra.mxu0 %v507
        %v587 = vpop.f32.mrf.mxu0
        %v588 = vadd.f32 0.0, %v587
        %v589 = vpop.f32.mrf.mxu0
        %v590 = vadd.f32 0.0, %v589
        %591 = vmatprep.mubr.f32.mxu0 0.0
        %592 = vmatmul.mubr.f32.gmra.mxu0 %v510
        %v593 = vpop.f32.mrf.mxu0
        %v594 = vadd.f32 0.0, %v593
        %v595 = vpop.f32.mrf.mxu0
        %v596 = vadd.f32 0.0, %v595
        %597 = vmatprep.mubr.f32.mxu0 0.0
        %598 = vmatmul.mubr.f32.gmra.mxu0 %v513
        %v599 = vpop.f32.mrf.mxu0
        %v600 = vadd.f32 0.0, %v599
        %v601 = vpop.f32.mrf.mxu0
        %v602 = vadd.f32 0.0, %v601
        %603 = vdwg.mxu0
        %v605 = vsel %vm502, %v477, 0
        %v608 = vsel %vm502, %v478, 0
        %v611 = vsel %vm502, %v479, 0
        %v614 = vsel %vm502, %v480, 0
        %616 = vmatprep.subr.mxu0 0.0
        %617 = vmatpush1.msra.mxu0 0.0
        %618 = vmatprep.subr.mxu0 0.0
        %619 = vmatpush1.msra.mxu0 0.0
        %620 = vmatprep.subr.mxu0 0.0
        %621 = vmatpush1.msra.mxu0 0.0
        %622 = vmatprep.subr.mxu0 0.0
        %623 = vmatpush1.msra.mxu0 0.0
        %624 = vmatprep.subr.mxu0 0.0
        %625 = vmatpush1.msra.mxu0 0.0
        %626 = vmatprep.subr.mxu0 0.0
        %627 = vmatpush1.msra.mxu0 0.0
        %628 = vmatprep.subr.mxu0 0.0
        %629 = vmatpush1.msra.mxu0 0.0
        %630 = vmatprep.subr.mxu0 0.0
        %631 = vmatpush1.msra.mxu0 0.0
        %632 = vmatprep.subr.mxu0 0.0
        %633 = vmatpush1.msra.mxu0 0.0
        %634 = vmatprep.subr.mxu0 0.0
        %635 = vmatpush1.msra.mxu0 0.0
        %636 = vmatprep.subr.mxu0 0.0
        %637 = vmatpush1.msra.mxu0 0.0
        %638 = vmatprep.subr.mxu0 0.0
        %639 = vmatpush1.msra.mxu0 0.0
        %640 = vmatprep.subr.mxu0 %v488
        %641 = vmatpush1.msra.mxu0 %v487
        %642 = vmatprep.subr.mxu0 %v486
        %643 = vmatpush1.msra.mxu0 %v485
        %644 = vmatprep.subr.mxu0 %v484
        %645 = vmatpush1.msra.mxu0 %v483
        %646 = vmatprep.subr.mxu0 %v482
        %647 = vmatpush1.msra.mxu0 %v481
        %648 = vmatprep.subr.mxu0 0.0
        %649 = vmatpush2.msra.mxu0 0.0
        %650 = vmatprep.subr.mxu0 0.0
        %651 = vmatpush2.msra.mxu0 0.0
        %652 = vmatprep.subr.mxu0 0.0
        %653 = vmatpush2.msra.mxu0 0.0
        %654 = vmatprep.subr.mxu0 0.0
        %655 = vmatpush2.msra.mxu0 0.0
        %656 = vmatprep.subr.mxu0 0.0
        %657 = vmatpush2.msra.mxu0 0.0
        %658 = vmatprep.subr.mxu0 0.0
        %659 = vmatpush2.msra.mxu0 0.0
        %660 = vmatprep.subr.mxu0 0.0
        %661 = vmatpush2.msra.mxu0 0.0
        %662 = vmatprep.subr.mxu0 0.0
        %663 = vmatpush2.msra.mxu0 0.0
        %664 = vmatprep.subr.mxu0 0.0
        %665 = vmatpush2.msra.mxu0 0.0
        %666 = vmatprep.subr.mxu0 0.0
        %667 = vmatpush2.msra.mxu0 0.0
        %668 = vmatprep.subr.mxu0 0.0
        %669 = vmatpush2.msra.mxu0 0.0
        %670 = vmatprep.subr.mxu0 0.0
        %671 = vmatpush2.msra.mxu0 0.0
        %672 = vmatprep.subr.mxu0 0.0
        %673 = vmatpush2.msra.mxu0 0.0
        %674 = vmatprep.subr.mxu0 0.0
        %675 = vmatpush2.msra.mxu0 0.0
        %676 = vmatprep.subr.mxu0 0.0
        %677 = vmatpush2.msra.mxu0 0.0
        %678 = vmatprep.subr.mxu0 0.0
        %679 = vmatpush2.msra.mxu0 0.0
        %680 = vmatprep.mubr.f32.mxu0 0.0
        %681 = vmatmul.mubr.f32.gmra.mxu0 %v605
        %v682 = vpop.f32.mrf.mxu0
        %v683 = vadd.f32 %v582, %v682
        %v684 = vpop.f32.mrf.mxu0
        %v685 = vadd.f32 %v584, %v684
        %686 = vmatprep.mubr.f32.mxu0 0.0
        %687 = vmatmul.mubr.f32.gmra.mxu0 %v608
        %v688 = vpop.f32.mrf.mxu0
        %v689 = vadd.f32 %v588, %v688
        %v690 = vpop.f32.mrf.mxu0
        %v691 = vadd.f32 %v590, %v690
        %692 = vmatprep.mubr.f32.mxu0 0.0
        %693 = vmatmul.mubr.f32.gmra.mxu0 %v611
        %v694 = vpop.f32.mrf.mxu0
        %v695 = vadd.f32 %v594, %v694
        %v696 = vpop.f32.mrf.mxu0
        %v697 = vadd.f32 %v596, %v696
        %698 = vmatprep.mubr.f32.mxu0 0.0
        %699 = vmatmul.mubr.f32.gmra.mxu0 %v614
        %v700 = vpop.f32.mrf.mxu0
        %v701 = vadd.f32 %v600, %v700
        %v702 = vpop.f32.mrf.mxu0
        %v703 = vadd.f32 %v602, %v702
        %704 = vdwg.mxu0
        %v705 = vld [vmem:[%s419 + $0x2] sm:$0xff]
        %v706 = vld [vmem:[%s419 + $0xa] sm:$0xff]
        %v707 = vld [vmem:[%s419 + $0x12] sm:$0xff]
        %v708 = vld [vmem:[%s419 + $0x1a] sm:$0xf]
        %s709 = scalar_lea.vmem [#allocation7], 128
        %v710 = vld [vmem:[%s709] sm:$0xff]
        %v711 = vld [vmem:[%s709 + $0x8] sm:$0xff]
        %v712 = vld [vmem:[%s709 + $0x10] sm:$0xff]
        %v713 = vld [vmem:[%s709 + $0x18] sm:$0xff]
        %v714 = vld [vmem:[%s709 + $0x20] sm:$0xff]
        %v715 = vld [vmem:[%s709 + $0x28] sm:$0xff]
        %v716 = vld [vmem:[%s709 + $0x30] sm:$0xff]
        %v717 = vld [vmem:[%s709 + $0x38] sm:$0xff]
        %v719 = vsel %vm502, %v705, 0
        %v722 = vsel %vm502, %v706, 0
        %v725 = vsel %vm502, %v707, 0
        %v728 = vsel %vm502, %v708, 0
        %730 = vmatprep.subr.mxu0 0.0
        %731 = vmatpush1.msra.mxu0 0.0
        %732 = vmatprep.subr.mxu0 0.0
        %733 = vmatpush1.msra.mxu0 0.0
        %734 = vmatprep.subr.mxu0 0.0
        %735 = vmatpush1.msra.mxu0 0.0
        %736 = vmatprep.subr.mxu0 0.0
        %737 = vmatpush1.msra.mxu0 0.0
        %738 = vmatprep.subr.mxu0 0.0
        %739 = vmatpush1.msra.mxu0 0.0
        %740 = vmatprep.subr.mxu0 0.0
        %741 = vmatpush1.msra.mxu0 0.0
        %742 = vmatprep.subr.mxu0 0.0
        %743 = vmatpush1.msra.mxu0 0.0
        %744 = vmatprep.subr.mxu0 0.0
        %745 = vmatpush1.msra.mxu0 0.0
        %746 = vmatprep.subr.mxu0 0.0
        %747 = vmatpush1.msra.mxu0 0.0
        %748 = vmatprep.subr.mxu0 0.0
        %749 = vmatpush1.msra.mxu0 0.0
        %750 = vmatprep.subr.mxu0 0.0
        %751 = vmatpush1.msra.mxu0 0.0
        %752 = vmatprep.subr.mxu0 0.0
        %753 = vmatpush1.msra.mxu0 0.0
        %754 = vmatprep.subr.mxu0 %v717
        %755 = vmatpush1.msra.mxu0 %v716
        %756 = vmatprep.subr.mxu0 %v715
        %757 = vmatpush1.msra.mxu0 %v714
        %758 = vmatprep.subr.mxu0 %v713
        %759 = vmatpush1.msra.mxu0 %v712
        %760 = vmatprep.subr.mxu0 %v711
        %761 = vmatpush1.msra.mxu0 %v710
        %762 = vmatprep.subr.mxu0 0.0
        %763 = vmatpush2.msra.mxu0 0.0
        %764 = vmatprep.subr.mxu0 0.0
        %765 = vmatpush2.msra.mxu0 0.0
        %766 = vmatprep.subr.mxu0 0.0
        %767 = vmatpush2.msra.mxu0 0.0
        %768 = vmatprep.subr.mxu0 0.0
        %769 = vmatpush2.msra.mxu0 0.0
        %770 = vmatprep.subr.mxu0 0.0
        %771 = vmatpush2.msra.mxu0 0.0
        %772 = vmatprep.subr.mxu0 0.0
        %773 = vmatpush2.msra.mxu0 0.0
        %774 = vmatprep.subr.mxu0 0.0
        %775 = vmatpush2.msra.mxu0 0.0
        %776 = vmatprep.subr.mxu0 0.0
        %777 = vmatpush2.msra.mxu0 0.0
        %778 = vmatprep.subr.mxu0 0.0
        %779 = vmatpush2.msra.mxu0 0.0
        %780 = vmatprep.subr.mxu0 0.0
        %781 = vmatpush2.msra.mxu0 0.0
        %782 = vmatprep.subr.mxu0 0.0
        %783 = vmatpush2.msra.mxu0 0.0
        %784 = vmatprep.subr.mxu0 0.0
        %785 = vmatpush2.msra.mxu0 0.0
        %786 = vmatprep.subr.mxu0 0.0
        %787 = vmatpush2.msra.mxu0 0.0
        %788 = vmatprep.subr.mxu0 0.0
        %789 = vmatpush2.msra.mxu0 0.0
        %790 = vmatprep.subr.mxu0 0.0
        %791 = vmatpush2.msra.mxu0 0.0
        %792 = vmatprep.subr.mxu0 0.0
        %793 = vmatpush2.msra.mxu0 0.0
        %794 = vmatprep.mubr.f32.mxu0 0.0
        %795 = vmatmul.mubr.f32.gmra.mxu0 %v719
        %v796 = vpop.f32.mrf.mxu0
        %v797 = vadd.f32 0.0, %v796
        %v798 = vpop.f32.mrf.mxu0
        %v799 = vadd.f32 0.0, %v798
        %800 = vmatprep.mubr.f32.mxu0 0.0
        %801 = vmatmul.mubr.f32.gmra.mxu0 %v722
        %v802 = vpop.f32.mrf.mxu0
        %v803 = vadd.f32 0.0, %v802
        %v804 = vpop.f32.mrf.mxu0
        %v805 = vadd.f32 0.0, %v804
        %806 = vmatprep.mubr.f32.mxu0 0.0
        %807 = vmatmul.mubr.f32.gmra.mxu0 %v725
        %v808 = vpop.f32.mrf.mxu0
        %v809 = vadd.f32 0.0, %v808
        %v810 = vpop.f32.mrf.mxu0
        %v811 = vadd.f32 0.0, %v810
        %812 = vmatprep.mubr.f32.mxu0 0.0
        %813 = vmatmul.mubr.f32.gmra.mxu0 %v728
        %v814 = vpop.f32.mrf.mxu0
        %v815 = vadd.f32 0.0, %v814
        %v816 = vpop.f32.mrf.mxu0
        %v817 = vadd.f32 0.0, %v816
        %818 = vdwg.mxu0
        %v819 = vadd.f32 %v683, %v797
        %v820 = vadd.f32 %v685, %v799
        %v821 = vadd.f32 %v689, %v803
        %v822 = vadd.f32 %v691, %v805
        %v823 = vadd.f32 %v695, %v809
        %v824 = vadd.f32 %v697, %v811
        %v825 = vadd.f32 %v701, %v815
        %v826 = vadd.f32 %v703, %v817
        %v827 = vld [vmem:[%s419 + $0x3] sm:$0xff]
        %v828 = vld [vmem:[%s419 + $0xb] sm:$0xff]
        %v829 = vld [vmem:[%s419 + $0x13] sm:$0xff]
        %v830 = vld [vmem:[%s419 + $0x1b] sm:$0xf]
        %s831 = scalar_lea.vmem [#allocation7], 192
        %v832 = vld [vmem:[%s831] sm:$0xff]
        %v833 = vld [vmem:[%s831 + $0x8] sm:$0xff]
        %v834 = vld [vmem:[%s831 + $0x10] sm:$0xff]
        %v835 = vld [vmem:[%s831 + $0x18] sm:$0xff]
        %v836 = vld [vmem:[%s831 + $0x20] sm:$0xff]
        %v837 = vld [vmem:[%s831 + $0x28] sm:$0xff]
        %v838 = vld [vmem:[%s831 + $0x30] sm:$0xff]
        %v839 = vld [vmem:[%s831 + $0x38] sm:$0xff]
        %v841 = vsel %vm502, %v827, 0
        %v844 = vsel %vm502, %v828, 0
        %v847 = vsel %vm502, %v829, 0
        %v850 = vsel %vm502, %v830, 0
        %852 = vmatprep.subr.mxu0 0.0
        %853 = vmatpush1.msra.mxu0 0.0
        %854 = vmatprep.subr.mxu0 0.0
        %855 = vmatpush1.msra.mxu0 0.0
        %856 = vmatprep.subr.mxu0 0.0
        %857 = vmatpush1.msra.mxu0 0.0
        %858 = vmatprep.subr.mxu0 0.0
        %859 = vmatpush1.msra.mxu0 0.0
        %860 = vmatprep.subr.mxu0 0.0
        %861 = vmatpush1.msra.mxu0 0.0
        %862 = vmatprep.subr.mxu0 0.0
        %863 = vmatpush1.msra.mxu0 0.0
        %864 = vmatprep.subr.mxu0 0.0
        %865 = vmatpush1.msra.mxu0 0.0
        %866 = vmatprep.subr.mxu0 0.0
        %867 = vmatpush1.msra.mxu0 0.0
        %868 = vmatprep.subr.mxu0 0.0
        %869 = vmatpush1.msra.mxu0 0.0
        %870 = vmatprep.subr.mxu0 0.0
        %871 = vmatpush1.msra.mxu0 0.0
        %872 = vmatprep.subr.mxu0 0.0
        %873 = vmatpush1.msra.mxu0 0.0
        %874 = vmatprep.subr.mxu0 0.0
        %875 = vmatpush1.msra.mxu0 0.0
        %876 = vmatprep.subr.mxu0 %v839
        %877 = vmatpush1.msra.mxu0 %v838
        %878 = vmatprep.subr.mxu0 %v837
        %879 = vmatpush1.msra.mxu0 %v836
        %880 = vmatprep.subr.mxu0 %v835
        %881 = vmatpush1.msra.mxu0 %v834
        %882 = vmatprep.subr.mxu0 %v833
        %883 = vmatpush1.msra.mxu0 %v832
        %884 = vmatprep.subr.mxu0 0.0
        %885 = vmatpush2.msra.mxu0 0.0
        %886 = vmatprep.subr.mxu0 0.0
        %887 = vmatpush2.msra.mxu0 0.0
        %888 = vmatprep.subr.mxu0 0.0
        %889 = vmatpush2.msra.mxu0 0.0
        %890 = vmatprep.subr.mxu0 0.0
        %891 = vmatpush2.msra.mxu0 0.0
        %892 = vmatprep.subr.mxu0 0.0
        %893 = vmatpush2.msra.mxu0 0.0
        %894 = vmatprep.subr.mxu0 0.0
        %895 = vmatpush2.msra.mxu0 0.0
        %896 = vmatprep.subr.mxu0 0.0
        %897 = vmatpush2.msra.mxu0 0.0
        %898 = vmatprep.subr.mxu0 0.0
        %899 = vmatpush2.msra.mxu0 0.0
        %900 = vmatprep.subr.mxu0 0.0
        %901 = vmatpush2.msra.mxu0 0.0
        %902 = vmatprep.subr.mxu0 0.0
        %903 = vmatpush2.msra.mxu0 0.0
        %904 = vmatprep.subr.mxu0 0.0
        %905 = vmatpush2.msra.mxu0 0.0
        %906 = vmatprep.subr.mxu0 0.0
        %907 = vmatpush2.msra.mxu0 0.0
        %908 = vmatprep.subr.mxu0 0.0
        %909 = vmatpush2.msra.mxu0 0.0
        %910 = vmatprep.subr.mxu0 0.0
        %911 = vmatpush2.msra.mxu0 0.0
        %912 = vmatprep.subr.mxu0 0.0
        %913 = vmatpush2.msra.mxu0 0.0
        %914 = vmatprep.subr.mxu0 0.0
        %915 = vmatpush2.msra.mxu0 0.0
        %916 = vmatprep.mubr.f32.mxu0 0.0
        %917 = vmatmul.mubr.f32.gmra.mxu0 %v841
        %v918 = vpop.f32.mrf.mxu0
        %v919 = vadd.f32 0.0, %v918
        %v920 = vpop.f32.mrf.mxu0
        %v921 = vadd.f32 0.0, %v920
        %922 = vmatprep.mubr.f32.mxu0 0.0
        %923 = vmatmul.mubr.f32.gmra.mxu0 %v844
        %v924 = vpop.f32.mrf.mxu0
        %v925 = vadd.f32 0.0, %v924
        %v926 = vpop.f32.mrf.mxu0
        %v927 = vadd.f32 0.0, %v926
        %928 = vmatprep.mubr.f32.mxu0 0.0
        %929 = vmatmul.mubr.f32.gmra.mxu0 %v847
        %v930 = vpop.f32.mrf.mxu0
        %v931 = vadd.f32 0.0, %v930
        %v932 = vpop.f32.mrf.mxu0
        %v933 = vadd.f32 0.0, %v932
        %934 = vmatprep.mubr.f32.mxu0 0.0
        %935 = vmatmul.mubr.f32.gmra.mxu0 %v850
        %v936 = vpop.f32.mrf.mxu0
        %v937 = vadd.f32 0.0, %v936
        %v938 = vpop.f32.mrf.mxu0
        %v939 = vadd.f32 0.0, %v938
        %940 = vdwg.mxu0
        %v941 = vadd.f32 %v819, %v919
        %v942 = vadd.f32 %v820, %v921
        %v943 = vadd.f32 %v821, %v925
        %v944 = vadd.f32 %v822, %v927
        %v945 = vadd.f32 %v823, %v931
        %v946 = vadd.f32 %v824, %v933
        %v947 = vadd.f32 %v825, %v937
        %v948 = vadd.f32 %v826, %v939
        %v949 = vld [vmem:[%s419 + $0x4] sm:$0xff]
        %v950 = vld [vmem:[%s419 + $0xc] sm:$0xff]
        %v951 = vld [vmem:[%s419 + $0x14] sm:$0xff]
        %v952 = vld [vmem:[%s419 + $0x1c] sm:$0xf]
        %s953 = scalar_lea.vmem [#allocation7], 256
        %v954 = vld [vmem:[%s953] sm:$0xff]
        %v955 = vld [vmem:[%s953 + $0x8] sm:$0xff]
        %v956 = vld [vmem:[%s953 + $0x10] sm:$0xff]
        %v957 = vld [vmem:[%s953 + $0x18] sm:$0xff]
        %v958 = vld [vmem:[%s953 + $0x20] sm:$0xff]
        %v959 = vld [vmem:[%s953 + $0x28] sm:$0xff]
        %v960 = vld [vmem:[%s953 + $0x30] sm:$0xff]
        %v961 = vld [vmem:[%s953 + $0x38] sm:$0xff]
        %v963 = vsel %vm502, %v949, 0
        %v966 = vsel %vm502, %v950, 0
        %v969 = vsel %vm502, %v951, 0
        %v972 = vsel %vm502, %v952, 0
        %974 = vmatprep.subr.mxu0 0.0
        %975 = vmatpush1.msra.mxu0 0.0
        %976 = vmatprep.subr.mxu0 0.0
        %977 = vmatpush1.msra.mxu0 0.0
        %978 = vmatprep.subr.mxu0 0.0
        %979 = vmatpush1.msra.mxu0 0.0
        %980 = vmatprep.subr.mxu0 0.0
        %981 = vmatpush1.msra.mxu0 0.0
        %982 = vmatprep.subr.mxu0 0.0
        %983 = vmatpush1.msra.mxu0 0.0
        %984 = vmatprep.subr.mxu0 0.0
        %985 = vmatpush1.msra.mxu0 0.0
        %986 = vmatprep.subr.mxu0 0.0
        %987 = vmatpush1.msra.mxu0 0.0
        %988 = vmatprep.subr.mxu0 0.0
        %989 = vmatpush1.msra.mxu0 0.0
        %990 = vmatprep.subr.mxu0 0.0
        %991 = vmatpush1.msra.mxu0 0.0
        %992 = vmatprep.subr.mxu0 0.0
        %993 = vmatpush1.msra.mxu0 0.0
        %994 = vmatprep.subr.mxu0 0.0
        %995 = vmatpush1.msra.mxu0 0.0
        %996 = vmatprep.subr.mxu0 0.0
        %997 = vmatpush1.msra.mxu0 0.0
        %998 = vmatprep.subr.mxu0 %v961
        %999 = vmatpush1.msra.mxu0 %v960
        %1000 = vmatprep.subr.mxu0 %v959
        %1001 = vmatpush1.msra.mxu0 %v958
        %1002 = vmatprep.subr.mxu0 %v957
        %1003 = vmatpush1.msra.mxu0 %v956
        %1004 = vmatprep.subr.mxu0 %v955
        %1005 = vmatpush1.msra.mxu0 %v954
        %1006 = vmatprep.subr.mxu0 0.0
        %1007 = vmatpush2.msra.mxu0 0.0
        %1008 = vmatprep.subr.mxu0 0.0
        %1009 = vmatpush2.msra.mxu0 0.0
        %1010 = vmatprep.subr.mxu0 0.0
        %1011 = vmatpush2.msra.mxu0 0.0
        %1012 = vmatprep.subr.mxu0 0.0
        %1013 = vmatpush2.msra.mxu0 0.0
        %1014 = vmatprep.subr.mxu0 0.0
        %1015 = vmatpush2.msra.mxu0 0.0
        %1016 = vmatprep.subr.mxu0 0.0
        %1017 = vmatpush2.msra.mxu0 0.0
        %1018 = vmatprep.subr.mxu0 0.0
        %1019 = vmatpush2.msra.mxu0 0.0
        %1020 = vmatprep.subr.mxu0 0.0
        %1021 = vmatpush2.msra.mxu0 0.0
        %1022 = vmatprep.subr.mxu0 0.0
        %1023 = vmatpush2.msra.mxu0 0.0
        %1024 = vmatprep.subr.mxu0 0.0
        %1025 = vmatpush2.msra.mxu0 0.0
        %1026 = vmatprep.subr.mxu0 0.0
        %1027 = vmatpush2.msra.mxu0 0.0
        %1028 = vmatprep.subr.mxu0 0.0
        %1029 = vmatpush2.msra.mxu0 0.0
        %1030 = vmatprep.subr.mxu0 0.0
        %1031 = vmatpush2.msra.mxu0 0.0
        %1032 = vmatprep.subr.mxu0 0.0
        %1033 = vmatpush2.msra.mxu0 0.0
        %1034 = vmatprep.subr.mxu0 0.0
        %1035 = vmatpush2.msra.mxu0 0.0
        %1036 = vmatprep.subr.mxu0 0.0
        %1037 = vmatpush2.msra.mxu0 0.0
        %1038 = vmatprep.mubr.f32.mxu0 0.0
        %1039 = vmatmul.mubr.f32.gmra.mxu0 %v963
        %v1040 = vpop.f32.mrf.mxu0
        %v1041 = vadd.f32 0.0, %v1040
        %v1042 = vpop.f32.mrf.mxu0
        %v1043 = vadd.f32 0.0, %v1042
        %1044 = vmatprep.mubr.f32.mxu0 0.0
        %1045 = vmatmul.mubr.f32.gmra.mxu0 %v966
        %v1046 = vpop.f32.mrf.mxu0
        %v1047 = vadd.f32 0.0, %v1046
        %v1048 = vpop.f32.mrf.mxu0
        %v1049 = vadd.f32 0.0, %v1048
        %1050 = vmatprep.mubr.f32.mxu0 0.0
        %1051 = vmatmul.mubr.f32.gmra.mxu0 %v969
        %v1052 = vpop.f32.mrf.mxu0
        %v1053 = vadd.f32 0.0, %v1052
        %v1054 = vpop.f32.mrf.mxu0
        %v1055 = vadd.f32 0.0, %v1054
        %1056 = vmatprep.mubr.f32.mxu0 0.0
        %1057 = vmatmul.mubr.f32.gmra.mxu0 %v972
        %v1058 = vpop.f32.mrf.mxu0
        %v1059 = vadd.f32 0.0, %v1058
        %v1060 = vpop.f32.mrf.mxu0
        %v1061 = vadd.f32 0.0, %v1060
        %1062 = vdwg.mxu0
        %v1063 = vadd.f32 %v941, %v1041
        %v1064 = vadd.f32 %v942, %v1043
        %v1065 = vadd.f32 %v943, %v1047
        %v1066 = vadd.f32 %v944, %v1049
        %v1067 = vadd.f32 %v945, %v1053
        %v1068 = vadd.f32 %v946, %v1055
        %v1069 = vadd.f32 %v947, %v1059
        %v1070 = vadd.f32 %v948, %v1061
        %v1071 = vld [vmem:[%s2] sm:$0x3]
        %v1073 = vlaneseq
        %v1074 = vshrl.u32 %v1073, 7
        %v1075 = vsub.s32 0, %v1074
        %v1076 = vrot.slane %v1071, %v1075
        %v1077 = vlaneseq
        %v1078 = vshrl.u32 %v1077, 7
        %v1079 = vsub.s32 1, %v1078
        %v1080 = vrot.slane %v1071, %v1079
        %v1083 = vadd.f32 %v1063, %v1076
        %v1084 = vadd.f32 %v1064, %v1080
        %v1085 = vadd.f32 %v1065, %v1076
        %v1086 = vadd.f32 %v1066, %v1080
        %v1087 = vadd.f32 %v1067, %v1076
        %v1088 = vadd.f32 %v1068, %v1080
        %v1089 = vadd.f32 %v1069, %v1076
        %v1090 = vadd.f32 %v1070, %v1080
        %v1091 = vmax.f32 %v1083, 0.0
        %v1092 = vmax.f32 %v1084, 0.0
        %v1093 = vmax.f32 %v1085, 0.0
        %v1094 = vmax.f32 %v1086, 0.0
        %v1095 = vmax.f32 %v1087, 0.0
        %v1096 = vmax.f32 %v1088, 0.0
        %v1097 = vmax.f32 %v1089, 0.0
        %v1098 = vmax.f32 %v1090, 0.0
        %v1099 = vmax.f32 %v1091, %v1092
        %v1100 = vmax.f32 %v1093, %v1094
        %v1101 = vmax.f32 %v1095, %v1096
        %v1102 = vmax.f32 %v1097, %v1098
        %v1103 = vlaneseq
        %v1104 = vshrl.u32 %v1103, 7
        %v1105 = vadd.s32 %v1104, 8
        %v1106 = vlaneseq
        %v1107 = vand.u32 %v1106, 127
        %v1108 = vmul.u32 %v1104, 2
        %v1109 = vmul.u32 %v1105, 2
        %vm1110 = vcmp.eq.s32.totalorder %v1107, %v1108
        %vm1111 = vcmp.eq.s32.totalorder %v1107, %v1109
        %v1112 = vsel %vm1110, 1, 0
        %v1113 = vsel %vm1111, 1, 0
        %v1114 = vcvt.s32.f32 %v1112
        %v1115 = vcvt.s32.f32 %v1113
        %v1116 = vadd.s32 %v1108, 1
        %v1117 = vadd.s32 %v1109, 1
        %vm1118 = vcmp.eq.s32.totalorder %v1107, %v1116
        %vm1119 = vcmp.eq.s32.totalorder %v1107, %v1117
        %v1120 = vsel %vm1118, 1, 0
        %v1121 = vsel %vm1119, 1, 0
        %v1122 = vcvt.s32.f32 %v1120
        %v1123 = vcvt.s32.f32 %v1121
        %vm1124 = vcmask 228352
        %v1126 = vsel %vm1124, %v1114, 0
        %v1129 = vsel %vm1124, %v1115, 0
        %vm1131 = vcmask 1043456
        %v1133 = vsel %vm1131, %v1102, 0
        %1135 = vmatprep.subr.mxu0 0.0
        %1136 = vmatpush1.msra.mxu0 0.0
        %1137 = vmatprep.subr.mxu0 0.0
        %1138 = vmatpush1.msra.mxu0 0.0
        %1139 = vmatprep.subr.mxu0 0.0
        %1140 = vmatpush1.msra.mxu0 0.0
        %1141 = vmatprep.subr.mxu0 0.0
        %1142 = vmatpush1.msra.mxu0 0.0
        %1143 = vmatprep.subr.mxu0 0.0
        %1144 = vmatpush1.msra.mxu0 0.0
        %1145 = vmatprep.subr.mxu0 0.0
        %1146 = vmatpush1.msra.mxu0 0.0
        %1147 = vmatprep.subr.mxu0 0.0
        %1148 = vmatpush1.msra.mxu0 0.0
        %1149 = vmatprep.subr.mxu0 0.0
        %1150 = vmatpush1.msra.mxu0 0.0
        %1151 = vmatprep.subr.mxu0 0.0
        %1152 = vmatpush1.msra.mxu0 0.0
        %1153 = vmatprep.subr.mxu0 0.0
        %1154 = vmatpush1.msra.mxu0 0.0
        %1155 = vmatprep.subr.mxu0 0.0
        %1156 = vmatpush1.msra.mxu0 0.0
        %1157 = vmatprep.subr.mxu0 0.0
        %1158 = vmatpush1.msra.mxu0 0.0
        %1159 = vmatprep.subr.mxu0 0.0
        %1160 = vmatpush1.msra.mxu0 %v1133
        %1161 = vmatprep.subr.mxu0 0.0
        %1162 = vmatpush1.msra.mxu0 %v1101
        %1163 = vmatprep.subr.mxu0 0.0
        %1164 = vmatpush1.msra.mxu0 %v1100
        %1165 = vmatprep.subr.mxu0 0.0
        %1166 = vmatpush1.msra.mxu0 %v1099
        %1167 = vmatprep.subr.mxu0 0.0
        %1168 = vmatpush2.msra.mxu0 0.0
        %1169 = vmatprep.subr.mxu0 0.0
        %1170 = vmatpush2.msra.mxu0 0.0
        %1171 = vmatprep.subr.mxu0 0.0
        %1172 = vmatpush2.msra.mxu0 0.0
        %1173 = vmatprep.subr.mxu0 0.0
        %1174 = vmatpush2.msra.mxu0 0.0
        %1175 = vmatprep.subr.mxu0 0.0
        %1176 = vmatpush2.msra.mxu0 0.0
        %1177 = vmatprep.subr.mxu0 0.0
        %1178 = vmatpush2.msra.mxu0 0.0
        %1179 = vmatprep.subr.mxu0 0.0
        %1180 = vmatpush2.msra.mxu0 0.0
        %1181 = vmatprep.subr.mxu0 0.0
        %1182 = vmatpush2.msra.mxu0 0.0
        %1183 = vmatprep.subr.mxu0 0.0
        %1184 = vmatpush2.msra.mxu0 0.0
        %1185 = vmatprep.subr.mxu0 0.0
        %1186 = vmatpush2.msra.mxu0 0.0
        %1187 = vmatprep.subr.mxu0 0.0
        %1188 = vmatpush2.msra.mxu0 0.0
        %1189 = vmatprep.subr.mxu0 0.0
        %1190 = vmatpush2.msra.mxu0 0.0
        %1191 = vmatprep.subr.mxu0 0.0
        %1192 = vmatpush2.msra.mxu0 0.0
        %1193 = vmatprep.subr.mxu0 0.0
        %1194 = vmatpush2.msra.mxu0 0.0
        %1195 = vmatprep.subr.mxu0 0.0
        %1196 = vmatpush2.msra.mxu0 0.0
        %1197 = vmatprep.subr.mxu0 0.0
        %1198 = vmatpush2.msra.mxu0 0.0
        %1199 = vmatprep.mubr.f32.mxu0 0.0
        %1200 = vmatmul.mubr.f32.gmra.mxu0 %v1126
        %v1201 = vpop.f32.mrf.mxu0
        %v1202 = vadd.f32 0.0, %v1201
        %v1203 = vpop.f32.mrf.mxu0
        %1204 = vmatprep.mubr.f32.mxu0 0.0
        %1205 = vmatmul.mubr.f32.gmra.mxu0 %v1129
        %v1206 = vpop.f32.mrf.mxu0
        %v1207 = vadd.f32 0.0, %v1206
        %v1208 = vpop.f32.mrf.mxu0
        %1209 = vdwg.mxu0
        %v1211 = vsel %vm1124, %v1122, 0
        %v1214 = vsel %vm1124, %v1123, 0
        %1216 = vmatprep.subr.mxu0 0.0
        %1217 = vmatpush1.msra.mxu0 0.0
        %1218 = vmatprep.subr.mxu0 0.0
        %1219 = vmatpush1.msra.mxu0 0.0
        %1220 = vmatprep.subr.mxu0 0.0
        %1221 = vmatpush1.msra.mxu0 0.0
        %1222 = vmatprep.subr.mxu0 0.0
        %1223 = vmatpush1.msra.mxu0 0.0
        %1224 = vmatprep.subr.mxu0 0.0
        %1225 = vmatpush1.msra.mxu0 0.0
        %1226 = vmatprep.subr.mxu0 0.0
        %1227 = vmatpush1.msra.mxu0 0.0
        %1228 = vmatprep.subr.mxu0 0.0
        %1229 = vmatpush1.msra.mxu0 0.0
        %1230 = vmatprep.subr.mxu0 0.0
        %1231 = vmatpush1.msra.mxu0 0.0
        %1232 = vmatprep.subr.mxu0 0.0
        %1233 = vmatpush1.msra.mxu0 0.0
        %1234 = vmatprep.subr.mxu0 0.0
        %1235 = vmatpush1.msra.mxu0 0.0
        %1236 = vmatprep.subr.mxu0 0.0
        %1237 = vmatpush1.msra.mxu0 0.0
        %1238 = vmatprep.subr.mxu0 0.0
        %1239 = vmatpush1.msra.mxu0 0.0
        %1240 = vmatprep.subr.mxu0 0.0
        %1241 = vmatpush1.msra.mxu0 %v1133
        %1242 = vmatprep.subr.mxu0 0.0
        %1243 = vmatpush1.msra.mxu0 %v1101
        %1244 = vmatprep.subr.mxu0 0.0
        %1245 = vmatpush1.msra.mxu0 %v1100
        %1246 = vmatprep.subr.mxu0 0.0
        %1247 = vmatpush1.msra.mxu0 %v1099
        %1248 = vmatprep.subr.mxu0 0.0
        %1249 = vmatpush2.msra.mxu0 0.0
        %1250 = vmatprep.subr.mxu0 0.0
        %1251 = vmatpush2.msra.mxu0 0.0
        %1252 = vmatprep.subr.mxu0 0.0
        %1253 = vmatpush2.msra.mxu0 0.0
        %1254 = vmatprep.subr.mxu0 0.0
        %1255 = vmatpush2.msra.mxu0 0.0
        %1256 = vmatprep.subr.mxu0 0.0
        %1257 = vmatpush2.msra.mxu0 0.0
        %1258 = vmatprep.subr.mxu0 0.0
        %1259 = vmatpush2.msra.mxu0 0.0
        %1260 = vmatprep.subr.mxu0 0.0
        %1261 = vmatpush2.msra.mxu0 0.0
        %1262 = vmatprep.subr.mxu0 0.0
        %1263 = vmatpush2.msra.mxu0 0.0
        %1264 = vmatprep.subr.mxu0 0.0
        %1265 = vmatpush2.msra.mxu0 0.0
        %1266 = vmatprep.subr.mxu0 0.0
        %1267 = vmatpush2.msra.mxu0 0.0
        %1268 = vmatprep.subr.mxu0 0.0
        %1269 = vmatpush2.msra.mxu0 0.0
        %1270 = vmatprep.subr.mxu0 0.0
        %1271 = vmatpush2.msra.mxu0 0.0
        %1272 = vmatprep.subr.mxu0 0.0
        %1273 = vmatpush2.msra.mxu0 0.0
        %1274 = vmatprep.subr.mxu0 0.0
        %1275 = vmatpush2.msra.mxu0 0.0
        %1276 = vmatprep.subr.mxu0 0.0
        %1277 = vmatpush2.msra.mxu0 0.0
        %1278 = vmatprep.subr.mxu0 0.0
        %1279 = vmatpush2.msra.mxu0 0.0
        %1280 = vmatprep.mubr.f32.mxu0 0.0
        %1281 = vmatmul.mubr.f32.gmra.mxu0 %v1211
        %v1282 = vpop.f32.mrf.mxu0
        %v1283 = vadd.f32 0.0, %v1282
        %v1284 = vpop.f32.mrf.mxu0
        %1285 = vmatprep.mubr.f32.mxu0 0.0
        %1286 = vmatmul.mubr.f32.gmra.mxu0 %v1214
        %v1287 = vpop.f32.mrf.mxu0
        %v1288 = vadd.f32 0.0, %v1287
        %v1289 = vpop.f32.mrf.mxu0
        %1290 = vdwg.mxu0
        %v1291 = vmax.f32 %v1202, %v1283
        %v1292 = vmax.f32 %v1207, %v1288
        %1293 = vst [vmem:[#allocation2] sm:$0xff] %v1291
        %1294 = vst [vmem:[#allocation2 + $0x8] sm:$0x3f] %v1292
        %v1295 = vld [vmem:[#allocation2] sm:$0xff]
        %v1296 = vld [vmem:[#allocation2 + $0x8] sm:$0x3]
        %v1297 = vld [vmem:[#allocation9] sm:$0xff]
        %v1298 = vld [vmem:[#allocation9 + $0x8] sm:$0xff]
        %v1299 = vld [vmem:[#allocation9 + $0x10] sm:$0xff]
        %v1300 = vld [vmem:[#allocation9 + $0x18] sm:$0xff]
        %v1301 = vld [vmem:[#allocation9 + $0x20] sm:$0xff]
        %v1302 = vld [vmem:[#allocation9 + $0x28] sm:$0xff]
        %v1303 = vld [vmem:[#allocation9 + $0x30] sm:$0xff]
        %v1304 = vld [vmem:[#allocation9 + $0x38] sm:$0xff]
        %v1305 = vld [vmem:[#allocation9 + $0x40] sm:$0xff]
        %v1306 = vld [vmem:[#allocation9 + $0x48] sm:$0xff]
        %v1307 = vld [vmem:[#allocation9 + $0x50] sm:$0xff]
        %v1308 = vld [vmem:[#allocation9 + $0x58] sm:$0xff]
        %v1309 = vld [vmem:[#allocation9 + $0x60] sm:$0xff]
        %v1310 = vld [vmem:[#allocation9 + $0x68] sm:$0xff]
        %v1311 = vld [vmem:[#allocation9 + $0x70] sm:$0xff]
        %v1312 = vld [vmem:[#allocation9 + $0x78] sm:$0xff]
        %v1313 = vld [vmem:[#allocation9 + $0x80] sm:$0xff]
        %v1314 = vld [vmem:[#allocation9 + $0x88] sm:$0xff]
        %v1315 = vld [vmem:[#allocation9 + $0x90] sm:$0xff]
        %v1316 = vld [vmem:[#allocation9 + $0x98] sm:$0xff]
        %v1317 = vld [vmem:[#allocation9 + $0xa0] sm:$0xff]
        %v1318 = vld [vmem:[#allocation9 + $0xa8] sm:$0xff]
        %v1319 = vld [vmem:[#allocation9 + $0xb0] sm:$0xff]
        %v1320 = vld [vmem:[#allocation9 + $0xb8] sm:$0xff]
        %v1321 = vld [vmem:[#allocation9 + $0xc0] sm:$0xff]
        %v1322 = vld [vmem:[#allocation9 + $0xc8] sm:$0xff]
        %v1323 = vld [vmem:[#allocation9 + $0xd0] sm:$0xff]
        %v1324 = vld [vmem:[#allocation9 + $0xd8] sm:$0xff]
        %v1325 = vld [vmem:[#allocation9 + $0xe0] sm:$0xff]
        %v1326 = vld [vmem:[#allocation9 + $0xe8] sm:$0xff]
        %v1327 = vld [vmem:[#allocation9 + $0xf0] sm:$0xff]
        %v1328 = vld [vmem:[#allocation9 + $0xf8] sm:$0xff]
        %v1329 = vld [vmem:[#allocation2 + $0x1] sm:$0xff]
        %v1330 = vld [vmem:[#allocation2 + $0x9] sm:$0x3]
        %s1331 = scalar_lea.vmem [#allocation9], 256
        %v1332 = vld [vmem:[%s1331] sm:$0xff]
        %v1333 = vld [vmem:[%s1331 + $0x8] sm:$0xff]
        %v1334 = vld [vmem:[%s1331 + $0x10] sm:$0xff]
        %v1335 = vld [vmem:[%s1331 + $0x18] sm:$0xff]
        %v1336 = vld [vmem:[%s1331 + $0x20] sm:$0xff]
        %v1337 = vld [vmem:[%s1331 + $0x28] sm:$0xff]
        %v1338 = vld [vmem:[%s1331 + $0x30] sm:$0xff]
        %v1339 = vld [vmem:[%s1331 + $0x38] sm:$0xff]
        %v1340 = vld [vmem:[%s1331 + $0x40] sm:$0xff]
        %v1341 = vld [vmem:[%s1331 + $0x48] sm:$0xff]
        %v1342 = vld [vmem:[%s1331 + $0x50] sm:$0xff]
        %v1343 = vld [vmem:[%s1331 + $0x58] sm:$0xff]
        %v1344 = vld [vmem:[%s1331 + $0x60] sm:$0xff]
        %v1345 = vld [vmem:[%s1331 + $0x68] sm:$0xff]
        %v1346 = vld [vmem:[%s1331 + $0x70] sm:$0xff]
        %v1347 = vld [vmem:[%s1331 + $0x78] sm:$0xff]
        %v1348 = vld [vmem:[%s1331 + $0x80] sm:$0xff]
        %v1349 = vld [vmem:[%s1331 + $0x88] sm:$0xff]
        %v1350 = vld [vmem:[%s1331 + $0x90] sm:$0xff]
        %v1351 = vld [vmem:[%s1331 + $0x98] sm:$0xff]
        %v1352 = vld [vmem:[%s1331 + $0xa0] sm:$0xff]
        %v1353 = vld [vmem:[%s1331 + $0xa8] sm:$0xff]
        %v1354 = vld [vmem:[%s1331 + $0xb0] sm:$0xff]
        %v1355 = vld [vmem:[%s1331 + $0xb8] sm:$0xff]
        %v1356 = vld [vmem:[%s1331 + $0xc0] sm:$0xff]
        %v1357 = vld [vmem:[%s1331 + $0xc8] sm:$0xff]
        %v1358 = vld [vmem:[%s1331 + $0xd0] sm:$0xff]
        %v1359 = vld [vmem:[%s1331 + $0xd8] sm:$0xff]
        %v1360 = vld [vmem:[%s1331 + $0xe0] sm:$0xff]
        %v1361 = vld [vmem:[%s1331 + $0xe8] sm:$0xff]
        %v1362 = vld [vmem:[%s1331 + $0xf0] sm:$0xff]
        %v1363 = vld [vmem:[%s1331 + $0xf8] sm:$0xff]
        %1364 = vmatprep.subr.mxu0 %v1363
        %1365 = vmatpush1.msra.mxu0 %v1362
        %1366 = vmatprep.subr.mxu0 %v1361
        %1367 = vmatpush1.msra.mxu0 %v1360
        %1368 = vmatprep.subr.mxu0 %v1359
        %1369 = vmatpush1.msra.mxu0 %v1358
        %1370 = vmatprep.subr.mxu0 %v1357
        %1371 = vmatpush1.msra.mxu0 %v1356
        %1372 = vmatprep.subr.mxu0 %v1355
        %1373 = vmatpush1.msra.mxu0 %v1354
        %1374 = vmatprep.subr.mxu0 %v1353
        %1375 = vmatpush1.msra.mxu0 %v1352
        %1376 = vmatprep.subr.mxu0 %v1351
        %1377 = vmatpush1.msra.mxu0 %v1350
        %1378 = vmatprep.subr.mxu0 %v1349
        %1379 = vmatpush1.msra.mxu0 %v1348
        %1380 = vmatprep.subr.mxu0 %v1347
        %1381 = vmatpush1.msra.mxu0 %v1346
        %1382 = vmatprep.subr.mxu0 %v1345
        %1383 = vmatpush1.msra.mxu0 %v1344
        %1384 = vmatprep.subr.mxu0 %v1343
        %1385 = vmatpush1.msra.mxu0 %v1342
        %1386 = vmatprep.subr.mxu0 %v1341
        %1387 = vmatpush1.msra.mxu0 %v1340
        %1388 = vmatprep.subr.mxu0 %v1339
        %1389 = vmatpush1.msra.mxu0 %v1338
        %1390 = vmatprep.subr.mxu0 %v1337
        %1391 = vmatpush1.msra.mxu0 %v1336
        %1392 = vmatprep.subr.mxu0 %v1335
        %1393 = vmatpush1.msra.mxu0 %v1334
        %1394 = vmatprep.subr.mxu0 %v1333
        %1395 = vmatpush1.msra.mxu0 %v1332
        %1396 = vmatprep.subr.mxu0 0.0
        %1397 = vmatpush2.msra.mxu0 0.0
        %1398 = vmatprep.subr.mxu0 0.0
        %1399 = vmatpush2.msra.mxu0 0.0
        %1400 = vmatprep.subr.mxu0 0.0
        %1401 = vmatpush2.msra.mxu0 0.0
        %1402 = vmatprep.subr.mxu0 0.0
        %1403 = vmatpush2.msra.mxu0 0.0
        %1404 = vmatprep.subr.mxu0 0.0
        %1405 = vmatpush2.msra.mxu0 0.0
        %1406 = vmatprep.subr.mxu0 0.0
        %1407 = vmatpush2.msra.mxu0 0.0
        %1408 = vmatprep.subr.mxu0 0.0
        %1409 = vmatpush2.msra.mxu0 0.0
        %1410 = vmatprep.subr.mxu0 0.0
        %1411 = vmatpush2.msra.mxu0 0.0
        %1412 = vmatprep.subr.mxu0 0.0
        %1413 = vmatpush2.msra.mxu0 0.0
        %1414 = vmatprep.subr.mxu0 0.0
        %1415 = vmatpush2.msra.mxu0 0.0
        %1416 = vmatprep.subr.mxu0 0.0
        %1417 = vmatpush2.msra.mxu0 0.0
        %1418 = vmatprep.subr.mxu0 0.0
        %1419 = vmatpush2.msra.mxu0 0.0
        %1420 = vmatprep.subr.mxu0 0.0
        %1421 = vmatpush2.msra.mxu0 0.0
        %1422 = vmatprep.subr.mxu0 0.0
        %1423 = vmatpush2.msra.mxu0 0.0
        %1424 = vmatprep.subr.mxu0 0.0
        %1425 = vmatpush2.msra.mxu0 0.0
        %1426 = vmatprep.subr.mxu0 0.0
        %1427 = vmatpush2.msra.mxu0 0.0
        %1428 = vmatprep.mubr.f32.mxu0 0.0
        %1429 = vmatmul.mubr.f32.gmra.mxu0 %v1329
        %v1430 = vpop.f32.mrf.mxu0
        %v1431 = vadd.f32 0.0, %v1430
        %v1432 = vpop.f32.mrf.mxu0
        %v1433 = vadd.f32 0.0, %v1432
        %1434 = vmatprep.mubr.f32.mxu0 0.0
        %1435 = vmatmul.mubr.f32.gmra.mxu0 %v1330
        %v1436 = vpop.f32.mrf.mxu0
        %v1437 = vadd.f32 0.0, %v1436
        %v1438 = vpop.f32.mrf.mxu0
        %v1439 = vadd.f32 0.0, %v1438
        %1440 = vdwg.mxu0
        %1441 = vmatprep.subr.mxu0 %v1328
        %1442 = vmatpush1.msra.mxu0 %v1327
        %1443 = vmatprep.subr.mxu0 %v1326
        %1444 = vmatpush1.msra.mxu0 %v1325
        %1445 = vmatprep.subr.mxu0 %v1324
        %1446 = vmatpush1.msra.mxu0 %v1323
        %1447 = vmatprep.subr.mxu0 %v1322
        %1448 = vmatpush1.msra.mxu0 %v1321
        %1449 = vmatprep.subr.mxu0 %v1320
        %1450 = vmatpush1.msra.mxu0 %v1319
        %1451 = vmatprep.subr.mxu0 %v1318
        %1452 = vmatpush1.msra.mxu0 %v1317
        %1453 = vmatprep.subr.mxu0 %v1316
        %1454 = vmatpush1.msra.mxu0 %v1315
        %1455 = vmatprep.subr.mxu0 %v1314
        %1456 = vmatpush1.msra.mxu0 %v1313
        %1457 = vmatprep.subr.mxu0 %v1312
        %1458 = vmatpush1.msra.mxu0 %v1311
        %1459 = vmatprep.subr.mxu0 %v1310
        %1460 = vmatpush1.msra.mxu0 %v1309
        %1461 = vmatprep.subr.mxu0 %v1308
        %1462 = vmatpush1.msra.mxu0 %v1307
        %1463 = vmatprep.subr.mxu0 %v1306
        %1464 = vmatpush1.msra.mxu0 %v1305
        %1465 = vmatprep.subr.mxu0 %v1304
        %1466 = vmatpush1.msra.mxu0 %v1303
        %1467 = vmatprep.subr.mxu0 %v1302
        %1468 = vmatpush1.msra.mxu0 %v1301
        %1469 = vmatprep.subr.mxu0 %v1300
        %1470 = vmatpush1.msra.mxu0 %v1299
        %1471 = vmatprep.subr.mxu0 %v1298
        %1472 = vmatpush1.msra.mxu0 %v1297
        %1473 = vmatprep.subr.mxu0 0.0
        %1474 = vmatpush2.msra.mxu0 0.0
        %1475 = vmatprep.subr.mxu0 0.0
        %1476 = vmatpush2.msra.mxu0 0.0
        %1477 = vmatprep.subr.mxu0 0.0
        %1478 = vmatpush2.msra.mxu0 0.0
        %1479 = vmatprep.subr.mxu0 0.0
        %1480 = vmatpush2.msra.mxu0 0.0
        %1481 = vmatprep.subr.mxu0 0.0
        %1482 = vmatpush2.msra.mxu0 0.0
        %1483 = vmatprep.subr.mxu0 0.0
        %1484 = vmatpush2.msra.mxu0 0.0
        %1485 = vmatprep.subr.mxu0 0.0
        %1486 = vmatpush2.msra.mxu0 0.0
        %1487 = vmatprep.subr.mxu0 0.0
        %1488 = vmatpush2.msra.mxu0 0.0
        %1489 = vmatprep.subr.mxu0 0.0
        %1490 = vmatpush2.msra.mxu0 0.0
        %1491 = vmatprep.subr.mxu0 0.0
        %1492 = vmatpush2.msra.mxu0 0.0
        %1493 = vmatprep.subr.mxu0 0.0
        %1494 = vmatpush2.msra.mxu0 0.0
        %1495 = vmatprep.subr.mxu0 0.0
        %1496 = vmatpush2.msra.mxu0 0.0
        %1497 = vmatprep.subr.mxu0 0.0
        %1498 = vmatpush2.msra.mxu0 0.0
        %1499 = vmatprep.subr.mxu0 0.0
        %1500 = vmatpush2.msra.mxu0 0.0
        %1501 = vmatprep.subr.mxu0 0.0
        %1502 = vmatpush2.msra.mxu0 0.0
        %1503 = vmatprep.subr.mxu0 0.0
        %1504 = vmatpush2.msra.mxu0 0.0
        %1505 = vmatprep.mubr.f32.mxu0 0.0
        %1506 = vmatmul.mubr.f32.gmra.mxu0 %v1295
        %v1507 = vpop.f32.mrf.mxu0
        %v1508 = vadd.f32 %v1431, %v1507
        %v1509 = vpop.f32.mrf.mxu0
        %v1510 = vadd.f32 %v1433, %v1509
        %1511 = vmatprep.mubr.f32.mxu0 0.0
        %1512 = vmatmul.mubr.f32.gmra.mxu0 %v1296
        %v1513 = vpop.f32.mrf.mxu0
        %v1514 = vadd.f32 %v1437, %v1513
        %v1515 = vpop.f32.mrf.mxu0
        %v1516 = vadd.f32 %v1439, %v1515
        %1517 = vdwg.mxu0
        %v1518 = vld [vmem:[#allocation2 + $0x2] sm:$0xff]
        %v1519 = vld [vmem:[#allocation2 + $0xa] sm:$0x3]
        %s1520 = scalar_lea.vmem [#allocation9], 512
        %v1521 = vld [vmem:[%s1520] sm:$0xff]
        %v1522 = vld [vmem:[%s1520 + $0x8] sm:$0xff]
        %v1523 = vld [vmem:[%s1520 + $0x10] sm:$0xff]
        %v1524 = vld [vmem:[%s1520 + $0x18] sm:$0xff]
        %v1525 = vld [vmem:[%s1520 + $0x20] sm:$0xff]
        %v1526 = vld [vmem:[%s1520 + $0x28] sm:$0xff]
        %v1527 = vld [vmem:[%s1520 + $0x30] sm:$0xff]
        %v1528 = vld [vmem:[%s1520 + $0x38] sm:$0xff]
        %v1529 = vld [vmem:[%s1520 + $0x40] sm:$0xff]
        %v1530 = vld [vmem:[%s1520 + $0x48] sm:$0xff]
        %v1531 = vld [vmem:[%s1520 + $0x50] sm:$0xff]
        %v1532 = vld [vmem:[%s1520 + $0x58] sm:$0xff]
        %v1533 = vld [vmem:[%s1520 + $0x60] sm:$0xff]
        %v1534 = vld [vmem:[%s1520 + $0x68] sm:$0xff]
        %v1535 = vld [vmem:[%s1520 + $0x70] sm:$0xff]
        %v1536 = vld [vmem:[%s1520 + $0x78] sm:$0xff]
        %v1537 = vld [vmem:[%s1520 + $0x80] sm:$0xff]
        %v1538 = vld [vmem:[%s1520 + $0x88] sm:$0xff]
        %v1539 = vld [vmem:[%s1520 + $0x90] sm:$0xff]
        %v1540 = vld [vmem:[%s1520 + $0x98] sm:$0xff]
        %v1541 = vld [vmem:[%s1520 + $0xa0] sm:$0xff]
        %v1542 = vld [vmem:[%s1520 + $0xa8] sm:$0xff]
        %v1543 = vld [vmem:[%s1520 + $0xb0] sm:$0xff]
        %v1544 = vld [vmem:[%s1520 + $0xb8] sm:$0xff]
        %v1545 = vld [vmem:[%s1520 + $0xc0] sm:$0xff]
        %v1546 = vld [vmem:[%s1520 + $0xc8] sm:$0xff]
        %v1547 = vld [vmem:[%s1520 + $0xd0] sm:$0xff]
        %v1548 = vld [vmem:[%s1520 + $0xd8] sm:$0xff]
        %v1549 = vld [vmem:[%s1520 + $0xe0] sm:$0xff]
        %v1550 = vld [vmem:[%s1520 + $0xe8] sm:$0xff]
        %v1551 = vld [vmem:[%s1520 + $0xf0] sm:$0xff]
        %v1552 = vld [vmem:[%s1520 + $0xf8] sm:$0xff]
        %1553 = vmatprep.subr.mxu0 %v1552
        %1554 = vmatpush1.msra.mxu0 %v1551
        %1555 = vmatprep.subr.mxu0 %v1550
        %1556 = vmatpush1.msra.mxu0 %v1549
        %1557 = vmatprep.subr.mxu0 %v1548
        %1558 = vmatpush1.msra.mxu0 %v1547
        %1559 = vmatprep.subr.mxu0 %v1546
        %1560 = vmatpush1.msra.mxu0 %v1545
        %1561 = vmatprep.subr.mxu0 %v1544
        %1562 = vmatpush1.msra.mxu0 %v1543
        %1563 = vmatprep.subr.mxu0 %v1542
        %1564 = vmatpush1.msra.mxu0 %v1541
        %1565 = vmatprep.subr.mxu0 %v1540
        %1566 = vmatpush1.msra.mxu0 %v1539
        %1567 = vmatprep.subr.mxu0 %v1538
        %1568 = vmatpush1.msra.mxu0 %v1537
        %1569 = vmatprep.subr.mxu0 %v1536
        %1570 = vmatpush1.msra.mxu0 %v1535
        %1571 = vmatprep.subr.mxu0 %v1534
        %1572 = vmatpush1.msra.mxu0 %v1533
        %1573 = vmatprep.subr.mxu0 %v1532
        %1574 = vmatpush1.msra.mxu0 %v1531
        %1575 = vmatprep.subr.mxu0 %v1530
        %1576 = vmatpush1.msra.mxu0 %v1529
        %1577 = vmatprep.subr.mxu0 %v1528
        %1578 = vmatpush1.msra.mxu0 %v1527
        %1579 = vmatprep.subr.mxu0 %v1526
        %1580 = vmatpush1.msra.mxu0 %v1525
        %1581 = vmatprep.subr.mxu0 %v1524
        %1582 = vmatpush1.msra.mxu0 %v1523
        %1583 = vmatprep.subr.mxu0 %v1522
        %1584 = vmatpush1.msra.mxu0 %v1521
        %1585 = vmatprep.subr.mxu0 0.0
        %1586 = vmatpush2.msra.mxu0 0.0
        %1587 = vmatprep.subr.mxu0 0.0
        %1588 = vmatpush2.msra.mxu0 0.0
        %1589 = vmatprep.subr.mxu0 0.0
        %1590 = vmatpush2.msra.mxu0 0.0
        %1591 = vmatprep.subr.mxu0 0.0
        %1592 = vmatpush2.msra.mxu0 0.0
        %1593 = vmatprep.subr.mxu0 0.0
        %1594 = vmatpush2.msra.mxu0 0.0
        %1595 = vmatprep.subr.mxu0 0.0
        %1596 = vmatpush2.msra.mxu0 0.0
        %1597 = vmatprep.subr.mxu0 0.0
        %1598 = vmatpush2.msra.mxu0 0.0
        %1599 = vmatprep.subr.mxu0 0.0
        %1600 = vmatpush2.msra.mxu0 0.0
        %1601 = vmatprep.subr.mxu0 0.0
        %1602 = vmatpush2.msra.mxu0 0.0
        %1603 = vmatprep.subr.mxu0 0.0
        %1604 = vmatpush2.msra.mxu0 0.0
        %1605 = vmatprep.subr.mxu0 0.0
        %1606 = vmatpush2.msra.mxu0 0.0
        %1607 = vmatprep.subr.mxu0 0.0
        %1608 = vmatpush2.msra.mxu0 0.0
        %1609 = vmatprep.subr.mxu0 0.0
        %1610 = vmatpush2.msra.mxu0 0.0
        %1611 = vmatprep.subr.mxu0 0.0
        %1612 = vmatpush2.msra.mxu0 0.0
        %1613 = vmatprep.subr.mxu0 0.0
        %1614 = vmatpush2.msra.mxu0 0.0
        %1615 = vmatprep.subr.mxu0 0.0
        %1616 = vmatpush2.msra.mxu0 0.0
        %1617 = vmatprep.mubr.f32.mxu0 0.0
        %1618 = vmatmul.mubr.f32.gmra.mxu0 %v1518
        %v1619 = vpop.f32.mrf.mxu0
        %v1620 = vadd.f32 0.0, %v1619
        %v1621 = vpop.f32.mrf.mxu0
        %v1622 = vadd.f32 0.0, %v1621
        %1623 = vmatprep.mubr.f32.mxu0 0.0
        %1624 = vmatmul.mubr.f32.gmra.mxu0 %v1519
        %v1625 = vpop.f32.mrf.mxu0
        %v1626 = vadd.f32 0.0, %v1625
        %v1627 = vpop.f32.mrf.mxu0
        %v1628 = vadd.f32 0.0, %v1627
        %1629 = vdwg.mxu0
        %v1630 = vadd.f32 %v1508, %v1620
        %v1631 = vadd.f32 %v1510, %v1622
        %v1632 = vadd.f32 %v1514, %v1626
        %v1633 = vadd.f32 %v1516, %v1628
        %v1634 = vld [vmem:[#allocation2 + $0x3] sm:$0xff]
        %v1635 = vld [vmem:[#allocation2 + $0xb] sm:$0x3]
        %s1636 = scalar_lea.vmem [#allocation9], 768
        %v1637 = vld [vmem:[%s1636] sm:$0xff]
        %v1638 = vld [vmem:[%s1636 + $0x8] sm:$0xff]
        %v1639 = vld [vmem:[%s1636 + $0x10] sm:$0xff]
        %v1640 = vld [vmem:[%s1636 + $0x18] sm:$0xff]
        %v1641 = vld [vmem:[%s1636 + $0x20] sm:$0xff]
        %v1642 = vld [vmem:[%s1636 + $0x28] sm:$0xff]
        %v1643 = vld [vmem:[%s1636 + $0x30] sm:$0xff]
        %v1644 = vld [vmem:[%s1636 + $0x38] sm:$0xff]
        %v1645 = vld [vmem:[%s1636 + $0x40] sm:$0xff]
        %v1646 = vld [vmem:[%s1636 + $0x48] sm:$0xff]
        %v1647 = vld [vmem:[%s1636 + $0x50] sm:$0xff]
        %v1648 = vld [vmem:[%s1636 + $0x58] sm:$0xff]
        %v1649 = vld [vmem:[%s1636 + $0x60] sm:$0xff]
        %v1650 = vld [vmem:[%s1636 + $0x68] sm:$0xff]
        %v1651 = vld [vmem:[%s1636 + $0x70] sm:$0xff]
        %v1652 = vld [vmem:[%s1636 + $0x78] sm:$0xff]
        %v1653 = vld [vmem:[%s1636 + $0x80] sm:$0xff]
        %v1654 = vld [vmem:[%s1636 + $0x88] sm:$0xff]
        %v1655 = vld [vmem:[%s1636 + $0x90] sm:$0xff]
        %v1656 = vld [vmem:[%s1636 + $0x98] sm:$0xff]
        %v1657 = vld [vmem:[%s1636 + $0xa0] sm:$0xff]
        %v1658 = vld [vmem:[%s1636 + $0xa8] sm:$0xff]
        %v1659 = vld [vmem:[%s1636 + $0xb0] sm:$0xff]
        %v1660 = vld [vmem:[%s1636 + $0xb8] sm:$0xff]
        %v1661 = vld [vmem:[%s1636 + $0xc0] sm:$0xff]
        %v1662 = vld [vmem:[%s1636 + $0xc8] sm:$0xff]
        %v1663 = vld [vmem:[%s1636 + $0xd0] sm:$0xff]
        %v1664 = vld [vmem:[%s1636 + $0xd8] sm:$0xff]
        %v1665 = vld [vmem:[%s1636 + $0xe0] sm:$0xff]
        %v1666 = vld [vmem:[%s1636 + $0xe8] sm:$0xff]
        %v1667 = vld [vmem:[%s1636 + $0xf0] sm:$0xff]
        %v1668 = vld [vmem:[%s1636 + $0xf8] sm:$0xff]
        %1669 = vmatprep.subr.mxu0 %v1668
        %1670 = vmatpush1.msra.mxu0 %v1667
        %1671 = vmatprep.subr.mxu0 %v1666
        %1672 = vmatpush1.msra.mxu0 %v1665
        %1673 = vmatprep.subr.mxu0 %v1664
        %1674 = vmatpush1.msra.mxu0 %v1663
        %1675 = vmatprep.subr.mxu0 %v1662
        %1676 = vmatpush1.msra.mxu0 %v1661
        %1677 = vmatprep.subr.mxu0 %v1660
        %1678 = vmatpush1.msra.mxu0 %v1659
        %1679 = vmatprep.subr.mxu0 %v1658
        %1680 = vmatpush1.msra.mxu0 %v1657
        %1681 = vmatprep.subr.mxu0 %v1656
        %1682 = vmatpush1.msra.mxu0 %v1655
        %1683 = vmatprep.subr.mxu0 %v1654
        %1684 = vmatpush1.msra.mxu0 %v1653
        %1685 = vmatprep.subr.mxu0 %v1652
        %1686 = vmatpush1.msra.mxu0 %v1651
        %1687 = vmatprep.subr.mxu0 %v1650
        %1688 = vmatpush1.msra.mxu0 %v1649
        %1689 = vmatprep.subr.mxu0 %v1648
        %1690 = vmatpush1.msra.mxu0 %v1647
        %1691 = vmatprep.subr.mxu0 %v1646
        %1692 = vmatpush1.msra.mxu0 %v1645
        %1693 = vmatprep.subr.mxu0 %v1644
        %1694 = vmatpush1.msra.mxu0 %v1643
        %1695 = vmatprep.subr.mxu0 %v1642
        %1696 = vmatpush1.msra.mxu0 %v1641
        %1697 = vmatprep.subr.mxu0 %v1640
        %1698 = vmatpush1.msra.mxu0 %v1639
        %1699 = vmatprep.subr.mxu0 %v1638
        %1700 = vmatpush1.msra.mxu0 %v1637
        %1701 = vmatprep.subr.mxu0 0.0
        %1702 = vmatpush2.msra.mxu0 0.0
        %1703 = vmatprep.subr.mxu0 0.0
        %1704 = vmatpush2.msra.mxu0 0.0
        %1705 = vmatprep.subr.mxu0 0.0
        %1706 = vmatpush2.msra.mxu0 0.0
        %1707 = vmatprep.subr.mxu0 0.0
        %1708 = vmatpush2.msra.mxu0 0.0
        %1709 = vmatprep.subr.mxu0 0.0
        %1710 = vmatpush2.msra.mxu0 0.0
        %1711 = vmatprep.subr.mxu0 0.0
        %1712 = vmatpush2.msra.mxu0 0.0
        %1713 = vmatprep.subr.mxu0 0.0
        %1714 = vmatpush2.msra.mxu0 0.0
        %1715 = vmatprep.subr.mxu0 0.0
        %1716 = vmatpush2.msra.mxu0 0.0
        %1717 = vmatprep.subr.mxu0 0.0
        %1718 = vmatpush2.msra.mxu0 0.0
        %1719 = vmatprep.subr.mxu0 0.0
        %1720 = vmatpush2.msra.mxu0 0.0
        %1721 = vmatprep.subr.mxu0 0.0
        %1722 = vmatpush2.msra.mxu0 0.0
        %1723 = vmatprep.subr.mxu0 0.0
        %1724 = vmatpush2.msra.mxu0 0.0
        %1725 = vmatprep.subr.mxu0 0.0
        %1726 = vmatpush2.msra.mxu0 0.0
        %1727 = vmatprep.subr.mxu0 0.0
        %1728 = vmatpush2.msra.mxu0 0.0
        %1729 = vmatprep.subr.mxu0 0.0
        %1730 = vmatpush2.msra.mxu0 0.0
        %1731 = vmatprep.subr.mxu0 0.0
        %1732 = vmatpush2.msra.mxu0 0.0
        %1733 = vmatprep.mubr.f32.mxu0 0.0
        %1734 = vmatmul.mubr.f32.gmra.mxu0 %v1634
        %v1735 = vpop.f32.mrf.mxu0
        %v1736 = vadd.f32 0.0, %v1735
        %v1737 = vpop.f32.mrf.mxu0
        %v1738 = vadd.f32 0.0, %v1737
        %1739 = vmatprep.mubr.f32.mxu0 0.0
        %1740 = vmatmul.mubr.f32.gmra.mxu0 %v1635
        %v1741 = vpop.f32.mrf.mxu0
        %v1742 = vadd.f32 0.0, %v1741
        %v1743 = vpop.f32.mrf.mxu0
        %v1744 = vadd.f32 0.0, %v1743
        %1745 = vdwg.mxu0
        %v1746 = vadd.f32 %v1630, %v1736
        %v1747 = vadd.f32 %v1631, %v1738
        %v1748 = vadd.f32 %v1632, %v1742
        %v1749 = vadd.f32 %v1633, %v1744
        %v1750 = vld [vmem:[#allocation2 + $0x4] sm:$0xff]
        %v1751 = vld [vmem:[#allocation2 + $0xc] sm:$0x3]
        %s1752 = scalar_lea.vmem [#allocation9], 1024
        %v1753 = vld [vmem:[%s1752] sm:$0xff]
        %v1754 = vld [vmem:[%s1752 + $0x8] sm:$0xff]
        %v1755 = vld [vmem:[%s1752 + $0x10] sm:$0xff]
        %v1756 = vld [vmem:[%s1752 + $0x18] sm:$0xff]
        %v1757 = vld [vmem:[%s1752 + $0x20] sm:$0xff]
        %v1758 = vld [vmem:[%s1752 + $0x28] sm:$0xff]
        %v1759 = vld [vmem:[%s1752 + $0x30] sm:$0xff]
        %v1760 = vld [vmem:[%s1752 + $0x38] sm:$0xff]
        %v1761 = vld [vmem:[%s1752 + $0x40] sm:$0xff]
        %v1762 = vld [vmem:[%s1752 + $0x48] sm:$0xff]
        %v1763 = vld [vmem:[%s1752 + $0x50] sm:$0xff]
        %v1764 = vld [vmem:[%s1752 + $0x58] sm:$0xff]
        %v1765 = vld [vmem:[%s1752 + $0x60] sm:$0xff]
        %v1766 = vld [vmem:[%s1752 + $0x68] sm:$0xff]
        %v1767 = vld [vmem:[%s1752 + $0x70] sm:$0xff]
        %v1768 = vld [vmem:[%s1752 + $0x78] sm:$0xff]
        %v1769 = vld [vmem:[%s1752 + $0x80] sm:$0xff]
        %v1770 = vld [vmem:[%s1752 + $0x88] sm:$0xff]
        %v1771 = vld [vmem:[%s1752 + $0x90] sm:$0xff]
        %v1772 = vld [vmem:[%s1752 + $0x98] sm:$0xff]
        %v1773 = vld [vmem:[%s1752 + $0xa0] sm:$0xff]
        %v1774 = vld [vmem:[%s1752 + $0xa8] sm:$0xff]
        %v1775 = vld [vmem:[%s1752 + $0xb0] sm:$0xff]
        %v1776 = vld [vmem:[%s1752 + $0xb8] sm:$0xff]
        %v1777 = vld [vmem:[%s1752 + $0xc0] sm:$0xff]
        %v1778 = vld [vmem:[%s1752 + $0xc8] sm:$0xff]
        %v1779 = vld [vmem:[%s1752 + $0xd0] sm:$0xff]
        %v1780 = vld [vmem:[%s1752 + $0xd8] sm:$0xff]
        %v1781 = vld [vmem:[%s1752 + $0xe0] sm:$0xff]
        %v1782 = vld [vmem:[%s1752 + $0xe8] sm:$0xff]
        %v1783 = vld [vmem:[%s1752 + $0xf0] sm:$0xff]
        %v1784 = vld [vmem:[%s1752 + $0xf8] sm:$0xff]
        %1785 = vmatprep.subr.mxu0 %v1784
        %1786 = vmatpush1.msra.mxu0 %v1783
        %1787 = vmatprep.subr.mxu0 %v1782
        %1788 = vmatpush1.msra.mxu0 %v1781
        %1789 = vmatprep.subr.mxu0 %v1780
        %1790 = vmatpush1.msra.mxu0 %v1779
        %1791 = vmatprep.subr.mxu0 %v1778
        %1792 = vmatpush1.msra.mxu0 %v1777
        %1793 = vmatprep.subr.mxu0 %v1776
        %1794 = vmatpush1.msra.mxu0 %v1775
        %1795 = vmatprep.subr.mxu0 %v1774
        %1796 = vmatpush1.msra.mxu0 %v1773
        %1797 = vmatprep.subr.mxu0 %v1772
        %1798 = vmatpush1.msra.mxu0 %v1771
        %1799 = vmatprep.subr.mxu0 %v1770
        %1800 = vmatpush1.msra.mxu0 %v1769
        %1801 = vmatprep.subr.mxu0 %v1768
        %1802 = vmatpush1.msra.mxu0 %v1767
        %1803 = vmatprep.subr.mxu0 %v1766
        %1804 = vmatpush1.msra.mxu0 %v1765
        %1805 = vmatprep.subr.mxu0 %v1764
        %1806 = vmatpush1.msra.mxu0 %v1763
        %1807 = vmatprep.subr.mxu0 %v1762
        %1808 = vmatpush1.msra.mxu0 %v1761
        %1809 = vmatprep.subr.mxu0 %v1760
        %1810 = vmatpush1.msra.mxu0 %v1759
        %1811 = vmatprep.subr.mxu0 %v1758
        %1812 = vmatpush1.msra.mxu0 %v1757
        %1813 = vmatprep.subr.mxu0 %v1756
        %1814 = vmatpush1.msra.mxu0 %v1755
        %1815 = vmatprep.subr.mxu0 %v1754
        %1816 = vmatpush1.msra.mxu0 %v1753
        %1817 = vmatprep.subr.mxu0 0.0
        %1818 = vmatpush2.msra.mxu0 0.0
        %1819 = vmatprep.subr.mxu0 0.0
        %1820 = vmatpush2.msra.mxu0 0.0
        %1821 = vmatprep.subr.mxu0 0.0
        %1822 = vmatpush2.msra.mxu0 0.0
        %1823 = vmatprep.subr.mxu0 0.0
        %1824 = vmatpush2.msra.mxu0 0.0
        %1825 = vmatprep.subr.mxu0 0.0
        %1826 = vmatpush2.msra.mxu0 0.0
        %1827 = vmatprep.subr.mxu0 0.0
        %1828 = vmatpush2.msra.mxu0 0.0
        %1829 = vmatprep.subr.mxu0 0.0
        %1830 = vmatpush2.msra.mxu0 0.0
        %1831 = vmatprep.subr.mxu0 0.0
        %1832 = vmatpush2.msra.mxu0 0.0
        %1833 = vmatprep.subr.mxu0 0.0
        %1834 = vmatpush2.msra.mxu0 0.0
        %1835 = vmatprep.subr.mxu0 0.0
        %1836 = vmatpush2.msra.mxu0 0.0
        %1837 = vmatprep.subr.mxu0 0.0
        %1838 = vmatpush2.msra.mxu0 0.0
        %1839 = vmatprep.subr.mxu0 0.0
        %1840 = vmatpush2.msra.mxu0 0.0
        %1841 = vmatprep.subr.mxu0 0.0
        %1842 = vmatpush2.msra.mxu0 0.0
        %1843 = vmatprep.subr.mxu0 0.0
        %1844 = vmatpush2.msra.mxu0 0.0
        %1845 = vmatprep.subr.mxu0 0.0
        %1846 = vmatpush2.msra.mxu0 0.0
        %1847 = vmatprep.subr.mxu0 0.0
        %1848 = vmatpush2.msra.mxu0 0.0
        %1849 = vmatprep.mubr.f32.mxu0 0.0
        %1850 = vmatmul.mubr.f32.gmra.mxu0 %v1750
        %v1851 = vpop.f32.mrf.mxu0
        %v1852 = vadd.f32 0.0, %v1851
        %v1853 = vpop.f32.mrf.mxu0
        %v1854 = vadd.f32 0.0, %v1853
        %1855 = vmatprep.mubr.f32.mxu0 0.0
        %1856 = vmatmul.mubr.f32.gmra.mxu0 %v1751
        %v1857 = vpop.f32.mrf.mxu0
        %v1858 = vadd.f32 0.0, %v1857
        %v1859 = vpop.f32.mrf.mxu0
        %v1860 = vadd.f32 0.0, %v1859
        %1861 = vdwg.mxu0
        %v1862 = vadd.f32 %v1746, %v1852
        %v1863 = vadd.f32 %v1747, %v1854
        %v1864 = vadd.f32 %v1748, %v1858
        %v1865 = vadd.f32 %v1749, %v1860
        %v1866 = vld [vmem:[%s4] sm:$0x3]
        %v1868 = vlaneseq
        %v1869 = vshrl.u32 %v1868, 7
        %v1870 = vsub.s32 0, %v1869
        %v1871 = vrot.slane %v1866, %v1870
        %v1872 = vlaneseq
        %v1873 = vshrl.u32 %v1872, 7
        %v1874 = vsub.s32 1, %v1873
        %v1875 = vrot.slane %v1866, %v1874
        %v1878 = vadd.f32 %v1862, %v1871
        %v1879 = vadd.f32 %v1863, %v1875
        %v1880 = vadd.f32 %v1864, %v1871
        %v1881 = vadd.f32 %v1865, %v1875
        %v1882 = vmax.f32 %v1878, 0.0
        %v1883 = vmax.f32 %v1879, 0.0
        %v1884 = vmax.f32 %v1880, 0.0
        %v1885 = vmax.f32 %v1881, 0.0
        %v1886 = vmax.f32 %v1882, %v1883
        %v1887 = vmax.f32 %v1884, %v1885
        %vm1888 = vcmask 80896
        %v1889 = vsel %vm1888, %v1114, 0
        %vm1891 = vcmask 1041408
        %v1893 = vsel %vm1891, %v1887, 0
        %1895 = vmatprep.subr.mxu0 0.0
        %1896 = vmatpush1.msra.mxu0 0.0
        %1897 = vmatprep.subr.mxu0 0.0
        %1898 = vmatpush1.msra.mxu0 0.0
        %1899 = vmatprep.subr.mxu0 0.0
        %1900 = vmatpush1.msra.mxu0 0.0
        %1901 = vmatprep.subr.mxu0 0.0
        %1902 = vmatpush1.msra.mxu0 0.0
        %1903 = vmatprep.subr.mxu0 0.0
        %1904 = vmatpush1.msra.mxu0 0.0
        %1905 = vmatprep.subr.mxu0 0.0
        %1906 = vmatpush1.msra.mxu0 0.0
        %1907 = vmatprep.subr.mxu0 0.0
        %1908 = vmatpush1.msra.mxu0 0.0
        %1909 = vmatprep.subr.mxu0 0.0
        %1910 = vmatpush1.msra.mxu0 0.0
        %1911 = vmatprep.subr.mxu0 0.0
        %1912 = vmatpush1.msra.mxu0 0.0
        %1913 = vmatprep.subr.mxu0 0.0
        %1914 = vmatpush1.msra.mxu0 0.0
        %1915 = vmatprep.subr.mxu0 0.0
        %1916 = vmatpush1.msra.mxu0 0.0
        %1917 = vmatprep.subr.mxu0 0.0
        %1918 = vmatpush1.msra.mxu0 0.0
        %1919 = vmatprep.subr.mxu0 0.0
        %1920 = vmatpush1.msra.mxu0 0.0
        %1921 = vmatprep.subr.mxu0 0.0
        %1922 = vmatpush1.msra.mxu0 0.0
        %1923 = vmatprep.subr.mxu0 0.0
        %1924 = vmatpush1.msra.mxu0 %v1893
        %1925 = vmatprep.subr.mxu0 0.0
        %1926 = vmatpush1.msra.mxu0 %v1886
        %1927 = vmatprep.subr.mxu0 0.0
        %1928 = vmatpush2.msra.mxu0 0.0
        %1929 = vmatprep.subr.mxu0 0.0
        %1930 = vmatpush2.msra.mxu0 0.0
        %1931 = vmatprep.subr.mxu0 0.0
        %1932 = vmatpush2.msra.mxu0 0.0
        %1933 = vmatprep.subr.mxu0 0.0
        %1934 = vmatpush2.msra.mxu0 0.0
        %1935 = vmatprep.subr.mxu0 0.0
        %1936 = vmatpush2.msra.mxu0 0.0
        %1937 = vmatprep.subr.mxu0 0.0
        %1938 = vmatpush2.msra.mxu0 0.0
        %1939 = vmatprep.subr.mxu0 0.0
        %1940 = vmatpush2.msra.mxu0 0.0
        %1941 = vmatprep.subr.mxu0 0.0
        %1942 = vmatpush2.msra.mxu0 0.0
        %1943 = vmatprep.subr.mxu0 0.0
        %1944 = vmatpush2.msra.mxu0 0.0
        %1945 = vmatprep.subr.mxu0 0.0
        %1946 = vmatpush2.msra.mxu0 0.0
        %1947 = vmatprep.subr.mxu0 0.0
        %1948 = vmatpush2.msra.mxu0 0.0
        %1949 = vmatprep.subr.mxu0 0.0
        %1950 = vmatpush2.msra.mxu0 0.0
        %1951 = vmatprep.subr.mxu0 0.0
        %1952 = vmatpush2.msra.mxu0 0.0
        %1953 = vmatprep.subr.mxu0 0.0
        %1954 = vmatpush2.msra.mxu0 0.0
        %1955 = vmatprep.subr.mxu0 0.0
        %1956 = vmatpush2.msra.mxu0 0.0
        %1957 = vmatprep.subr.mxu0 0.0
        %1958 = vmatpush2.msra.mxu0 0.0
        %1959 = vmatprep.mubr.f32.mxu0 0.0
        %1960 = vmatmul.mubr.f32.gmra.mxu0 %v1889
        %v1961 = vpop.f32.mrf.mxu0
        %v1962 = vadd.f32 0.0, %v1961
        %v1963 = vpop.f32.mrf.mxu0
        %1964 = vdwg.mxu0
        %v1965 = vsel %vm1888, %v1122, 0
        %1967 = vmatprep.subr.mxu0 0.0
        %1968 = vmatpush1.msra.mxu0 0.0
        %1969 = vmatprep.subr.mxu0 0.0
        %1970 = vmatpush1.msra.mxu0 0.0
        %1971 = vmatprep.subr.mxu0 0.0
        %1972 = vmatpush1.msra.mxu0 0.0
        %1973 = vmatprep.subr.mxu0 0.0
        %1974 = vmatpush1.msra.mxu0 0.0
        %1975 = vmatprep.subr.mxu0 0.0
        %1976 = vmatpush1.msra.mxu0 0.0
        %1977 = vmatprep.subr.mxu0 0.0
        %1978 = vmatpush1.msra.mxu0 0.0
        %1979 = vmatprep.subr.mxu0 0.0
        %1980 = vmatpush1.msra.mxu0 0.0
        %1981 = vmatprep.subr.mxu0 0.0
        %1982 = vmatpush1.msra.mxu0 0.0
        %1983 = vmatprep.subr.mxu0 0.0
        %1984 = vmatpush1.msra.mxu0 0.0
        %1985 = vmatprep.subr.mxu0 0.0
        %1986 = vmatpush1.msra.mxu0 0.0
        %1987 = vmatprep.subr.mxu0 0.0
        %1988 = vmatpush1.msra.mxu0 0.0
        %1989 = vmatprep.subr.mxu0 0.0
        %1990 = vmatpush1.msra.mxu0 0.0
        %1991 = vmatprep.subr.mxu0 0.0
        %1992 = vmatpush1.msra.mxu0 0.0
        %1993 = vmatprep.subr.mxu0 0.0
        %1994 = vmatpush1.msra.mxu0 0.0
        %1995 = vmatprep.subr.mxu0 0.0
        %1996 = vmatpush1.msra.mxu0 %v1893
        %1997 = vmatprep.subr.mxu0 0.0
        %1998 = vmatpush1.msra.mxu0 %v1886
        %1999 = vmatprep.subr.mxu0 0.0
        %2000 = vmatpush2.msra.mxu0 0.0
        %2001 = vmatprep.subr.mxu0 0.0
        %2002 = vmatpush2.msra.mxu0 0.0
        %2003 = vmatprep.subr.mxu0 0.0
        %2004 = vmatpush2.msra.mxu0 0.0
        %2005 = vmatprep.subr.mxu0 0.0
        %2006 = vmatpush2.msra.mxu0 0.0
        %2007 = vmatprep.subr.mxu0 0.0
        %2008 = vmatpush2.msra.mxu0 0.0
        %2009 = vmatprep.subr.mxu0 0.0
        %2010 = vmatpush2.msra.mxu0 0.0
        %2011 = vmatprep.subr.mxu0 0.0
        %2012 = vmatpush2.msra.mxu0 0.0
        %2013 = vmatprep.subr.mxu0 0.0
        %2014 = vmatpush2.msra.mxu0 0.0
        %2015 = vmatprep.subr.mxu0 0.0
        %2016 = vmatpush2.msra.mxu0 0.0
        %2017 = vmatprep.subr.mxu0 0.0
        %2018 = vmatpush2.msra.mxu0 0.0
        %2019 = vmatprep.subr.mxu0 0.0
        %2020 = vmatpush2.msra.mxu0 0.0
        %2021 = vmatprep.subr.mxu0 0.0
        %2022 = vmatpush2.msra.mxu0 0.0
        %2023 = vmatprep.subr.mxu0 0.0
        %2024 = vmatpush2.msra.mxu0 0.0
        %2025 = vmatprep.subr.mxu0 0.0
        %2026 = vmatpush2.msra.mxu0 0.0
        %2027 = vmatprep.subr.mxu0 0.0
        %2028 = vmatpush2.msra.mxu0 0.0
        %2029 = vmatprep.subr.mxu0 0.0
        %2030 = vmatpush2.msra.mxu0 0.0
        %2031 = vmatprep.mubr.f32.mxu0 0.0
        %2032 = vmatmul.mubr.f32.gmra.mxu0 %v1965
        %v2033 = vpop.f32.mrf.mxu0
        %v2034 = vadd.f32 0.0, %v2033
        %v2035 = vpop.f32.mrf.mxu0
        %2036 = vdwg.mxu0
        %v2037 = vmax.f32 %v1962, %v2034
        %2038 = vst [vmem:[#allocation3] sm:$0x1f] %v2037
        %v2039 = vld [vmem:[#allocation3] sm:$0x1]
        %v2040 = vld [vmem:[#allocation10] sm:$0xff]
        %v2041 = vld [vmem:[#allocation10 + $0x8] sm:$0xff]
        %v2042 = vld [vmem:[#allocation10 + $0x10] sm:$0xff]
        %v2043 = vld [vmem:[#allocation10 + $0x18] sm:$0xff]
        %v2044 = vld [vmem:[#allocation10 + $0x20] sm:$0xff]
        %v2045 = vld [vmem:[#allocation10 + $0x28] sm:$0xff]
        %v2046 = vld [vmem:[#allocation10 + $0x30] sm:$0xff]
        %v2047 = vld [vmem:[#allocation10 + $0x38] sm:$0xff]
        %v2048 = vld [vmem:[#allocation10 + $0x40] sm:$0xff]
        %v2049 = vld [vmem:[#allocation10 + $0x48] sm:$0xff]
        %v2050 = vld [vmem:[#allocation10 + $0x50] sm:$0xff]
        %v2051 = vld [vmem:[#allocation10 + $0x58] sm:$0xff]
        %v2052 = vld [vmem:[#allocation10 + $0x60] sm:$0xff]
        %v2053 = vld [vmem:[#allocation10 + $0x68] sm:$0xff]
        %v2054 = vld [vmem:[#allocation10 + $0x70] sm:$0xff]
        %v2055 = vld [vmem:[#allocation10 + $0x78] sm:$0xff]
        %v2056 = vld [vmem:[#allocation3 + $0x1] sm:$0x1]
        %s2057 = scalar_lea.vmem [#allocation10], 128
        %v2058 = vld [vmem:[%s2057] sm:$0xff]
        %v2059 = vld [vmem:[%s2057 + $0x8] sm:$0xff]
        %v2060 = vld [vmem:[%s2057 + $0x10] sm:$0xff]
        %v2061 = vld [vmem:[%s2057 + $0x18] sm:$0xff]
        %v2062 = vld [vmem:[%s2057 + $0x20] sm:$0xff]
        %v2063 = vld [vmem:[%s2057 + $0x28] sm:$0xff]
        %v2064 = vld [vmem:[%s2057 + $0x30] sm:$0xff]
        %v2065 = vld [vmem:[%s2057 + $0x38] sm:$0xff]
        %v2066 = vld [vmem:[%s2057 + $0x40] sm:$0xff]
        %v2067 = vld [vmem:[%s2057 + $0x48] sm:$0xff]
        %v2068 = vld [vmem:[%s2057 + $0x50] sm:$0xff]
        %v2069 = vld [vmem:[%s2057 + $0x58] sm:$0xff]
        %v2070 = vld [vmem:[%s2057 + $0x60] sm:$0xff]
        %v2071 = vld [vmem:[%s2057 + $0x68] sm:$0xff]
        %v2072 = vld [vmem:[%s2057 + $0x70] sm:$0xff]
        %v2073 = vld [vmem:[%s2057 + $0x78] sm:$0xff]
        %2074 = vmatprep.subr.mxu0 0.0
        %2075 = vmatpush1.msra.mxu0 %v2073
        %2076 = vmatprep.subr.mxu0 0.0
        %2077 = vmatpush1.msra.mxu0 %v2072
        %2078 = vmatprep.subr.mxu0 0.0
        %2079 = vmatpush1.msra.mxu0 %v2071
        %2080 = vmatprep.subr.mxu0 0.0
        %2081 = vmatpush1.msra.mxu0 %v2070
        %2082 = vmatprep.subr.mxu0 0.0
        %2083 = vmatpush1.msra.mxu0 %v2069
        %2084 = vmatprep.subr.mxu0 0.0
        %2085 = vmatpush1.msra.mxu0 %v2068
        %2086 = vmatprep.subr.mxu0 0.0
        %2087 = vmatpush1.msra.mxu0 %v2067
        %2088 = vmatprep.subr.mxu0 0.0
        %2089 = vmatpush1.msra.mxu0 %v2066
        %2090 = vmatprep.subr.mxu0 0.0
        %2091 = vmatpush1.msra.mxu0 %v2065
        %2092 = vmatprep.subr.mxu0 0.0
        %2093 = vmatpush1.msra.mxu0 %v2064
        %2094 = vmatprep.subr.mxu0 0.0
        %2095 = vmatpush1.msra.mxu0 %v2063
        %2096 = vmatprep.subr.mxu0 0.0
        %2097 = vmatpush1.msra.mxu0 %v2062
        %2098 = vmatprep.subr.mxu0 0.0
        %2099 = vmatpush1.msra.mxu0 %v2061
        %2100 = vmatprep.subr.mxu0 0.0
        %2101 = vmatpush1.msra.mxu0 %v2060
        %2102 = vmatprep.subr.mxu0 0.0
        %2103 = vmatpush1.msra.mxu0 %v2059
        %2104 = vmatprep.subr.mxu0 0.0
        %2105 = vmatpush1.msra.mxu0 %v2058
        %2106 = vmatprep.subr.mxu0 0.0
        %2107 = vmatpush2.msra.mxu0 0.0
        %2108 = vmatprep.subr.mxu0 0.0
        %2109 = vmatpush2.msra.mxu0 0.0
        %2110 = vmatprep.subr.mxu0 0.0
        %2111 = vmatpush2.msra.mxu0 0.0
        %2112 = vmatprep.subr.mxu0 0.0
        %2113 = vmatpush2.msra.mxu0 0.0
        %2114 = vmatprep.subr.mxu0 0.0
        %2115 = vmatpush2.msra.mxu0 0.0
        %2116 = vmatprep.subr.mxu0 0.0
        %2117 = vmatpush2.msra.mxu0 0.0
        %2118 = vmatprep.subr.mxu0 0.0
        %2119 = vmatpush2.msra.mxu0 0.0
        %2120 = vmatprep.subr.mxu0 0.0
        %2121 = vmatpush2.msra.mxu0 0.0
        %2122 = vmatprep.subr.mxu0 0.0
        %2123 = vmatpush2.msra.mxu0 0.0
        %2124 = vmatprep.subr.mxu0 0.0
        %2125 = vmatpush2.msra.mxu0 0.0
        %2126 = vmatprep.subr.mxu0 0.0
        %2127 = vmatpush2.msra.mxu0 0.0
        %2128 = vmatprep.subr.mxu0 0.0
        %2129 = vmatpush2.msra.mxu0 0.0
        %2130 = vmatprep.subr.mxu0 0.0
        %2131 = vmatpush2.msra.mxu0 0.0
        %2132 = vmatprep.subr.mxu0 0.0
        %2133 = vmatpush2.msra.mxu0 0.0
        %2134 = vmatprep.subr.mxu0 0.0
        %2135 = vmatpush2.msra.mxu0 0.0
        %2136 = vmatprep.subr.mxu0 0.0
        %2137 = vmatpush2.msra.mxu0 0.0
        %2138 = vmatprep.mubr.f32.mxu0 0.0
        %2139 = vmatmul.mubr.f32.gmra.mxu0 %v2056
        %v2140 = vpop.f32.mrf.mxu0
        %v2141 = vadd.f32 0.0, %v2140
        %v2142 = vpop.f32.mrf.mxu0
        %2143 = vdwg.mxu0
        %2144 = vmatprep.subr.mxu0 0.0
        %2145 = vmatpush1.msra.mxu0 %v2055
        %2146 = vmatprep.subr.mxu0 0.0
        %2147 = vmatpush1.msra.mxu0 %v2054
        %2148 = vmatprep.subr.mxu0 0.0
        %2149 = vmatpush1.msra.mxu0 %v2053
        %2150 = vmatprep.subr.mxu0 0.0
        %2151 = vmatpush1.msra.mxu0 %v2052
        %2152 = vmatprep.subr.mxu0 0.0
        %2153 = vmatpush1.msra.mxu0 %v2051
        %2154 = vmatprep.subr.mxu0 0.0
        %2155 = vmatpush1.msra.mxu0 %v2050
        %2156 = vmatprep.subr.mxu0 0.0
        %2157 = vmatpush1.msra.mxu0 %v2049
        %2158 = vmatprep.subr.mxu0 0.0
        %2159 = vmatpush1.msra.mxu0 %v2048
        %2160 = vmatprep.subr.mxu0 0.0
        %2161 = vmatpush1.msra.mxu0 %v2047
        %2162 = vmatprep.subr.mxu0 0.0
        %2163 = vmatpush1.msra.mxu0 %v2046
        %2164 = vmatprep.subr.mxu0 0.0
        %2165 = vmatpush1.msra.mxu0 %v2045
        %2166 = vmatprep.subr.mxu0 0.0
        %2167 = vmatpush1.msra.mxu0 %v2044
        %2168 = vmatprep.subr.mxu0 0.0
        %2169 = vmatpush1.msra.mxu0 %v2043
        %2170 = vmatprep.subr.mxu0 0.0
        %2171 = vmatpush1.msra.mxu0 %v2042
        %2172 = vmatprep.subr.mxu0 0.0
        %2173 = vmatpush1.msra.mxu0 %v2041
        %2174 = vmatprep.subr.mxu0 0.0
        %2175 = vmatpush1.msra.mxu0 %v2040
        %2176 = vmatprep.subr.mxu0 0.0
        %2177 = vmatpush2.msra.mxu0 0.0
        %2178 = vmatprep.subr.mxu0 0.0
        %2179 = vmatpush2.msra.mxu0 0.0
        %2180 = vmatprep.subr.mxu0 0.0
        %2181 = vmatpush2.msra.mxu0 0.0
        %2182 = vmatprep.subr.mxu0 0.0
        %2183 = vmatpush2.msra.mxu0 0.0
        %2184 = vmatprep.subr.mxu0 0.0
        %2185 = vmatpush2.msra.mxu0 0.0
        %2186 = vmatprep.subr.mxu0 0.0
        %2187 = vmatpush2.msra.mxu0 0.0
        %2188 = vmatprep.subr.mxu0 0.0
        %2189 = vmatpush2.msra.mxu0 0.0
        %2190 = vmatprep.subr.mxu0 0.0
        %2191 = vmatpush2.msra.mxu0 0.0
        %2192 = vmatprep.subr.mxu0 0.0
        %2193 = vmatpush2.msra.mxu0 0.0
        %2194 = vmatprep.subr.mxu0 0.0
        %2195 = vmatpush2.msra.mxu0 0.0
        %2196 = vmatprep.subr.mxu0 0.0
        %2197 = vmatpush2.msra.mxu0 0.0
        %2198 = vmatprep.subr.mxu0 0.0
        %2199 = vmatpush2.msra.mxu0 0.0
        %2200 = vmatprep.subr.mxu0 0.0
        %2201 = vmatpush2.msra.mxu0 0.0
        %2202 = vmatprep.subr.mxu0 0.0
        %2203 = vmatpush2.msra.mxu0 0.0
        %2204 = vmatprep.subr.mxu0 0.0
        %2205 = vmatpush2.msra.mxu0 0.0
        %2206 = vmatprep.subr.mxu0 0.0
        %2207 = vmatpush2.msra.mxu0 0.0
        %2208 = vmatprep.mubr.f32.mxu0 0.0
        %2209 = vmatmul.mubr.f32.gmra.mxu0 %v2039
        %v2210 = vpop.f32.mrf.mxu0
        %v2211 = vadd.f32 %v2141, %v2210
        %v2212 = vpop.f32.mrf.mxu0
        %2213 = vdwg.mxu0
        %v2214 = vld [vmem:[#allocation3 + $0x2] sm:$0x1]
        %s2215 = scalar_lea.vmem [#allocation10], 256
        %v2216 = vld [vmem:[%s2215] sm:$0xff]
        %v2217 = vld [vmem:[%s2215 + $0x8] sm:$0xff]
        %v2218 = vld [vmem:[%s2215 + $0x10] sm:$0xff]
        %v2219 = vld [vmem:[%s2215 + $0x18] sm:$0xff]
        %v2220 = vld [vmem:[%s2215 + $0x20] sm:$0xff]
        %v2221 = vld [vmem:[%s2215 + $0x28] sm:$0xff]
        %v2222 = vld [vmem:[%s2215 + $0x30] sm:$0xff]
        %v2223 = vld [vmem:[%s2215 + $0x38] sm:$0xff]
        %v2224 = vld [vmem:[%s2215 + $0x40] sm:$0xff]
        %v2225 = vld [vmem:[%s2215 + $0x48] sm:$0xff]
        %v2226 = vld [vmem:[%s2215 + $0x50] sm:$0xff]
        %v2227 = vld [vmem:[%s2215 + $0x58] sm:$0xff]
        %v2228 = vld [vmem:[%s2215 + $0x60] sm:$0xff]
        %v2229 = vld [vmem:[%s2215 + $0x68] sm:$0xff]
        %v2230 = vld [vmem:[%s2215 + $0x70] sm:$0xff]
        %v2231 = vld [vmem:[%s2215 + $0x78] sm:$0xff]
        %2232 = vmatprep.subr.mxu0 0.0
        %2233 = vmatpush1.msra.mxu0 %v2231
        %2234 = vmatprep.subr.mxu0 0.0
        %2235 = vmatpush1.msra.mxu0 %v2230
        %2236 = vmatprep.subr.mxu0 0.0
        %2237 = vmatpush1.msra.mxu0 %v2229
        %2238 = vmatprep.subr.mxu0 0.0
        %2239 = vmatpush1.msra.mxu0 %v2228
        %2240 = vmatprep.subr.mxu0 0.0
        %2241 = vmatpush1.msra.mxu0 %v2227
        %2242 = vmatprep.subr.mxu0 0.0
        %2243 = vmatpush1.msra.mxu0 %v2226
        %2244 = vmatprep.subr.mxu0 0.0
        %2245 = vmatpush1.msra.mxu0 %v2225
        %2246 = vmatprep.subr.mxu0 0.0
        %2247 = vmatpush1.msra.mxu0 %v2224
        %2248 = vmatprep.subr.mxu0 0.0
        %2249 = vmatpush1.msra.mxu0 %v2223
        %2250 = vmatprep.subr.mxu0 0.0
        %2251 = vmatpush1.msra.mxu0 %v2222
        %2252 = vmatprep.subr.mxu0 0.0
        %2253 = vmatpush1.msra.mxu0 %v2221
        %2254 = vmatprep.subr.mxu0 0.0
        %2255 = vmatpush1.msra.mxu0 %v2220
        %2256 = vmatprep.subr.mxu0 0.0
        %2257 = vmatpush1.msra.mxu0 %v2219
        %2258 = vmatprep.subr.mxu0 0.0
        %2259 = vmatpush1.msra.mxu0 %v2218
        %2260 = vmatprep.subr.mxu0 0.0
        %2261 = vmatpush1.msra.mxu0 %v2217
        %2262 = vmatprep.subr.mxu0 0.0
        %2263 = vmatpush1.msra.mxu0 %v2216
        %2264 = vmatprep.subr.mxu0 0.0
        %2265 = vmatpush2.msra.mxu0 0.0
        %2266 = vmatprep.subr.mxu0 0.0
        %2267 = vmatpush2.msra.mxu0 0.0
        %2268 = vmatprep.subr.mxu0 0.0
        %2269 = vmatpush2.msra.mxu0 0.0
        %2270 = vmatprep.subr.mxu0 0.0
        %2271 = vmatpush2.msra.mxu0 0.0
        %2272 = vmatprep.subr.mxu0 0.0
        %2273 = vmatpush2.msra.mxu0 0.0
        %2274 = vmatprep.subr.mxu0 0.0
        %2275 = vmatpush2.msra.mxu0 0.0
        %2276 = vmatprep.subr.mxu0 0.0
        %2277 = vmatpush2.msra.mxu0 0.0
        %2278 = vmatprep.subr.mxu0 0.0
        %2279 = vmatpush2.msra.mxu0 0.0
        %2280 = vmatprep.subr.mxu0 0.0
        %2281 = vmatpush2.msra.mxu0 0.0
        %2282 = vmatprep.subr.mxu0 0.0
        %2283 = vmatpush2.msra.mxu0 0.0
        %2284 = vmatprep.subr.mxu0 0.0
        %2285 = vmatpush2.msra.mxu0 0.0
        %2286 = vmatprep.subr.mxu0 0.0
        %2287 = vmatpush2.msra.mxu0 0.0
        %2288 = vmatprep.subr.mxu0 0.0
        %2289 = vmatpush2.msra.mxu0 0.0
        %2290 = vmatprep.subr.mxu0 0.0
        %2291 = vmatpush2.msra.mxu0 0.0
        %2292 = vmatprep.subr.mxu0 0.0
        %2293 = vmatpush2.msra.mxu0 0.0
        %2294 = vmatprep.subr.mxu0 0.0
        %2295 = vmatpush2.msra.mxu0 0.0
        %2296 = vmatprep.mubr.f32.mxu0 0.0
        %2297 = vmatmul.mubr.f32.gmra.mxu0 %v2214
        %v2298 = vpop.f32.mrf.mxu0
        %v2299 = vadd.f32 0.0, %v2298
        %v2300 = vpop.f32.mrf.mxu0
        %2301 = vdwg.mxu0
        %v2302 = vadd.f32 %v2211, %v2299
        %v2303 = vld [vmem:[#allocation3 + $0x3] sm:$0x1]
        %s2304 = scalar_lea.vmem [#allocation10], 384
        %v2305 = vld [vmem:[%s2304] sm:$0xff]
        %v2306 = vld [vmem:[%s2304 + $0x8] sm:$0xff]
        %v2307 = vld [vmem:[%s2304 + $0x10] sm:$0xff]
        %v2308 = vld [vmem:[%s2304 + $0x18] sm:$0xff]
        %v2309 = vld [vmem:[%s2304 + $0x20] sm:$0xff]
        %v2310 = vld [vmem:[%s2304 + $0x28] sm:$0xff]
        %v2311 = vld [vmem:[%s2304 + $0x30] sm:$0xff]
        %v2312 = vld [vmem:[%s2304 + $0x38] sm:$0xff]
        %v2313 = vld [vmem:[%s2304 + $0x40] sm:$0xff]
        %v2314 = vld [vmem:[%s2304 + $0x48] sm:$0xff]
        %v2315 = vld [vmem:[%s2304 + $0x50] sm:$0xff]
        %v2316 = vld [vmem:[%s2304 + $0x58] sm:$0xff]
        %v2317 = vld [vmem:[%s2304 + $0x60] sm:$0xff]
        %v2318 = vld [vmem:[%s2304 + $0x68] sm:$0xff]
        %v2319 = vld [vmem:[%s2304 + $0x70] sm:$0xff]
        %v2320 = vld [vmem:[%s2304 + $0x78] sm:$0xff]
        %2321 = vmatprep.subr.mxu0 0.0
        %2322 = vmatpush1.msra.mxu0 %v2320
        %2323 = vmatprep.subr.mxu0 0.0
        %2324 = vmatpush1.msra.mxu0 %v2319
        %2325 = vmatprep.subr.mxu0 0.0
        %2326 = vmatpush1.msra.mxu0 %v2318
        %2327 = vmatprep.subr.mxu0 0.0
        %2328 = vmatpush1.msra.mxu0 %v2317
        %2329 = vmatprep.subr.mxu0 0.0
        %2330 = vmatpush1.msra.mxu0 %v2316
        %2331 = vmatprep.subr.mxu0 0.0
        %2332 = vmatpush1.msra.mxu0 %v2315
        %2333 = vmatprep.subr.mxu0 0.0
        %2334 = vmatpush1.msra.mxu0 %v2314
        %2335 = vmatprep.subr.mxu0 0.0
        %2336 = vmatpush1.msra.mxu0 %v2313
        %2337 = vmatprep.subr.mxu0 0.0
        %2338 = vmatpush1.msra.mxu0 %v2312
        %2339 = vmatprep.subr.mxu0 0.0
        %2340 = vmatpush1.msra.mxu0 %v2311
        %2341 = vmatprep.subr.mxu0 0.0
        %2342 = vmatpush1.msra.mxu0 %v2310
        %2343 = vmatprep.subr.mxu0 0.0
        %2344 = vmatpush1.msra.mxu0 %v2309
        %2345 = vmatprep.subr.mxu0 0.0
        %2346 = vmatpush1.msra.mxu0 %v2308
        %2347 = vmatprep.subr.mxu0 0.0
        %2348 = vmatpush1.msra.mxu0 %v2307
        %2349 = vmatprep.subr.mxu0 0.0
        %2350 = vmatpush1.msra.mxu0 %v2306
        %2351 = vmatprep.subr.mxu0 0.0
        %2352 = vmatpush1.msra.mxu0 %v2305
        %2353 = vmatprep.subr.mxu0 0.0
        %2354 = vmatpush2.msra.mxu0 0.0
        %2355 = vmatprep.subr.mxu0 0.0
        %2356 = vmatpush2.msra.mxu0 0.0
        %2357 = vmatprep.subr.mxu0 0.0
        %2358 = vmatpush2.msra.mxu0 0.0
        %2359 = vmatprep.subr.mxu0 0.0
        %2360 = vmatpush2.msra.mxu0 0.0
        %2361 = vmatprep.subr.mxu0 0.0
        %2362 = vmatpush2.msra.mxu0 0.0
        %2363 = vmatprep.subr.mxu0 0.0
        %2364 = vmatpush2.msra.mxu0 0.0
        %2365 = vmatprep.subr.mxu0 0.0
        %2366 = vmatpush2.msra.mxu0 0.0
        %2367 = vmatprep.subr.mxu0 0.0
        %2368 = vmatpush2.msra.mxu0 0.0
        %2369 = vmatprep.subr.mxu0 0.0
        %2370 = vmatpush2.msra.mxu0 0.0
        %2371 = vmatprep.subr.mxu0 0.0
        %2372 = vmatpush2.msra.mxu0 0.0
        %2373 = vmatprep.subr.mxu0 0.0
        %2374 = vmatpush2.msra.mxu0 0.0
        %2375 = vmatprep.subr.mxu0 0.0
        %2376 = vmatpush2.msra.mxu0 0.0
        %2377 = vmatprep.subr.mxu0 0.0
        %2378 = vmatpush2.msra.mxu0 0.0
        %2379 = vmatprep.subr.mxu0 0.0
        %2380 = vmatpush2.msra.mxu0 0.0
        %2381 = vmatprep.subr.mxu0 0.0
        %2382 = vmatpush2.msra.mxu0 0.0
        %2383 = vmatprep.subr.mxu0 0.0
        %2384 = vmatpush2.msra.mxu0 0.0
        %2385 = vmatprep.mubr.f32.mxu0 0.0
        %2386 = vmatmul.mubr.f32.gmra.mxu0 %v2303
        %v2387 = vpop.f32.mrf.mxu0
        %v2388 = vadd.f32 0.0, %v2387
        %v2389 = vpop.f32.mrf.mxu0
        %2390 = vdwg.mxu0
        %v2391 = vadd.f32 %v2302, %v2388
        %v2392 = vld [vmem:[#allocation3 + $0x4] sm:$0x1]
        %s2393 = scalar_lea.vmem [#allocation10], 512
        %v2394 = vld [vmem:[%s2393] sm:$0xff]
        %v2395 = vld [vmem:[%s2393 + $0x8] sm:$0xff]
        %v2396 = vld [vmem:[%s2393 + $0x10] sm:$0xff]
        %v2397 = vld [vmem:[%s2393 + $0x18] sm:$0xff]
        %v2398 = vld [vmem:[%s2393 + $0x20] sm:$0xff]
        %v2399 = vld [vmem:[%s2393 + $0x28] sm:$0xff]
        %v2400 = vld [vmem:[%s2393 + $0x30] sm:$0xff]
        %v2401 = vld [vmem:[%s2393 + $0x38] sm:$0xff]
        %v2402 = vld [vmem:[%s2393 + $0x40] sm:$0xff]
        %v2403 = vld [vmem:[%s2393 + $0x48] sm:$0xff]
        %v2404 = vld [vmem:[%s2393 + $0x50] sm:$0xff]
        %v2405 = vld [vmem:[%s2393 + $0x58] sm:$0xff]
        %v2406 = vld [vmem:[%s2393 + $0x60] sm:$0xff]
        %v2407 = vld [vmem:[%s2393 + $0x68] sm:$0xff]
        %v2408 = vld [vmem:[%s2393 + $0x70] sm:$0xff]
        %v2409 = vld [vmem:[%s2393 + $0x78] sm:$0xff]
        %2410 = vmatprep.subr.mxu0 0.0
        %2411 = vmatpush1.msra.mxu0 %v2409
        %2412 = vmatprep.subr.mxu0 0.0
        %2413 = vmatpush1.msra.mxu0 %v2408
        %2414 = vmatprep.subr.mxu0 0.0
        %2415 = vmatpush1.msra.mxu0 %v2407
        %2416 = vmatprep.subr.mxu0 0.0
        %2417 = vmatpush1.msra.mxu0 %v2406
        %2418 = vmatprep.subr.mxu0 0.0
        %2419 = vmatpush1.msra.mxu0 %v2405
        %2420 = vmatprep.subr.mxu0 0.0
        %2421 = vmatpush1.msra.mxu0 %v2404
        %2422 = vmatprep.subr.mxu0 0.0
        %2423 = vmatpush1.msra.mxu0 %v2403
        %2424 = vmatprep.subr.mxu0 0.0
        %2425 = vmatpush1.msra.mxu0 %v2402
        %2426 = vmatprep.subr.mxu0 0.0
        %2427 = vmatpush1.msra.mxu0 %v2401
        %2428 = vmatprep.subr.mxu0 0.0
        %2429 = vmatpush1.msra.mxu0 %v2400
        %2430 = vmatprep.subr.mxu0 0.0
        %2431 = vmatpush1.msra.mxu0 %v2399
        %2432 = vmatprep.subr.mxu0 0.0
        %2433 = vmatpush1.msra.mxu0 %v2398
        %2434 = vmatprep.subr.mxu0 0.0
        %2435 = vmatpush1.msra.mxu0 %v2397
        %2436 = vmatprep.subr.mxu0 0.0
        %2437 = vmatpush1.msra.mxu0 %v2396
        %2438 = vmatprep.subr.mxu0 0.0
        %2439 = vmatpush1.msra.mxu0 %v2395
        %2440 = vmatprep.subr.mxu0 0.0
        %2441 = vmatpush1.msra.mxu0 %v2394
        %2442 = vmatprep.subr.mxu0 0.0
        %2443 = vmatpush2.msra.mxu0 0.0
        %2444 = vmatprep.subr.mxu0 0.0
        %2445 = vmatpush2.msra.mxu0 0.0
        %2446 = vmatprep.subr.mxu0 0.0
        %2447 = vmatpush2.msra.mxu0 0.0
        %2448 = vmatprep.subr.mxu0 0.0
        %2449 = vmatpush2.msra.mxu0 0.0
        %2450 = vmatprep.subr.mxu0 0.0
        %2451 = vmatpush2.msra.mxu0 0.0
        %2452 = vmatprep.subr.mxu0 0.0
        %2453 = vmatpush2.msra.mxu0 0.0
        %2454 = vmatprep.subr.mxu0 0.0
        %2455 = vmatpush2.msra.mxu0 0.0
        %2456 = vmatprep.subr.mxu0 0.0
        %2457 = vmatpush2.msra.mxu0 0.0
        %2458 = vmatprep.subr.mxu0 0.0
        %2459 = vmatpush2.msra.mxu0 0.0
        %2460 = vmatprep.subr.mxu0 0.0
        %2461 = vmatpush2.msra.mxu0 0.0
        %2462 = vmatprep.subr.mxu0 0.0
        %2463 = vmatpush2.msra.mxu0 0.0
        %2464 = vmatprep.subr.mxu0 0.0
        %2465 = vmatpush2.msra.mxu0 0.0
        %2466 = vmatprep.subr.mxu0 0.0
        %2467 = vmatpush2.msra.mxu0 0.0
        %2468 = vmatprep.subr.mxu0 0.0
        %2469 = vmatpush2.msra.mxu0 0.0
        %2470 = vmatprep.subr.mxu0 0.0
        %2471 = vmatpush2.msra.mxu0 0.0
        %2472 = vmatprep.subr.mxu0 0.0
        %2473 = vmatpush2.msra.mxu0 0.0
        %2474 = vmatprep.mubr.f32.mxu0 0.0
        %2475 = vmatmul.mubr.f32.gmra.mxu0 %v2392
        %v2476 = vpop.f32.mrf.mxu0
        %v2477 = vadd.f32 0.0, %v2476
        %v2478 = vpop.f32.mrf.mxu0
        %2479 = vdwg.mxu0
        %v2480 = vadd.f32 %v2391, %v2477
        %v2481 = vld [vmem:[%s6] sm:$0x1]
        %v2482 = vadd.f32 %v2480, %v2481
        %v2483 = vmax.f32 %v2482, 0.0
        %v2484 = vld [vmem:[#allocation12] sm:$0xff]
        %v2485 = vld [vmem:[#allocation12 + $0x8] sm:$0xff]
        %v2486 = vld [vmem:[#allocation12 + $0x10] sm:$0xff]
        %v2487 = vld [vmem:[#allocation12 + $0x18] sm:$0xff]
        %v2488 = vld [vmem:[#allocation12 + $0x20] sm:$0xff]
        %v2489 = vld [vmem:[#allocation12 + $0x28] sm:$0xff]
        %v2490 = vld [vmem:[#allocation12 + $0x30] sm:$0xff]
        %v2491 = vld [vmem:[#allocation12 + $0x38] sm:$0xff]
        %v2492 = vld [vmem:[#allocation12 + $0x40] sm:$0xff]
        %v2493 = vld [vmem:[#allocation12 + $0x48] sm:$0xff]
        %v2494 = vld [vmem:[#allocation12 + $0x50] sm:$0xff]
        %v2495 = vld [vmem:[#allocation12 + $0x58] sm:$0xff]
        %v2496 = vld [vmem:[#allocation12 + $0x60] sm:$0xff]
        %v2497 = vld [vmem:[#allocation12 + $0x68] sm:$0xff]
        %v2498 = vld [vmem:[#allocation12 + $0x70] sm:$0xff]
        %v2499 = vld [vmem:[#allocation12 + $0x78] sm:$0xff]
        %v2500 = vld [vmem:[%s8] sm:$0x1]
        %2501 = vmatprep.subr.mxu0 0.0
        %2502 = vmatpush1.msra.mxu0 %v2499
        %2503 = vmatprep.subr.mxu0 0.0
        %2504 = vmatpush1.msra.mxu0 %v2498
        %2505 = vmatprep.subr.mxu0 0.0
        %2506 = vmatpush1.msra.mxu0 %v2497
        %2507 = vmatprep.subr.mxu0 0.0
        %2508 = vmatpush1.msra.mxu0 %v2496
        %2509 = vmatprep.subr.mxu0 0.0
        %2510 = vmatpush1.msra.mxu0 %v2495
        %2511 = vmatprep.subr.mxu0 0.0
        %2512 = vmatpush1.msra.mxu0 %v2494
        %2513 = vmatprep.subr.mxu0 0.0
        %2514 = vmatpush1.msra.mxu0 %v2493
        %2515 = vmatprep.subr.mxu0 0.0
        %2516 = vmatpush1.msra.mxu0 %v2492
        %2517 = vmatprep.subr.mxu0 0.0
        %2518 = vmatpush1.msra.mxu0 %v2491
        %2519 = vmatprep.subr.mxu0 0.0
        %2520 = vmatpush1.msra.mxu0 %v2490
        %2521 = vmatprep.subr.mxu0 0.0
        %2522 = vmatpush1.msra.mxu0 %v2489
        %2523 = vmatprep.subr.mxu0 0.0
        %2524 = vmatpush1.msra.mxu0 %v2488
        %2525 = vmatprep.subr.mxu0 0.0
        %2526 = vmatpush1.msra.mxu0 %v2487
        %2527 = vmatprep.subr.mxu0 0.0
        %2528 = vmatpush1.msra.mxu0 %v2486
        %2529 = vmatprep.subr.mxu0 0.0
        %2530 = vmatpush1.msra.mxu0 %v2485
        %2531 = vmatprep.subr.mxu0 0.0
        %2532 = vmatpush1.msra.mxu0 %v2484
        %2533 = vmatprep.subr.mxu0 0.0
        %2534 = vmatpush2.msra.mxu0 0.0
        %2535 = vmatprep.subr.mxu0 0.0
        %2536 = vmatpush2.msra.mxu0 0.0
        %2537 = vmatprep.subr.mxu0 0.0
        %2538 = vmatpush2.msra.mxu0 0.0
        %2539 = vmatprep.subr.mxu0 0.0
        %2540 = vmatpush2.msra.mxu0 0.0
        %2541 = vmatprep.subr.mxu0 0.0
        %2542 = vmatpush2.msra.mxu0 0.0
        %2543 = vmatprep.subr.mxu0 0.0
        %2544 = vmatpush2.msra.mxu0 0.0
        %2545 = vmatprep.subr.mxu0 0.0
        %2546 = vmatpush2.msra.mxu0 0.0
        %2547 = vmatprep.subr.mxu0 0.0
        %2548 = vmatpush2.msra.mxu0 0.0
        %2549 = vmatprep.subr.mxu0 0.0
        %2550 = vmatpush2.msra.mxu0 0.0
        %2551 = vmatprep.subr.mxu0 0.0
        %2552 = vmatpush2.msra.mxu0 0.0
        %2553 = vmatprep.subr.mxu0 0.0
        %2554 = vmatpush2.msra.mxu0 0.0
        %2555 = vmatprep.subr.mxu0 0.0
        %2556 = vmatpush2.msra.mxu0 0.0
        %2557 = vmatprep.subr.mxu0 0.0
        %2558 = vmatpush2.msra.mxu0 0.0
        %2559 = vmatprep.subr.mxu0 0.0
        %2560 = vmatpush2.msra.mxu0 0.0
        %2561 = vmatprep.subr.mxu0 0.0
        %2562 = vmatpush2.msra.mxu0 0.0
        %2563 = vmatprep.subr.mxu0 0.0
        %2564 = vmatpush2.msra.mxu0 0.0
        %2565 = vmatprep.mubr.f32.mxu0 0.0
        %2566 = vmatmul.mubr.f32.gmra.mxu0 %v2483
        %v2567 = vpop.f32.mrf.mxu0
        %v2568 = vadd.f32 %v2500, %v2567
        %v2569 = vpop.f32.mrf.mxu0
        %2570 = vdwg.mxu0
        %v2571 = vmax.f32 %v2568, 0.0
        %v2572 = vld [vmem:[#allocation13] sm:$0xff]
        %v2573 = vld [vmem:[#allocation13 + $0x8] sm:$0xff]
        %v2574 = vld [vmem:[#allocation13 + $0x10] sm:$0xff]
        %v2575 = vld [vmem:[#allocation13 + $0x18] sm:$0xff]
        %v2576 = vld [vmem:[#allocation13 + $0x20] sm:$0xff]
        %v2577 = vld [vmem:[#allocation13 + $0x28] sm:$0xff]
        %v2578 = vld [vmem:[#allocation13 + $0x30] sm:$0xff]
        %v2579 = vld [vmem:[#allocation13 + $0x38] sm:$0xff]
        %v2580 = vld [vmem:[#allocation13 + $0x40] sm:$0xff]
        %v2581 = vld [vmem:[#allocation13 + $0x48] sm:$0xff]
        %v2582 = vld [vmem:[#allocation13 + $0x50] sm:$0xff]
        %v2583 = vld [vmem:[#allocation13 + $0x58] sm:$0xff]
        %v2584 = vld [vmem:[#allocation13 + $0x60] sm:$0xff]
        %v2585 = vld [vmem:[#allocation13 + $0x68] sm:$0xff]
        %v2586 = vld [vmem:[#allocation13 + $0x70] sm:$0xff]
        %v2587 = vld [vmem:[#allocation13 + $0x78] sm:$0xff]
        %v2588 = vld [vmem:[%s10] sm:$0x1]
        %2589 = vmatprep.subr.mxu0 0.0
        %2590 = vmatpush1.msra.mxu0 %v2587
        %2591 = vmatprep.subr.mxu0 0.0
        %2592 = vmatpush1.msra.mxu0 %v2586
        %2593 = vmatprep.subr.mxu0 0.0
        %2594 = vmatpush1.msra.mxu0 %v2585
        %2595 = vmatprep.subr.mxu0 0.0
        %2596 = vmatpush1.msra.mxu0 %v2584
        %2597 = vmatprep.subr.mxu0 0.0
        %2598 = vmatpush1.msra.mxu0 %v2583
        %2599 = vmatprep.subr.mxu0 0.0
        %2600 = vmatpush1.msra.mxu0 %v2582
        %2601 = vmatprep.subr.mxu0 0.0
        %2602 = vmatpush1.msra.mxu0 %v2581
        %2603 = vmatprep.subr.mxu0 0.0
        %2604 = vmatpush1.msra.mxu0 %v2580
        %2605 = vmatprep.subr.mxu0 0.0
        %2606 = vmatpush1.msra.mxu0 %v2579
        %2607 = vmatprep.subr.mxu0 0.0
        %2608 = vmatpush1.msra.mxu0 %v2578
        %2609 = vmatprep.subr.mxu0 0.0
        %2610 = vmatpush1.msra.mxu0 %v2577
        %2611 = vmatprep.subr.mxu0 0.0
        %2612 = vmatpush1.msra.mxu0 %v2576
        %2613 = vmatprep.subr.mxu0 0.0
        %2614 = vmatpush1.msra.mxu0 %v2575
        %2615 = vmatprep.subr.mxu0 0.0
        %2616 = vmatpush1.msra.mxu0 %v2574
        %2617 = vmatprep.subr.mxu0 0.0
        %2618 = vmatpush1.msra.mxu0 %v2573
        %2619 = vmatprep.subr.mxu0 0.0
        %2620 = vmatpush1.msra.mxu0 %v2572
        %2621 = vmatprep.subr.mxu0 0.0
        %2622 = vmatpush2.msra.mxu0 0.0
        %2623 = vmatprep.subr.mxu0 0.0
        %2624 = vmatpush2.msra.mxu0 0.0
        %2625 = vmatprep.subr.mxu0 0.0
        %2626 = vmatpush2.msra.mxu0 0.0
        %2627 = vmatprep.subr.mxu0 0.0
        %2628 = vmatpush2.msra.mxu0 0.0
        %2629 = vmatprep.subr.mxu0 0.0
        %2630 = vmatpush2.msra.mxu0 0.0
        %2631 = vmatprep.subr.mxu0 0.0
        %2632 = vmatpush2.msra.mxu0 0.0
        %2633 = vmatprep.subr.mxu0 0.0
        %2634 = vmatpush2.msra.mxu0 0.0
        %2635 = vmatprep.subr.mxu0 0.0
        %2636 = vmatpush2.msra.mxu0 0.0
        %2637 = vmatprep.subr.mxu0 0.0
        %2638 = vmatpush2.msra.mxu0 0.0
        %2639 = vmatprep.subr.mxu0 0.0
        %2640 = vmatpush2.msra.mxu0 0.0
        %2641 = vmatprep.subr.mxu0 0.0
        %2642 = vmatpush2.msra.mxu0 0.0
        %2643 = vmatprep.subr.mxu0 0.0
        %2644 = vmatpush2.msra.mxu0 0.0
        %2645 = vmatprep.subr.mxu0 0.0
        %2646 = vmatpush2.msra.mxu0 0.0
        %2647 = vmatprep.subr.mxu0 0.0
        %2648 = vmatpush2.msra.mxu0 0.0
        %2649 = vmatprep.subr.mxu0 0.0
        %2650 = vmatpush2.msra.mxu0 0.0
        %2651 = vmatprep.subr.mxu0 0.0
        %2652 = vmatpush2.msra.mxu0 0.0
        %2653 = vmatprep.mubr.f32.mxu0 0.0
        %2654 = vmatmul.mubr.f32.gmra.mxu0 %v2571
        %v2655 = vpop.f32.mrf.mxu0
        %v2656 = vadd.f32 %v2588, %v2655
        %v2657 = vpop.f32.mrf.mxu0
        %2658 = vdwg.mxu0
        %2659 = vst [vmem:[%s476] sm:$0x1] %v2656
        %s2660 = sand.u32 %s275, 1
        %s2661 = scalar_lea.sflag [#allocation6], %s2660
        %s2662 = sand.u32 %s275, 1
        %s2663 = scalar_lea.vmem [#allocation15], %s2662
        // Predicated region
        $region89: #{lenet5_forward.1} parent=63 // pred_check
          %p2664 = pneg %p285
        $region90: #{lenet5_forward.1} parent=63 // pred_check_branch
          %2666 = sbr.rel (%p2664) target = $region92
        $region91: #{lenet5_forward.1} parent=63 // pred_region
          %s2668 = ssub.s32 16, 16
          %2669 = vsyncadd %s2661, %s2668
          %s2670 = smul.addr %s31, 16
          %s2671 = scalar_lea.hbm %s11, %s2670
          %s2673 = sshll.u32 %s2663, 4
          %s2674 = int_to_ptr.vmem [resolvable:$true] %s2673
          %2676 = dma.vmem_to_hbm [thread:$0]  %s2674, 16, %s2671, %s2661
        $region92: #{lenet5_forward.1} parent=63 // pred_fallthru
          _
      $region64: #{lenet5_forward.1} parent=5 // pred_fallthru
        _
      %p2677 = scmp.le.s32.totalorder 2, %s26
      // Predicated region
      $region93: #{lenet5_forward.1} parent=5 // pred_check
        %p2678 = pneg %p2677
      $region94: #{lenet5_forward.1} parent=5 // pred_check_branch
        %2680 = sbr.rel (%p2678) target = $region96
      $region95: #{lenet5_forward.1} parent=5 // pred_region
        %s2681 = ssub.s32 %s26, 2
        // Predicated region
        $region97: #{lenet5_forward.1} parent=95 // pred_check
          %p2682 = pneg %p291
        $region98: #{lenet5_forward.1} parent=95 // pred_check_branch
          %2684 = sbr.rel (%p2682) target = $region100
        $region99: #{lenet5_forward.1} parent=95 // pred_region
          %s2685 = sand.u32 %s276, 1
          %s2686 = scalar_lea.sflag [#allocation6], %s2685
          %s2687 = sand.u32 %s276, 1
          %s2688 = scalar_lea.vmem [#allocation15], %s2687
          %2689 = dma.done %s2686, 16
        $region100: #{lenet5_forward.1} parent=95 // pred_fallthru
          _
      $region96: #{lenet5_forward.1} parent=5 // pred_fallthru
        _
    $region6: #{lenet5_forward.1} parent=1 // loop_footer
      %s30 = sadd.s32 1, %s26
    $region7: #{lenet5_forward.1} parent=1 // loop_footer_branch
      %25 = sbr.rel target = $region3
    $region8: #{lenet5_forward.1} parent=1 // loop_exit
      _
    %2690 = vsyncpa [#allocation5], 1
    %s2691 = scalar_lea.sflag [#allocation5], 1
    %2692 = vsyncpa %s2691, 1
    %2693 = vsyncpa [#allocation8], 1
    %2694 = vsyncpa [#allocation11], 1
    %2695 = vsyncpa [#allocation14], 1
    %2696 = vsyncpa [#allocation6], 1
    %s2697 = scalar_lea.sflag [#allocation6], 1
    %2698 = vsyncpa %s2697, 1

</llo_original>
